<compile_context>
chip_gen: v7x
topology: tpu7x:2x2x1
jax: 0.10.0
libtpu: 0.0.40
codegen_flags: <defaults>
</compile_context>

<pallas_src>
import jax
import jax.numpy as jnp
from jax import lax
from jax.experimental import pallas as pl
from jax.experimental.pallas import tpu as pltpu


def _conv3x3_rows(src, w_ref, b_ref, *, out_rows):
    """3x3 conv (reflect-padded in W) over src:(R, W, C) float32.

    Row taps are 'valid': output row i reads src rows i..i+2 (caller supplies
    halo rows).  Column taps are fused into one wide-K MXU operand: the
    left/center/right W-shifted planes are lane-concatenated to (R*W, 3C) and
    each of the three row taps is a single dot with K=3C against
    w_ref[ky]:(3C, C).  Returns a flat (out_rows*W, C) f32 accumulator with
    the bias already included.
    """
    R, W, C = src.shape
    col = lax.broadcasted_iota(jnp.int32, (R, W, C), 1)
    # XLU rotations (free-ish while the MXU is busy); a one-column jnp.where
    # fixes the reflected boundary column of each shifted plane.
    fwd = pltpu.roll(src, shift=W - 1, axis=1)   # fwd[:, w] = src[:, (w+1)%W]
    bwd = pltpu.roll(src, shift=1, axis=1)       # bwd[:, w] = src[:, (w-1)%W]
    left = jnp.where(col == 0, fwd, bwd)         # col -1 -> reflect -> col 1
    right = jnp.where(col == W - 1, bwd, fwd)    # col W  -> reflect -> col W-2

    cat = jnp.concatenate([left, src, right], axis=-1)          # (R, W, 3C)
    cat = cat.astype(jnp.bfloat16).reshape(R * W, 3 * C)

    m = out_rows * W
    # Seed the accumulator with the broadcast bias and keep one accumulator
    # chained through the unrolled dots (v7x MRB in-place accumulation).
    acc = jnp.broadcast_to(b_ref[...].astype(jnp.float32), (m, C))
    for ky in range(3):
        acc = acc + jnp.dot(cat[ky * W:ky * W + m, :], w_ref[ky],
                            preferred_element_type=jnp.float32)
    return acc


def residual_block_kernel(x_ref, halo_ref, w1_ref, b1_ref, w2_ref, b2_ref,
                          o_ref, h_ref):
    # x_ref    : (tile_h, W, C)      x strip (residual add + window body)
    # halo_ref : (4, W, C)           2 rows above + 2 rows below the strip
    # h_ref    : (tile_h + 2, W, C)  f32 VMEM scratch for conv1 output rows
    j = pl.program_id(1)
    n_strips = pl.num_programs(1)
    th, W, C = o_ref.shape
    he = th + 2                       # h rows conv2 needs for this strip

    xs = x_ref[...].astype(jnp.float32)
    halo = halo_ref[...].astype(jnp.float32)
    # (tile_h + 4)-row window; rows 0..1 / th+2..th+3 come from the halo.
    win = jnp.concatenate([halo[0:2], xs, halo[2:4]], axis=0)

    # ---- conv1 + ReLU -> (th + 2) rows of h, kept in f32 -------------------
    acc1 = _conv3x3_rows(win, w1_ref, b1_ref, out_rows=he)
    h_ref[...] = jnp.maximum(acc1, 0.0).reshape(he, W, C)

    # conv2's reflect padding mirrors *h*, not x: at the image top/bottom the
    # out-of-image h rows must be replaced by mirrored in-image h rows.
    # NOTE: these fixups are exactly what makes window row 0 (when j == 0)
    # and window row th+3 (when j == n_strips-1) don't-cares -- h rows 0 and
    # he-1 are the only rows those window rows feed, and they are overwritten
    # here.  Keep the two coupled if tiling is ever changed.
    @pl.when(j == 0)
    def _():
        h_ref[0] = h_ref[2]

    @pl.when(j == n_strips - 1)
    def _():
        h_ref[he - 1] = h_ref[he - 3]

    # ---- conv2 over the (th + 2)-row h window, then residual add ----------
    acc2 = _conv3x3_rows(h_ref[...], w2_ref, b2_ref, out_rows=th)
    o_ref[...] = (xs + acc2.reshape(th, W, C)).astype(o_ref.dtype)


def _vmem_capacity_bytes():
    try:
        cap = getattr(pltpu.get_tpu_info(), "vmem_capacity_bytes", None)
        if cap:
            return int(cap)
    except Exception:
        pass
    return 128 << 20              # v5e/v6e default


def _pick_tile_h(H, W, C, *, batch=1, budget_bytes=None):
    """Largest divisor of H whose per-strip f32 working set fits a
    generation-aware budget (~VMEM/8: ~16 MiB v5e/v6e, ~8 MiB v7x), preferring
    >= 8 rows per strip and, for odd batches, an even number of grid steps so
    v7x's two TensorCores stay balanced."""
    if budget_bytes is None:
        budget_bytes = max(_vmem_capacity_bytes() // 8, 2 << 20)
    divisors = [d for d in range(1, H + 1) if H % d == 0]
    # rough per-strip f32 working set ~= 6 copies of the (d+4)-row window
    fitting = [d for d in divisors if (d + 4) * W * C * 4 * 6 <= budget_bytes]
    if not fitting:
        fitting = [divisors[0]]   # prime / huge-H fallback: 1-row strips
    preferred = [d for d in fitting if d >= 8] or fitting
    if batch % 2 == 1:
        even = [d for d in preferred if (H // d) % 2 == 0]
        if even:
            preferred = even
    return max(preferred)


def _vmem_limit_bytes(tile_h, W, C, itemsize, cap):
    f32, bf16 = 4, 2
    blocks = 2 * ((tile_h + 4 + tile_h) * W * C * itemsize)    # x+halo+out, 2-buf
    weights = 2 * 2 * (9 * C * C * bf16 + C * f32)             # w/b, 2-buf
    h_scr = (tile_h + 2) * W * C * f32
    work = ((tile_h + 4) * W * C * f32 * 4                     # window + planes
            + (tile_h + 4) * W * 3 * C * (f32 + bf16)          # wide-K operand
            + (tile_h + 2) * W * C * f32)                      # accumulator
    est = int((blocks + weights + h_scr + work) * 1.5)         # headroom
    # No large floor; cap well below physical VMEM (v7x: 64 MiB per TC).
    return max(16 << 20, min(est, int(cap * 0.85)))


def residual_block_nhwc(x, w1, b1, w2, b2, *, tile_h=None):
    """Fused CycleGAN ResidualBlock, NHWC layout.

    x: (N, H, W, C); w1, w2: (3, 3, Cin, Cout); b1, b2: (C,) or (1, C).
    Keep the surrounding network NHWC and call this directly; the NCHW
    wrapper below adds two full-HBM transpose passes."""
    N, H, W, C = x.shape
    assert H >= 3 and W >= 2, "reflect halo construction needs H >= 3, W >= 2"
    if tile_h is None:
        tile_h = _pick_tile_h(H, W, C, batch=N)
    assert 1 <= tile_h <= H and H % tile_h == 0, "tile_h must divide H"
    n_strips = H // tile_h
    cap = _vmem_capacity_bytes()
    # TODO(synk): C < 128 under-utilizes the 128-wide lane axis (real CycleGAN
    # residual blocks use C=256); pad/fold channels for small-C deployments.

    # Wide-K fused weights: (3, 3, Cin, Cout) -> (3, 3*Cin, Cout) bf16 so the
    # kernel issues 3 MXU dots (K = 3C) per conv instead of 9 (K = C).
    w1c = jnp.asarray(w1).astype(jnp.bfloat16).reshape(3, 3 * C, C)
    w2c = jnp.asarray(w2).astype(jnp.bfloat16).reshape(3, 3 * C, C)
    b1f = jnp.asarray(b1, jnp.float32).reshape(1, C)
    b2f = jnp.asarray(b2, jnp.float32).reshape(1, C)

    # 2-row top/bottom halos per strip gathered straight from x with reflected
    # row indices (no whole-image pad and no duplicated halo-window copy).
    # The j==0 top-top row and j==last bottom-bottom row are don't-cares
    # (their h rows are overwritten by the in-kernel reflect fixups), but the
    # reflection formula gives them valid in-bounds values anyway.
    offs = jnp.array([-2, -1, tile_h, tile_h + 1], jnp.int32)
    idx = jnp.arange(n_strips, dtype=jnp.int32)[:, None] * tile_h + offs[None, :]
    idx = jnp.where(idx < 0, -idx, idx)
    idx = jnp.where(idx >= H, 2 * H - 2 - idx, idx)
    halo = x[:, idx]                                  # (N, n_strips, 4, W, C)

    out = pl.pallas_call(
        residual_block_kernel,
        out_shape=jax.ShapeDtypeStruct((N, H, W, C), x.dtype),
        grid_spec=pltpu.PrefetchScalarGridSpec(
            num_scalar_prefetch=0,
            grid=(N, n_strips),
            in_specs=[
                pl.BlockSpec((None, tile_h, W, C), lambda n, j: (n, j, 0, 0)),
                pl.BlockSpec((None, None, 4, W, C),
                             lambda n, j: (n, j, 0, 0, 0)),
                # TODO(synk): mark these constant-index weight/bias blocks as
                # single-buffered (pipeline_mode=pl.Buffered(1)) to reclaim
                # their second VMEM buffer once that path is validated.
                pl.BlockSpec((3, 3 * C, C), lambda n, j: (0, 0, 0)),
                pl.BlockSpec((1, C), lambda n, j: (0, 0)),
                pl.BlockSpec((3, 3 * C, C), lambda n, j: (0, 0, 0)),
                pl.BlockSpec((1, C), lambda n, j: (0, 0)),
            ],
            out_specs=pl.BlockSpec((None, tile_h, W, C),
                                   lambda n, j: (n, j, 0, 0)),
            scratch_shapes=[pltpu.VMEM((tile_h + 2, W, C), jnp.float32)],
        ),
        compiler_params=pltpu.CompilerParams(
            dimension_semantics=("parallel", "parallel"),
            vmem_limit_bytes=_vmem_limit_bytes(tile_h, W, C,
                                               x.dtype.itemsize, cap)),
    )(x, halo, w1c, b1f, w2c, b2f)
    return out


def residual_block(x_nchw, w1, b1, w2, b2, *, tile_h=None):
    """PyTorch-layout (NCHW) convenience wrapper around the NHWC kernel."""
    x = jnp.transpose(x_nchw, (0, 2, 3, 1))
    y = residual_block_nhwc(x, w1, b1, w2, b2, tile_h=tile_h)
    return jnp.transpose(y, (0, 3, 1, 2))


def _reference(x_nchw, w1, b1, w2, b2):
    """Pure-JAX reference (lax conv, NCHW, f32) for validation."""
    def conv(x, w_khwio, b):
        w_oihw = jnp.transpose(w_khwio, (3, 2, 0, 1))
        xp = jnp.pad(x, ((0, 0), (0, 0), (1, 1), (1, 1)), mode="reflect")
        y = lax.conv_general_dilated(
            xp, w_oihw, window_strides=(1, 1), padding="VALID",
            dimension_numbers=("NCHW", "OIHW", "NCHW"))
        return y + b.reshape(1, -1, 1, 1)

    h = jnp.maximum(conv(x_nchw, w1, b1), 0.0)
    return x_nchw + conv(h, w2, b2)


if __name__ == "__main__":
    N, C, H, W = 2, 4, 16, 16
    key = jax.random.PRNGKey(0)
    kx, k1, kb1, k2, kb2 = jax.random.split(key, 5)

    x = jax.random.normal(kx, (N, C, H, W), dtype=jnp.float32)

    # Synthetic parameters with shapes matching nn.Conv2d(C, C, 3).
    fan_in = C * 3 * 3
    bound = 1.0 / (fan_in ** 0.5)
    w1 = jax.random.uniform(k1, (3, 3, C, C), jnp.float32, -bound, bound)
    b1 = jax.random.uniform(kb1, (1, C), jnp.float32, -bound, bound)
    w2 = jax.random.uniform(k2, (3, 3, C, C), jnp.float32, -bound, bound)
    b2 = jax.random.uniform(kb2, (1, C), jnp.float32, -bound, bound)

    ref = _reference(x, w1, b1.reshape(-1), w2, b2.reshape(-1))

    # Auto tiling plus explicit tilings that exercise the single-strip and
    # multi-strip top/bottom reflect-fixup paths.
    for th in (None, 8, 4, 16):
        out = jax.block_until_ready(
            residual_block(x, w1, b1, w2, b2, tile_h=th))
        assert out.shape == (N, C, H, W)
        # bf16 MXU operands -> relaxed tolerance vs. the f32 reference.
        assert jnp.allclose(out, ref, atol=2e-2, rtol=2e-2), \
            (th, float(jnp.max(jnp.abs(out - ref))))

    print("KERNEL_OK")
</pallas_src>

<mosaic_0001>
module attributes {stable_mosaic.version = 11 : i64} {
  func.func @residual_block_kernel(%arg0: i32, %arg1: i32, %arg2: memref<1x16x16x4xf32, #tpu.memory_space<vmem>>, %arg3: memref<1x1x4x16x4xf32, #tpu.memory_space<vmem>>, %arg4: memref<3x12x4xbf16, #tpu.memory_space<vmem>>, %arg5: memref<1x4xf32, #tpu.memory_space<vmem>>, %arg6: memref<3x12x4xbf16, #tpu.memory_space<vmem>>, %arg7: memref<1x4xf32, #tpu.memory_space<vmem>>, %arg8: memref<1x16x16x4xf32, #tpu.memory_space<vmem>>, %arg9: memref<18x16x4xf32, #tpu.memory_space<vmem>>) attributes {dimension_semantics = [#tpu.dimension_semantics<parallel>, #tpu.dimension_semantics<parallel>], iteration_bounds = array<i64: 2, 1>, scalar_prefetch = 0 : i64, scratch_operands = 1 : i64, tpu.core_type = #tpu.core_type<tc>, window_params = [{transform_indices = @transform_0, window_bounds = array<i64: 1, 16, 16, 4>}, {transform_indices = @transform_1, window_bounds = array<i64: 1, 1, 4, 16, 4>}, {pipeline_mode = #tpu.pipeline_mode<synchronous>, transform_indices = @transform_2, window_bounds = array<i64: 3, 12, 4>}, {pipeline_mode = #tpu.pipeline_mode<synchronous>, transform_indices = @transform_3, window_bounds = array<i64: 1, 4>}, {pipeline_mode = #tpu.pipeline_mode<synchronous>, transform_indices = @transform_4, window_bounds = array<i64: 3, 12, 4>}, {pipeline_mode = #tpu.pipeline_mode<synchronous>, transform_indices = @transform_5, window_bounds = array<i64: 1, 4>}, {transform_indices = @transform_6, window_bounds = array<i64: 1, 16, 16, 4>}]} {
    %c0 = arith.constant 0 : index
    %c0_0 = arith.constant 0 : index
    %c0_1 = arith.constant 0 : index
    %c0_2 = arith.constant 0 : index
    %0 = vector.load %arg2[%c0, %c0_0, %c0_1, %c0_2] : memref<1x16x16x4xf32, #tpu.memory_space<vmem>>, vector<1x16x16x4xf32>
    %1 = vector.shape_cast %0 : vector<1x16x16x4xf32> to vector<16x16x4xf32>
    %c0_3 = arith.constant 0 : index
    %c0_4 = arith.constant 0 : index
    %c0_5 = arith.constant 0 : index
    %c0_6 = arith.constant 0 : index
    %c0_7 = arith.constant 0 : index
    %2 = vector.load %arg3[%c0_3, %c0_4, %c0_5, %c0_6, %c0_7] : memref<1x1x4x16x4xf32, #tpu.memory_space<vmem>>, vector<1x1x4x16x4xf32>
    %3 = vector.shape_cast %2 : vector<1x1x4x16x4xf32> to vector<4x16x4xf32>
    %4 = vector.extract_strided_slice %3 {offsets = [0, 0, 0], sizes = [2, 16, 4], strides = [1, 1, 1]} : vector<4x16x4xf32> to vector<2x16x4xf32>
    %5 = vector.extract_strided_slice %3 {offsets = [2, 0, 0], sizes = [2, 16, 4], strides = [1, 1, 1]} : vector<4x16x4xf32> to vector<2x16x4xf32>
    %6 = tpu.concatenate %4, %1, %5 in 0 : vector<2x16x4xf32>, vector<16x16x4xf32>, vector<2x16x4xf32> -> vector<20x16x4xf32>
    %7 = tpu.iota {dimensions = array<i32: 1>} : vector<20x16x4xi32>
    %c15_i32 = arith.constant 15 : i32
    %8 = tpu.dynamic_rotate %6 by %c15_i32 dim 1 : vector<20x16x4xf32>, i32 -> vector<20x16x4xf32>
    %c1_i32 = arith.constant 1 : i32
    %9 = tpu.dynamic_rotate %6 by %c1_i32 dim 1 : vector<20x16x4xf32>, i32 -> vector<20x16x4xf32>
    %c0_i32 = arith.constant 0 : i32
    %10 = vector.broadcast %c0_i32 : i32 to vector<20x16x4xi32>
    %11 = arith.cmpi eq, %7, %10 : vector<20x16x4xi32>
    %12 = arith.select %11, %8, %9 : vector<20x16x4xi1>, vector<20x16x4xf32>
    %c15_i32_8 = arith.constant 15 : i32
    %13 = vector.broadcast %c15_i32_8 : i32 to vector<20x16x4xi32>
    %14 = arith.cmpi eq, %7, %13 : vector<20x16x4xi32>
    %15 = arith.select %14, %9, %8 : vector<20x16x4xi1>, vector<20x16x4xf32>
    %16 = tpu.concatenate %12, %6, %15 in 2 : vector<20x16x4xf32>, vector<20x16x4xf32>, vector<20x16x4xf32> -> vector<20x16x12xf32>
    %17 = arith.truncf %16 : vector<20x16x12xf32> to vector<20x16x12xbf16>
    %18 = vector.shape_cast %17 : vector<20x16x12xbf16> to vector<320x12xbf16>
    %c0_9 = arith.constant 0 : index
    %c0_10 = arith.constant 0 : index
    %19 = vector.load %arg5[%c0_9, %c0_10] : memref<1x4xf32, #tpu.memory_space<vmem>>, vector<1x4xf32>
    %20 = vector.shape_cast %19 : vector<1x4xf32> to vector<1x4xf32>
    %21 = vector.broadcast %20 : vector<1x4xf32> to vector<288x4xf32>
    %22 = vector.extract_strided_slice %18 {offsets = [0, 0], sizes = [288, 12], strides = [1, 1]} : vector<320x12xbf16> to vector<288x12xbf16>
    %c0_11 = arith.constant 0 : index
    %c0_12 = arith.constant 0 : index
    %c0_13 = arith.constant 0 : index
    %23 = vector.load %arg4[%c0_11, %c0_12, %c0_13] : memref<3x12x4xbf16, #tpu.memory_space<vmem>>, vector<1x12x4xbf16>
    %24 = vector.shape_cast %23 : vector<1x12x4xbf16> to vector<12x4xbf16>
    %cst = arith.constant dense<0.000000e+00> : vector<288x4xf32>
    %25 = tpu.matmul %22, %24, %cst {dimension_numbers = #tpu.dot_dimension_numbers<[1], [0], [0], [1], [0, 0, 1, 1], [], []>} : vector<288x12xbf16>, vector<12x4xbf16>, vector<288x4xf32> -> vector<288x4xf32>
    %26 = arith.addf %21, %25 : vector<288x4xf32>
    %27 = vector.extract_strided_slice %18 {offsets = [16, 0], sizes = [288, 12], strides = [1, 1]} : vector<320x12xbf16> to vector<288x12xbf16>
    %c1 = arith.constant 1 : index
    %c0_14 = arith.constant 0 : index
    %c0_15 = arith.constant 0 : index
    %28 = vector.load %arg4[%c1, %c0_14, %c0_15] : memref<3x12x4xbf16, #tpu.memory_space<vmem>>, vector<1x12x4xbf16>
    %29 = vector.shape_cast %28 : vector<1x12x4xbf16> to vector<12x4xbf16>
    %cst_16 = arith.constant dense<0.000000e+00> : vector<288x4xf32>
    %30 = tpu.matmul %27, %29, %cst_16 {dimension_numbers = #tpu.dot_dimension_numbers<[1], [0], [0], [1], [0, 0, 1, 1], [], []>} : vector<288x12xbf16>, vector<12x4xbf16>, vector<288x4xf32> -> vector<288x4xf32>
    %31 = arith.addf %26, %30 : vector<288x4xf32>
    %32 = vector.extract_strided_slice %18 {offsets = [32, 0], sizes = [288, 12], strides = [1, 1]} : vector<320x12xbf16> to vector<288x12xbf16>
    %c2 = arith.constant 2 : index
    %c0_17 = arith.constant 0 : index
    %c0_18 = arith.constant 0 : index
    %33 = vector.load %arg4[%c2, %c0_17, %c0_18] : memref<3x12x4xbf16, #tpu.memory_space<vmem>>, vector<1x12x4xbf16>
    %34 = vector.shape_cast %33 : vector<1x12x4xbf16> to vector<12x4xbf16>
    %cst_19 = arith.constant dense<0.000000e+00> : vector<288x4xf32>
    %35 = tpu.matmul %32, %34, %cst_19 {dimension_numbers = #tpu.dot_dimension_numbers<[1], [0], [0], [1], [0, 0, 1, 1], [], []>} : vector<288x12xbf16>, vector<12x4xbf16>, vector<288x4xf32> -> vector<288x4xf32>
    %36 = arith.addf %31, %35 : vector<288x4xf32>
    %cst_20 = arith.constant 0.000000e+00 : f32
    %37 = vector.broadcast %cst_20 : f32 to vector<288x4xf32>
    %38 = arith.maximumf %36, %37 : vector<288x4xf32>
    %39 = vector.shape_cast %38 : vector<288x4xf32> to vector<18x16x4xf32>
    %c0_21 = arith.constant 0 : index
    %c0_22 = arith.constant 0 : index
    %c0_23 = arith.constant 0 : index
    %40 = vector.load %arg9[%c0_21, %c0_22, %c0_23] : memref<18x16x4xf32, #tpu.memory_space<vmem>>, vector<18x16x4xf32>
    tpu.vector_store %arg9[%c0_21, %c0_22, %c0_23], %39 {strides = array<i32>} : memref<18x16x4xf32, #tpu.memory_space<vmem>>, vector<18x16x4xf32>,
    %c0_i32_24 = arith.constant 0 : i32
    %41 = arith.cmpi eq, %arg1, %c0_i32_24 : i32
    %42 = arith.extui %41 : i1 to i32
    %c0_i32_25 = arith.constant 0 : i32
    %43 = arith.cmpi ne, %42, %c0_i32_25 : i32
    scf.if %43 {
      %c2_53 = arith.constant 2 : index
      %c0_54 = arith.constant 0 : index
      %c0_55 = arith.constant 0 : index
      %83 = vector.load %arg9[%c2_53, %c0_54, %c0_55] : memref<18x16x4xf32, #tpu.memory_space<vmem>>, vector<1x16x4xf32>
      %84 = vector.shape_cast %83 : vector<1x16x4xf32> to vector<16x4xf32>
      %c0_56 = arith.constant 0 : index
      %c0_57 = arith.constant 0 : index
      %c0_58 = arith.constant 0 : index
      %85 = vector.load %arg9[%c0_56, %c0_57, %c0_58] : memref<18x16x4xf32, #tpu.memory_space<vmem>>, vector<1x16x4xf32>
      %86 = vector.shape_cast %85 : vector<1x16x4xf32> to vector<16x4xf32>
      %87 = vector.shape_cast %84 : vector<16x4xf32> to vector<1x16x4xf32>
      tpu.vector_store %arg9[%c0_56, %c0_57, %c0_58], %87 {strides = array<i32>} : memref<18x16x4xf32, #tpu.memory_space<vmem>>, vector<1x16x4xf32>,
    } else {
    }
    %c0_i32_26 = arith.constant 0 : i32
    %44 = arith.cmpi eq, %arg1, %c0_i32_26 : i32
    %45 = arith.extui %44 : i1 to i32
    %c0_i32_27 = arith.constant 0 : i32
    %46 = arith.cmpi ne, %45, %c0_i32_27 : i32
    scf.if %46 {
      %c15 = arith.constant 15 : index
      %c0_53 = arith.constant 0 : index
      %c0_54 = arith.constant 0 : index
      %83 = vector.load %arg9[%c15, %c0_53, %c0_54] : memref<18x16x4xf32, #tpu.memory_space<vmem>>, vector<1x16x4xf32>
      %84 = vector.shape_cast %83 : vector<1x16x4xf32> to vector<16x4xf32>
      %c17 = arith.constant 17 : index
      %c0_55 = arith.constant 0 : index
      %c0_56 = arith.constant 0 : index
      %85 = vector.load %arg9[%c17, %c0_55, %c0_56] : memref<18x16x4xf32, #tpu.memory_space<vmem>>, vector<1x16x4xf32>
      %86 = vector.shape_cast %85 : vector<1x16x4xf32> to vector<16x4xf32>
      %87 = vector.shape_cast %84 : vector<16x4xf32> to vector<1x16x4xf32>
      tpu.vector_store %arg9[%c17, %c0_55, %c0_56], %87 {strides = array<i32>} : memref<18x16x4xf32, #tpu.memory_space<vmem>>, vector<1x16x4xf32>,
    } else {
    }
    %c0_28 = arith.constant 0 : index
    %c0_29 = arith.constant 0 : index
    %c0_30 = arith.constant 0 : index
    %47 = vector.load %arg9[%c0_28, %c0_29, %c0_30] : memref<18x16x4xf32, #tpu.memory_space<vmem>>, vector<18x16x4xf32>
    %48 = tpu.iota {dimensions = array<i32: 1>} : vector<18x16x4xi32>
    %c15_i32_31 = arith.constant 15 : i32
    %49 = tpu.dynamic_rotate %47 by %c15_i32_31 dim 1 : vector<18x16x4xf32>, i32 -> vector<18x16x4xf32>
    %c1_i32_32 = arith.constant 1 : i32
    %50 = tpu.dynamic_rotate %47 by %c1_i32_32 dim 1 : vector<18x16x4xf32>, i32 -> vector<18x16x4xf32>
    %c0_i32_33 = arith.constant 0 : i32
    %51 = vector.broadcast %c0_i32_33 : i32 to vector<18x16x4xi32>
    %52 = arith.cmpi eq, %48, %51 : vector<18x16x4xi32>
    %53 = arith.select %52, %49, %50 : vector<18x16x4xi1>, vector<18x16x4xf32>
    %c15_i32_34 = arith.constant 15 : i32
    %54 = vector.broadcast %c15_i32_34 : i32 to vector<18x16x4xi32>
    %55 = arith.cmpi eq, %48, %54 : vector<18x16x4xi32>
    %56 = arith.select %55, %50, %49 : vector<18x16x4xi1>, vector<18x16x4xf32>
    %57 = tpu.concatenate %53, %47, %56 in 2 : vector<18x16x4xf32>, vector<18x16x4xf32>, vector<18x16x4xf32> -> vector<18x16x12xf32>
    %58 = arith.truncf %57 : vector<18x16x12xf32> to vector<18x16x12xbf16>
    %59 = vector.shape_cast %58 : vector<18x16x12xbf16> to vector<288x12xbf16>
    %c0_35 = arith.constant 0 : index
    %c0_36 = arith.constant 0 : index
    %60 = vector.load %arg7[%c0_35, %c0_36] : memref<1x4xf32, #tpu.memory_space<vmem>>, vector<1x4xf32>
    %61 = vector.shape_cast %60 : vector<1x4xf32> to vector<1x4xf32>
    %62 = vector.broadcast %61 : vector<1x4xf32> to vector<256x4xf32>
    %63 = vector.extract_strided_slice %59 {offsets = [0, 0], sizes = [256, 12], strides = [1, 1]} : vector<288x12xbf16> to vector<256x12xbf16>
    %c0_37 = arith.constant 0 : index
    %c0_38 = arith.constant 0 : index
    %c0_39 = arith.constant 0 : index
    %64 = vector.load %arg6[%c0_37, %c0_38, %c0_39] : memref<3x12x4xbf16, #tpu.memory_space<vmem>>, vector<1x12x4xbf16>
    %65 = vector.shape_cast %64 : vector<1x12x4xbf16> to vector<12x4xbf16>
    %cst_40 = arith.constant dense<0.000000e+00> : vector<256x4xf32>
    %66 = tpu.matmul %63, %65, %cst_40 {dimension_numbers = #tpu.dot_dimension_numbers<[1], [0], [0], [1], [0, 0, 1, 1], [], []>} : vector<256x12xbf16>, vector<12x4xbf16>, vector<256x4xf32> -> vector<256x4xf32>
    %67 = arith.addf %62, %66 : vector<256x4xf32>
    %68 = vector.extract_strided_slice %59 {offsets = [16, 0], sizes = [256, 12], strides = [1, 1]} : vector<288x12xbf16> to vector<256x12xbf16>
    %c1_41 = arith.constant 1 : index
    %c0_42 = arith.constant 0 : index
    %c0_43 = arith.constant 0 : index
    %69 = vector.load %arg6[%c1_41, %c0_42, %c0_43] : memref<3x12x4xbf16, #tpu.memory_space<vmem>>, vector<1x12x4xbf16>
    %70 = vector.shape_cast %69 : vector<1x12x4xbf16> to vector<12x4xbf16>
    %cst_44 = arith.constant dense<0.000000e+00> : vector<256x4xf32>
    %71 = tpu.matmul %68, %70, %cst_44 {dimension_numbers = #tpu.dot_dimension_numbers<[1], [0], [0], [1], [0, 0, 1, 1], [], []>} : vector<256x12xbf16>, vector<12x4xbf16>, vector<256x4xf32> -> vector<256x4xf32>
    %72 = arith.addf %67, %71 : vector<256x4xf32>
    %73 = vector.extract_strided_slice %59 {offsets = [32, 0], sizes = [256, 12], strides = [1, 1]} : vector<288x12xbf16> to vector<256x12xbf16>
    %c2_45 = arith.constant 2 : index
    %c0_46 = arith.constant 0 : index
    %c0_47 = arith.constant 0 : index
    %74 = vector.load %arg6[%c2_45, %c0_46, %c0_47] : memref<3x12x4xbf16, #tpu.memory_space<vmem>>, vector<1x12x4xbf16>
    %75 = vector.shape_cast %74 : vector<1x12x4xbf16> to vector<12x4xbf16>
    %cst_48 = arith.constant dense<0.000000e+00> : vector<256x4xf32>
    %76 = tpu.matmul %73, %75, %cst_48 {dimension_numbers = #tpu.dot_dimension_numbers<[1], [0], [0], [1], [0, 0, 1, 1], [], []>} : vector<256x12xbf16>, vector<12x4xbf16>, vector<256x4xf32> -> vector<256x4xf32>
    %77 = arith.addf %72, %76 : vector<256x4xf32>
    %78 = vector.shape_cast %77 : vector<256x4xf32> to vector<16x16x4xf32>
    %79 = arith.addf %1, %78 : vector<16x16x4xf32>
    %c0_49 = arith.constant 0 : index
    %c0_50 = arith.constant 0 : index
    %c0_51 = arith.constant 0 : index
    %c0_52 = arith.constant 0 : index
    %80 = vector.load %arg8[%c0_49, %c0_50, %c0_51, %c0_52] : memref<1x16x16x4xf32, #tpu.memory_space<vmem>>, vector<1x16x16x4xf32>
    %81 = vector.shape_cast %80 : vector<1x16x16x4xf32> to vector<16x16x4xf32>
    %82 = vector.shape_cast %79 : vector<16x16x4xf32> to vector<1x16x16x4xf32>
    tpu.vector_store %arg8[%c0_49, %c0_50, %c0_51, %c0_52], %82 {strides = array<i32>} : memref<1x16x16x4xf32, #tpu.memory_space<vmem>>, vector<1x16x16x4xf32>,
    return
  }
  func.func @transform_0(%arg0: i32, %arg1: i32) -> (i32, i32, i32, i32) {
    %c0_i32 = arith.constant 0 : i32
    %c0_i32_0 = arith.constant 0 : i32
    %c0_i32_1 = arith.constant 0 : i32
    return %arg0, %arg1, %c0_i32, %c0_i32_0 : i32, i32, i32, i32
  }
  func.func @transform_1(%arg0: i32, %arg1: i32) -> (i32, i32, i32, i32, i32) {
    %c0_i32 = arith.constant 0 : i32
    %c0_i32_0 = arith.constant 0 : i32
    %c0_i32_1 = arith.constant 0 : i32
    %c0_i32_2 = arith.constant 0 : i32
    return %arg0, %arg1, %c0_i32, %c0_i32_0, %c0_i32_1 : i32, i32, i32, i32, i32
  }
  func.func @transform_2(%arg0: i32, %arg1: i32) -> (i32, i32, i32) {
    %c0_i32 = arith.constant 0 : i32
    %c0_i32_0 = arith.constant 0 : i32
    %c0_i32_1 = arith.constant 0 : i32
    %c0_i32_2 = arith.constant 0 : i32
    return %c0_i32, %c0_i32_0, %c0_i32_1 : i32, i32, i32
  }
  func.func @transform_3(%arg0: i32, %arg1: i32) -> (i32, i32) {
    %c0_i32 = arith.constant 0 : i32
    %c0_i32_0 = arith.constant 0 : i32
    %c0_i32_1 = arith.constant 0 : i32
    return %c0_i32, %c0_i32_0 : i32, i32
  }
  func.func @transform_4(%arg0: i32, %arg1: i32) -> (i32, i32, i32) {
    %c0_i32 = arith.constant 0 : i32
    %c0_i32_0 = arith.constant 0 : i32
    %c0_i32_1 = arith.constant 0 : i32
    %c0_i32_2 = arith.constant 0 : i32
    return %c0_i32, %c0_i32_0, %c0_i32_1 : i32, i32, i32
  }
  func.func @transform_5(%arg0: i32, %arg1: i32) -> (i32, i32) {
    %c0_i32 = arith.constant 0 : i32
    %c0_i32_0 = arith.constant 0 : i32
    %c0_i32_1 = arith.constant 0 : i32
    return %c0_i32, %c0_i32_0 : i32, i32
  }
  func.func @transform_6(%arg0: i32, %arg1: i32) -> (i32, i32, i32, i32) {
    %c0_i32 = arith.constant 0 : i32
    %c0_i32_0 = arith.constant 0 : i32
    %c0_i32_1 = arith.constant 0 : i32
    return %arg0, %arg1, %c0_i32, %c0_i32_0 : i32, i32, i32, i32
  }
}

</mosaic_0001>

<llo_original>
// kernel: tpu_custom_call.1
$region0: #{tpu_custom_call.1}
  #allocation0 [shape = 'u32[]', space=smem, size = 0x4, offset = 0x4, fixed_abs, tag = 'smem constant byte address 0x4 - core index']
  #allocation1 [shape = 'u32[144,128]{1,0:T(1,128)}', space=vmem, size = 0x12000, scoped, tag = 'internal scratch']
  #allocation2 [shape = 'f32[18,16,4]{2,1,0:T(8,128)}', space=vmem, size = 0x24000, scoped, tag = 'scratch operand']
  %s0 = inlined_call_operand.vmem [shape: f32[2,16,16,4], index: 0, kind: input, shape index: {}]
  %s1 = inlined_call_operand.vmem [shape: f32[2,1,4,16,4], index: 1, kind: input, shape index: {}]
  %s2 = inlined_call_operand.vmem [shape: bf16[3,12,4], index: 2, kind: input, shape index: {}]
  %s3 = inlined_call_operand.vmem [shape: f32[1,4], index: 3, kind: input, shape index: {}]
  %s4 = inlined_call_operand.vmem [shape: bf16[3,12,4], index: 4, kind: input, shape index: {}]
  %s5 = inlined_call_operand.vmem [shape: f32[1,4], index: 5, kind: input, shape index: {}]
  %s6 = inlined_call_operand.vmem [shape: f32[2,16,16,4], index: 6, kind: output, shape index: {}]
  %s7 = sld [smem:[#allocation0]]
  $region61: #{tpu_custom_call.1} parent=0
    _
  %s9 = ssub.s32 1, %s7
  %s10 = scalar_select 0, %s9, %s7
  loop: start=0, step=1, limit=4
  $region2: #{tpu_custom_call.1} parent=0 // loop_pre_header
    _
  $region3: #{tpu_custom_call.1} parent=0 // loop_header
    %s12 = sphi 0, %s16
    %p13 = scmp.ge.s32.totalorder %s12, 4
    %s19 = sphi 0, %s31
    %s20 = sphi 0, %s27
    %s21 = sphi 0, %s19
    %s22 = sphi 0, %s20
    %s23 = sphi 0, %s21
    %s24 = sphi 0, %s22
    %s36 = sphi 0, %s38
    %s39 = sphi 0, %s36
    %s40 = sphi 0, %s39
    %s56 = sphi 0, %s40
    %s64 = sphi 0, %s66
    %s67 = sphi 0, %s64
    %s68 = sphi 0, %s67
    %s84 = sphi 0, %s68
    %s88 = sphi 0, %s88
    %s90 = sphi 0, %s88
    %s91 = sphi 0, %s90
    %s105 = sphi 0, %s91
    %s109 = sphi 0, %s109
    %s111 = sphi 0, %s109
    %s112 = sphi 0, %s111
    %s126 = sphi 0, %s112
    %s130 = sphi 0, %s130
    %s132 = sphi 0, %s130
    %s133 = sphi 0, %s132
    %s147 = sphi 0, %s133
    %s151 = sphi 0, %s151
    %s153 = sphi 0, %s151
    %s154 = sphi 0, %s153
    %s168 = sphi 0, %s154
    %s176 = sphi 0, %s178
    %s179 = sphi 0, %s176
    %s180 = sphi 0, %s179
    %s196 = sphi 0, %s180
  $region4: #{tpu_custom_call.1} parent=0 // loop_header_branch
    %15 = sbr.rel (%p13) target = $region8
  $region5: #{tpu_custom_call.1} parent=0 // loop_body
    %s17 = ssub.s32 %s12, 1
    %s18 = ssub.s32 %s12, 2
    %s25 = sadd.s32 1, %s20
    %p26 = scmp.ge.s32.totalorder %s25, 1
    %s27 = scalar_select %p26, 0, %s25
    %s28 = sadd.s32 1, %s19
    %s29 = scalar_select %p26, %s28, %s19
    %p30 = scmp.ge.s32.totalorder %s29, 2
    %s31 = scalar_select %p30, 0, %s29
    %s32 = ssub.s32 %s19, %s31
    %s33 = ssub.s32 %s20, %s27
    %s34 = sor.u32 %s32, %s33
    %p35 = scmp.eq.s32.totalorder %s34, 0
    %s37 = sadd.s32 %s36, 1
    %s38 = scalar_select %p35, %s36, %s37
    %p41 = pneg %p35
    %p42 = scmp.eq.s32.totalorder %s12, 1
    %p43 = por %p41, %p42
    %p44 = scmp.ne.s32.totalorder %s36, %s39
    %p45 = scmp.eq.s32.totalorder %s12, 0
    %p46 = por %p44, %p45
    %p47 = scmp.ne.s32.totalorder %s36, %s39
    %p48 = scmp.eq.s32.totalorder %s17, 1
    %p49 = por %p47, %p48
    %p50 = scmp.ne.s32.totalorder %s39, %s40
    %p51 = scmp.eq.s32.totalorder %s17, 0
    %p52 = por %p50, %p51
    %p53 = scmp.ne.s32.totalorder %s39, %s40
    %p54 = scmp.eq.s32.totalorder %s18, 1
    %p55 = por %p53, %p54
    %p57 = scmp.ne.s32.totalorder %s40, %s56
    %p58 = scmp.eq.s32.totalorder %s18, 0
    %p59 = por %p57, %p58
    %s60 = ssub.s32 %s19, %s31
    %s61 = ssub.s32 %s20, %s27
    %s62 = sor.u32 %s60, %s61
    %p63 = scmp.eq.s32.totalorder %s62, 0
    %s65 = sadd.s32 %s64, 1
    %s66 = scalar_select %p63, %s64, %s65
    %p69 = pneg %p63
    %p70 = scmp.eq.s32.totalorder %s12, 1
    %p71 = por %p69, %p70
    %p72 = scmp.ne.s32.totalorder %s64, %s67
    %p73 = scmp.eq.s32.totalorder %s12, 0
    %p74 = por %p72, %p73
    %p75 = scmp.ne.s32.totalorder %s64, %s67
    %p76 = scmp.eq.s32.totalorder %s17, 1
    %p77 = por %p75, %p76
    %p78 = scmp.ne.s32.totalorder %s67, %s68
    %p79 = scmp.eq.s32.totalorder %s17, 0
    %p80 = por %p78, %p79
    %p81 = scmp.ne.s32.totalorder %s67, %s68
    %p82 = scmp.eq.s32.totalorder %s18, 1
    %p83 = por %p81, %p82
    %p85 = scmp.ne.s32.totalorder %s68, %s84
    %p86 = scmp.eq.s32.totalorder %s18, 0
    %p87 = por %p85, %p86
    %s89 = sadd.s32 %s88, 1
    %p92 = scmp.eq.s32.totalorder %s12, 1
    %p93 = scmp.ne.s32.totalorder %s88, %s90
    %p94 = scmp.eq.s32.totalorder %s12, 0
    %p95 = por %p93, %p94
    %p96 = scmp.ne.s32.totalorder %s88, %s90
    %p97 = scmp.eq.s32.totalorder %s17, 1
    %p98 = por %p96, %p97
    %p99 = scmp.ne.s32.totalorder %s90, %s91
    %p100 = scmp.eq.s32.totalorder %s17, 0
    %p101 = por %p99, %p100
    %p102 = scmp.ne.s32.totalorder %s90, %s91
    %p103 = scmp.eq.s32.totalorder %s18, 1
    %p104 = por %p102, %p103
    %p106 = scmp.ne.s32.totalorder %s91, %s105
    %p107 = scmp.eq.s32.totalorder %s18, 0
    %p108 = por %p106, %p107
    %s110 = sadd.s32 %s109, 1
    %p113 = scmp.eq.s32.totalorder %s12, 1
    %p114 = scmp.ne.s32.totalorder %s109, %s111
    %p115 = scmp.eq.s32.totalorder %s12, 0
    %p116 = por %p114, %p115
    %p117 = scmp.ne.s32.totalorder %s109, %s111
    %p118 = scmp.eq.s32.totalorder %s17, 1
    %p119 = por %p117, %p118
    %p120 = scmp.ne.s32.totalorder %s111, %s112
    %p121 = scmp.eq.s32.totalorder %s17, 0
    %p122 = por %p120, %p121
    %p123 = scmp.ne.s32.totalorder %s111, %s112
    %p124 = scmp.eq.s32.totalorder %s18, 1
    %p125 = por %p123, %p124
    %p127 = scmp.ne.s32.totalorder %s112, %s126
    %p128 = scmp.eq.s32.totalorder %s18, 0
    %p129 = por %p127, %p128
    %s131 = sadd.s32 %s130, 1
    %p134 = scmp.eq.s32.totalorder %s12, 1
    %p135 = scmp.ne.s32.totalorder %s130, %s132
    %p136 = scmp.eq.s32.totalorder %s12, 0
    %p137 = por %p135, %p136
    %p138 = scmp.ne.s32.totalorder %s130, %s132
    %p139 = scmp.eq.s32.totalorder %s17, 1
    %p140 = por %p138, %p139
    %p141 = scmp.ne.s32.totalorder %s132, %s133
    %p142 = scmp.eq.s32.totalorder %s17, 0
    %p143 = por %p141, %p142
    %p144 = scmp.ne.s32.totalorder %s132, %s133
    %p145 = scmp.eq.s32.totalorder %s18, 1
    %p146 = por %p144, %p145
    %p148 = scmp.ne.s32.totalorder %s133, %s147
    %p149 = scmp.eq.s32.totalorder %s18, 0
    %p150 = por %p148, %p149
    %s152 = sadd.s32 %s151, 1
    %p155 = scmp.eq.s32.totalorder %s12, 1
    %p156 = scmp.ne.s32.totalorder %s151, %s153
    %p157 = scmp.eq.s32.totalorder %s12, 0
    %p158 = por %p156, %p157
    %p159 = scmp.ne.s32.totalorder %s151, %s153
    %p160 = scmp.eq.s32.totalorder %s17, 1
    %p161 = por %p159, %p160
    %p162 = scmp.ne.s32.totalorder %s153, %s154
    %p163 = scmp.eq.s32.totalorder %s17, 0
    %p164 = por %p162, %p163
    %p165 = scmp.ne.s32.totalorder %s153, %s154
    %p166 = scmp.eq.s32.totalorder %s18, 1
    %p167 = por %p165, %p166
    %p169 = scmp.ne.s32.totalorder %s154, %s168
    %p170 = scmp.eq.s32.totalorder %s18, 0
    %p171 = por %p169, %p170
    %s172 = ssub.s32 %s19, %s31
    %s173 = ssub.s32 %s20, %s27
    %s174 = sor.u32 %s172, %s173
    %p175 = scmp.eq.s32.totalorder %s174, 0
    %s177 = sadd.s32 %s176, 1
    %s178 = scalar_select %p175, %s176, %s177
    %p181 = pneg %p175
    %p182 = scmp.eq.s32.totalorder %s12, 1
    %p183 = por %p181, %p182
    %p184 = scmp.ne.s32.totalorder %s176, %s179
    %p185 = scmp.eq.s32.totalorder %s12, 0
    %p186 = por %p184, %p185
    %p187 = scmp.ne.s32.totalorder %s176, %s179
    %p188 = scmp.eq.s32.totalorder %s17, 1
    %p189 = por %p187, %p188
    %p190 = scmp.ne.s32.totalorder %s179, %s180
    %p191 = scmp.eq.s32.totalorder %s17, 0
    %p192 = por %p190, %p191
    %p193 = scmp.ne.s32.totalorder %s179, %s180
    %p194 = scmp.eq.s32.totalorder %s18, 1
    %p195 = por %p193, %p194
    %p197 = scmp.ne.s32.totalorder %s180, %s196
    %p198 = scmp.eq.s32.totalorder %s18, 0
    %p199 = por %p197, %p198
    %p200 = scmp.le.s32.totalorder 1, %s12
    %p201 = scmp.lt.s32.totalorder %s12, 3
    %p202 = pnand %p200, %p201
    %p203 = pneg %p202
    // Predicated region
    $region9: #{tpu_custom_call.1} parent=5 // pred_check
      _
    $region10: #{tpu_custom_call.1} parent=5 // pred_check_branch
      %205 = sbr.rel (%p202) target = $region12
    $region11: #{tpu_custom_call.1} parent=5 // pred_region
      %s206 = ssub.s32 %s12, 1
      // Predicated region
      $region13: #{tpu_custom_call.1} parent=11 // pred_check
        %p207 = pneg %p101
      $region14: #{tpu_custom_call.1} parent=11 // pred_check_branch
        %209 = sbr.rel (%p207) target = $region16
      $region15: #{tpu_custom_call.1} parent=11 // pred_region
        _
      $region16: #{tpu_custom_call.1} parent=11 // pred_fallthru
        _
      // Predicated region
      $region17: #{tpu_custom_call.1} parent=11 // pred_check
        %p210 = pneg %p122
      $region18: #{tpu_custom_call.1} parent=11 // pred_check_branch
        %212 = sbr.rel (%p210) target = $region20
      $region19: #{tpu_custom_call.1} parent=11 // pred_region
        _
      $region20: #{tpu_custom_call.1} parent=11 // pred_fallthru
        _
      // Predicated region
      $region21: #{tpu_custom_call.1} parent=11 // pred_check
        %p213 = pneg %p143
      $region22: #{tpu_custom_call.1} parent=11 // pred_check_branch
        %215 = sbr.rel (%p213) target = $region24
      $region23: #{tpu_custom_call.1} parent=11 // pred_region
        _
      $region24: #{tpu_custom_call.1} parent=11 // pred_fallthru
        _
      // Predicated region
      $region25: #{tpu_custom_call.1} parent=11 // pred_check
        %p216 = pneg %p164
      $region26: #{tpu_custom_call.1} parent=11 // pred_check_branch
        %218 = sbr.rel (%p216) target = $region28
      $region27: #{tpu_custom_call.1} parent=11 // pred_region
        _
      $region28: #{tpu_custom_call.1} parent=11 // pred_fallthru
        _
    $region12: #{tpu_custom_call.1} parent=5 // pred_fallthru
      _
    %p219 = scmp.lt.s32.totalorder %s12, 2
    // Predicated region
    $region29: #{tpu_custom_call.1} parent=5 // pred_check
      %p220 = pneg %p219
    $region30: #{tpu_custom_call.1} parent=5 // pred_check_branch
      %222 = sbr.rel (%p220) target = $region32
    $region31: #{tpu_custom_call.1} parent=5 // pred_region
      // Predicated region
      $region33: #{tpu_custom_call.1} parent=31 // pred_check
        %p223 = pneg %p46
      $region34: #{tpu_custom_call.1} parent=31 // pred_check_branch
        %225 = sbr.rel (%p223) target = $region36
      $region35: #{tpu_custom_call.1} parent=31 // pred_region
        %s226 = smul.u32 16, %s20
        %p227 = scmp.lt.s32.totalorder %s19, 1
        %s228 = scalar_select %p227, %s19, 1
        %p229 = scmp.lt.s32.totalorder %s226, 15
        %s230 = scalar_select %p229, %s226, 15
        %s231 = smul.addr %s230, 2
        %s232 = smul.addr %s228, 32
        %s233 = sadd.s32 %s231, %s232
        %s234 = smul.addr %s233, 8
        %s235 = scalar_lea.vmem %s0, %s234
        %s236 = smul.u32 16, %s20
      $region36: #{tpu_custom_call.1} parent=31 // pred_fallthru
        _
      // Predicated region
      $region37: #{tpu_custom_call.1} parent=31 // pred_check
        %p237 = pneg %p74
      $region38: #{tpu_custom_call.1} parent=31 // pred_check_branch
        %239 = sbr.rel (%p237) target = $region40
      $region39: #{tpu_custom_call.1} parent=31 // pred_region
        %p240 = scmp.lt.s32.totalorder %s19, 1
        %s241 = scalar_select %p240, %s19, 1
        %p242 = scmp.lt.s32.totalorder %s20, 0
        %s243 = scalar_select %p242, %s20, 0
        %s244 = smul.addr %s243, 8
        %s245 = smul.addr %s241, 8
        %s246 = sadd.s32 %s244, %s245
        %s247 = smul.addr %s246, 8
        %s248 = scalar_lea.vmem %s1, %s247
      $region40: #{tpu_custom_call.1} parent=31 // pred_fallthru
        _
    $region32: #{tpu_custom_call.1} parent=5 // pred_fallthru
      _
    %p249 = scmp.le.s32.totalorder 1, %s12
    %p250 = scmp.lt.s32.totalorder %s12, 3
    %p251 = pnand %p249, %p250
    %p252 = pneg %p251
    // Predicated region
    $region41: #{tpu_custom_call.1} parent=5 // pred_check
      _
    $region42: #{tpu_custom_call.1} parent=5 // pred_check_branch
      %254 = sbr.rel (%p251) target = $region44
    $region43: #{tpu_custom_call.1} parent=5 // pred_region
      %s255 = ssub.s32 %s12, 1
      %s256 = smul.u32 16, %s22
      %p257 = scmp.lt.s32.totalorder %s21, 1
      %s258 = scalar_select %p257, %s21, 1
      %p259 = scmp.lt.s32.totalorder %s256, 15
      %s260 = scalar_select %p259, %s256, 15
      %s261 = smul.addr %s260, 2
      %s262 = smul.addr %s258, 32
      %s263 = sadd.s32 %s261, %s262
      %s264 = smul.addr %s263, 8
      %s265 = scalar_lea.vmem %s0, %s264
      %p266 = pneg %p52
      %p267 = pneg %p49
      %p268 = scmp.lt.s32.totalorder %s21, 1
      %s269 = scalar_select %p268, %s21, 1
      %p270 = scmp.lt.s32.totalorder %s22, 0
      %s271 = scalar_select %p270, %s22, 0
      %s272 = smul.addr %s271, 8
      %s273 = smul.addr %s269, 8
      %s274 = sadd.s32 %s272, %s273
      %s275 = smul.addr %s274, 8
      %s276 = scalar_lea.vmem %s1, %s275
      %p277 = pneg %p80
      %p278 = pneg %p77
      %p279 = pneg %p101
      %p280 = pneg %p98
      %p281 = pneg %p122
      %p282 = pneg %p119
      %p283 = pneg %p143
      %p284 = pneg %p140
      %p285 = pneg %p164
      %p286 = pneg %p161
      %p287 = pneg %p192
      %p288 = pneg %p189
      %s289 = smul.u32 16, %s22
      %p290 = scmp.lt.s32.totalorder %s21, 1
      %s291 = scalar_select %p290, %s21, 1
      %p292 = scmp.lt.s32.totalorder %s289, 15
      %s293 = scalar_select %p292, %s289, 15
      %s294 = smul.addr %s293, 2
      %s295 = smul.addr %s291, 32
      %s296 = sadd.s32 %s294, %s295
      %s297 = smul.addr %s296, 8
      %s298 = scalar_lea.vmem %s6, %s297
      %s299 = smul.u32 16, %s22
      %p300 = scmp.lt.s32.totalorder %s21, 1
      %s301 = scalar_select %p300, %s21, 1
      %p302 = scmp.lt.s32.totalorder %s299, 15
      %s303 = scalar_select %p302, %s299, 15
      %s304 = smul.addr %s303, 2
      %s305 = smul.addr %s301, 32
      %s306 = sadd.s32 %s304, %s305
      %s307 = smul.addr %s306, 8
      %s308 = scalar_lea.vmem %s0, %s307
      %s309 = smul.u32 16, %s22
      %p310 = scmp.lt.s32.totalorder %s21, 1
      %s311 = scalar_select %p310, %s21, 1
      %p312 = scmp.lt.s32.totalorder %s22, 0
      %s313 = scalar_select %p312, %s22, 0
      %s314 = smul.addr %s313, 8
      %s315 = smul.addr %s311, 8
      %s316 = sadd.s32 %s314, %s315
      %s317 = smul.addr %s316, 8
      %s318 = scalar_lea.vmem %s1, %s317
      %s319 = smul.u32 16, %s22
      %p320 = scmp.lt.s32.totalorder %s21, 1
      %s321 = scalar_select %p320, %s21, 1
      %p322 = scmp.lt.s32.totalorder %s319, 15
      %s323 = scalar_select %p322, %s319, 15
      %s324 = smul.addr %s323, 2
      %s325 = smul.addr %s321, 32
      %s326 = sadd.s32 %s324, %s325
      %s327 = smul.addr %s326, 8
      %s328 = scalar_lea.vmem %s6, %s327
      %s329 = smul.u32 16, %s22
      %v331 = vld [vmem:[%s308] sm:$0xff]
      %v332 = vld [vmem:[%s308 + $0x8] sm:$0xff]
      %v333 = vld [vmem:[%s308 + $0x10] sm:$0xff]
      %v334 = vld [vmem:[%s308 + $0x18] sm:$0xff]
      %v335 = vld [vmem:[%s308 + $0x20] sm:$0xff]
      %v336 = vld [vmem:[%s308 + $0x28] sm:$0xff]
      %v337 = vld [vmem:[%s308 + $0x30] sm:$0xff]
      %v338 = vld [vmem:[%s308 + $0x38] sm:$0xff]
      %v339 = vld [vmem:[%s308 + $0x40] sm:$0xff]
      %v340 = vld [vmem:[%s308 + $0x48] sm:$0xff]
      %v341 = vld [vmem:[%s308 + $0x50] sm:$0xff]
      %v342 = vld [vmem:[%s308 + $0x58] sm:$0xff]
      %v343 = vld [vmem:[%s308 + $0x60] sm:$0xff]
      %v344 = vld [vmem:[%s308 + $0x68] sm:$0xff]
      %v345 = vld [vmem:[%s308 + $0x70] sm:$0xff]
      %v346 = vld [vmem:[%s308 + $0x78] sm:$0xff]
      %v347 = vld [vmem:[%s308 + $0x80] sm:$0xff]
      %v348 = vld [vmem:[%s308 + $0x88] sm:$0xff]
      %v349 = vld [vmem:[%s308 + $0x90] sm:$0xff]
      %v350 = vld [vmem:[%s308 + $0x98] sm:$0xff]
      %v351 = vld [vmem:[%s308 + $0xa0] sm:$0xff]
      %v352 = vld [vmem:[%s308 + $0xa8] sm:$0xff]
      %v353 = vld [vmem:[%s308 + $0xb0] sm:$0xff]
      %v354 = vld [vmem:[%s308 + $0xb8] sm:$0xff]
      %v355 = vld [vmem:[%s308 + $0xc0] sm:$0xff]
      %v356 = vld [vmem:[%s308 + $0xc8] sm:$0xff]
      %v357 = vld [vmem:[%s308 + $0xd0] sm:$0xff]
      %v358 = vld [vmem:[%s308 + $0xd8] sm:$0xff]
      %v359 = vld [vmem:[%s308 + $0xe0] sm:$0xff]
      %v360 = vld [vmem:[%s308 + $0xe8] sm:$0xff]
      %v361 = vld [vmem:[%s308 + $0xf0] sm:$0xff]
      %v362 = vld [vmem:[%s308 + $0xf8] sm:$0xff]
      %v363 = vld [vmem:[%s318] sm:$0xff]
      %v364 = vld [vmem:[%s318 + $0x8] sm:$0xff]
      %v365 = vld [vmem:[%s318 + $0x10] sm:$0xff]
      %v366 = vld [vmem:[%s318 + $0x18] sm:$0xff]
      %v367 = vld [vmem:[%s318 + $0x20] sm:$0xff]
      %v368 = vld [vmem:[%s318 + $0x28] sm:$0xff]
      %v369 = vld [vmem:[%s318 + $0x30] sm:$0xff]
      %v370 = vld [vmem:[%s318 + $0x38] sm:$0xff]
      %v371 = vlaneseq
      %v372 = vshrl.u32 %v371, 7
      %v373 = vadd.s32 %v372, 8
      %v374 = vrot.slane %v363, 1
      %v375 = vrot.slane %v365, 1
      %v376 = vrot.slane %v331, 1
      %v377 = vrot.slane %v333, 1
      %v378 = vrot.slane %v335, 1
      %v379 = vrot.slane %v337, 1
      %v380 = vrot.slane %v339, 1
      %v381 = vrot.slane %v341, 1
      %v382 = vrot.slane %v343, 1
      %v383 = vrot.slane %v345, 1
      %v384 = vrot.slane %v347, 1
      %v385 = vrot.slane %v349, 1
      %v386 = vrot.slane %v351, 1
      %v387 = vrot.slane %v353, 1
      %v388 = vrot.slane %v355, 1
      %v389 = vrot.slane %v357, 1
      %v390 = vrot.slane %v359, 1
      %v391 = vrot.slane %v361, 1
      %v392 = vrot.slane %v367, 1
      %v393 = vrot.slane %v369, 1
      %v394 = vrot.slane %v364, 1
      %v395 = vrot.slane %v366, 1
      %v396 = vrot.slane %v332, 1
      %v397 = vrot.slane %v334, 1
      %v398 = vrot.slane %v336, 1
      %v399 = vrot.slane %v338, 1
      %v400 = vrot.slane %v340, 1
      %v401 = vrot.slane %v342, 1
      %v402 = vrot.slane %v344, 1
      %v403 = vrot.slane %v346, 1
      %v404 = vrot.slane %v348, 1
      %v405 = vrot.slane %v350, 1
      %v406 = vrot.slane %v352, 1
      %v407 = vrot.slane %v354, 1
      %v408 = vrot.slane %v356, 1
      %v409 = vrot.slane %v358, 1
      %v410 = vrot.slane %v360, 1
      %v411 = vrot.slane %v362, 1
      %v412 = vrot.slane %v368, 1
      %v413 = vrot.slane %v370, 1
      %vm414 = vcmp.lt.s32.totalorder %v372, 7
      %v415 = vsel %vm414, %v374, %v394
      %v416 = vsel %vm414, %v375, %v395
      %v417 = vsel %vm414, %v376, %v396
      %v418 = vsel %vm414, %v377, %v397
      %v419 = vsel %vm414, %v378, %v398
      %v420 = vsel %vm414, %v379, %v399
      %v421 = vsel %vm414, %v380, %v400
      %v422 = vsel %vm414, %v381, %v401
      %v423 = vsel %vm414, %v382, %v402
      %v424 = vsel %vm414, %v383, %v403
      %v425 = vsel %vm414, %v384, %v404
      %v426 = vsel %vm414, %v385, %v405
      %v427 = vsel %vm414, %v386, %v406
      %v428 = vsel %vm414, %v387, %v407
      %v429 = vsel %vm414, %v388, %v408
      %v430 = vsel %vm414, %v389, %v409
      %v431 = vsel %vm414, %v390, %v410
      %v432 = vsel %vm414, %v391, %v411
      %v433 = vsel %vm414, %v392, %v412
      %v434 = vsel %vm414, %v393, %v413
      %v435 = vsel %vm414, %v394, %v374
      %v436 = vsel %vm414, %v395, %v375
      %v437 = vsel %vm414, %v396, %v376
      %v438 = vsel %vm414, %v397, %v377
      %v439 = vsel %vm414, %v398, %v378
      %v440 = vsel %vm414, %v399, %v379
      %v441 = vsel %vm414, %v400, %v380
      %v442 = vsel %vm414, %v401, %v381
      %v443 = vsel %vm414, %v402, %v382
      %v444 = vsel %vm414, %v403, %v383
      %v445 = vsel %vm414, %v404, %v384
      %v446 = vsel %vm414, %v405, %v385
      %v447 = vsel %vm414, %v406, %v386
      %v448 = vsel %vm414, %v407, %v387
      %v449 = vsel %vm414, %v408, %v388
      %v450 = vsel %vm414, %v409, %v389
      %v451 = vsel %vm414, %v410, %v390
      %v452 = vsel %vm414, %v411, %v391
      %v453 = vsel %vm414, %v412, %v392
      %v454 = vsel %vm414, %v413, %v393
      %v455 = vrot.slane %v363, 7
      %v456 = vrot.slane %v365, 7
      %v457 = vrot.slane %v331, 7
      %v458 = vrot.slane %v333, 7
      %v459 = vrot.slane %v335, 7
      %v460 = vrot.slane %v337, 7
      %v461 = vrot.slane %v339, 7
      %v462 = vrot.slane %v341, 7
      %v463 = vrot.slane %v343, 7
      %v464 = vrot.slane %v345, 7
      %v465 = vrot.slane %v347, 7
      %v466 = vrot.slane %v349, 7
      %v467 = vrot.slane %v351, 7
      %v468 = vrot.slane %v353, 7
      %v469 = vrot.slane %v355, 7
      %v470 = vrot.slane %v357, 7
      %v471 = vrot.slane %v359, 7
      %v472 = vrot.slane %v361, 7
      %v473 = vrot.slane %v367, 7
      %v474 = vrot.slane %v369, 7
      %v475 = vrot.slane %v364, 7
      %v476 = vrot.slane %v366, 7
      %v477 = vrot.slane %v332, 7
      %v478 = vrot.slane %v334, 7
      %v479 = vrot.slane %v336, 7
      %v480 = vrot.slane %v338, 7
      %v481 = vrot.slane %v340, 7
      %v482 = vrot.slane %v342, 7
      %v483 = vrot.slane %v344, 7
      %v484 = vrot.slane %v346, 7
      %v485 = vrot.slane %v348, 7
      %v486 = vrot.slane %v350, 7
      %v487 = vrot.slane %v352, 7
      %v488 = vrot.slane %v354, 7
      %v489 = vrot.slane %v356, 7
      %v490 = vrot.slane %v358, 7
      %v491 = vrot.slane %v360, 7
      %v492 = vrot.slane %v362, 7
      %v493 = vrot.slane %v368, 7
      %v494 = vrot.slane %v370, 7
      %vm495 = vcmp.lt.s32.totalorder %v372, 1
      %v496 = vsel %vm495, %v455, %v475
      %v497 = vsel %vm495, %v456, %v476
      %v498 = vsel %vm495, %v457, %v477
      %v499 = vsel %vm495, %v458, %v478
      %v500 = vsel %vm495, %v459, %v479
      %v501 = vsel %vm495, %v460, %v480
      %v502 = vsel %vm495, %v461, %v481
      %v503 = vsel %vm495, %v462, %v482
      %v504 = vsel %vm495, %v463, %v483
      %v505 = vsel %vm495, %v464, %v484
      %v506 = vsel %vm495, %v465, %v485
      %v507 = vsel %vm495, %v466, %v486
      %v508 = vsel %vm495, %v467, %v487
      %v509 = vsel %vm495, %v468, %v488
      %v510 = vsel %vm495, %v469, %v489
      %v511 = vsel %vm495, %v470, %v490
      %v512 = vsel %vm495, %v471, %v491
      %v513 = vsel %vm495, %v472, %v492
      %v514 = vsel %vm495, %v473, %v493
      %v515 = vsel %vm495, %v474, %v494
      %v516 = vsel %vm495, %v475, %v455
      %v517 = vsel %vm495, %v476, %v456
      %v518 = vsel %vm495, %v477, %v457
      %v519 = vsel %vm495, %v478, %v458
      %v520 = vsel %vm495, %v479, %v459
      %v521 = vsel %vm495, %v480, %v460
      %v522 = vsel %vm495, %v481, %v461
      %v523 = vsel %vm495, %v482, %v462
      %v524 = vsel %vm495, %v483, %v463
      %v525 = vsel %vm495, %v484, %v464
      %v526 = vsel %vm495, %v485, %v465
      %v527 = vsel %vm495, %v486, %v466
      %v528 = vsel %vm495, %v487, %v467
      %v529 = vsel %vm495, %v488, %v468
      %v530 = vsel %vm495, %v489, %v469
      %v531 = vsel %vm495, %v490, %v470
      %v532 = vsel %vm495, %v491, %v471
      %v533 = vsel %vm495, %v492, %v472
      %v534 = vsel %vm495, %v493, %v473
      %v535 = vsel %vm495, %v494, %v474
      %vm536 = vcmp.eq.s32.totalorder %v372, 0
      %vm537 = vcmp.eq.s32.totalorder %v373, 0
      %v538 = vsel %vm536, %v415, %v516
      %v539 = vsel %vm537, %v435, %v496
      %v540 = vsel %vm536, %v416, %v517
      %v541 = vsel %vm537, %v436, %v497
      %v542 = vsel %vm536, %v417, %v518
      %v543 = vsel %vm537, %v437, %v498
      %v544 = vsel %vm536, %v418, %v519
      %v545 = vsel %vm537, %v438, %v499
      %v546 = vsel %vm536, %v419, %v520
      %v547 = vsel %vm537, %v439, %v500
      %v548 = vsel %vm536, %v420, %v521
      %v549 = vsel %vm537, %v440, %v501
      %v550 = vsel %vm536, %v421, %v522
      %v551 = vsel %vm537, %v441, %v502
      %v552 = vsel %vm536, %v422, %v523
      %v553 = vsel %vm537, %v442, %v503
      %v554 = vsel %vm536, %v423, %v524
      %v555 = vsel %vm537, %v443, %v504
      %v556 = vsel %vm536, %v424, %v525
      %v557 = vsel %vm537, %v444, %v505
      %v558 = vsel %vm536, %v425, %v526
      %v559 = vsel %vm537, %v445, %v506
      %v560 = vsel %vm536, %v426, %v527
      %v561 = vsel %vm537, %v446, %v507
      %v562 = vsel %vm536, %v427, %v528
      %v563 = vsel %vm537, %v447, %v508
      %v564 = vsel %vm536, %v428, %v529
      %v565 = vsel %vm537, %v448, %v509
      %v566 = vsel %vm536, %v429, %v530
      %v567 = vsel %vm537, %v449, %v510
      %v568 = vsel %vm536, %v430, %v531
      %v569 = vsel %vm537, %v450, %v511
      %v570 = vsel %vm536, %v431, %v532
      %v571 = vsel %vm537, %v451, %v512
      %v572 = vsel %vm536, %v432, %v533
      %v573 = vsel %vm537, %v452, %v513
      %v574 = vsel %vm536, %v433, %v534
      %v575 = vsel %vm537, %v453, %v514
      %v576 = vsel %vm536, %v434, %v535
      %v577 = vsel %vm537, %v454, %v515
      %vm578 = vcmp.eq.s32.totalorder %v372, 15
      %vm579 = vcmp.eq.s32.totalorder %v373, 15
      %v580 = vsel %vm578, %v516, %v415
      %v581 = vsel %vm579, %v496, %v435
      %v582 = vsel %vm578, %v517, %v416
      %v583 = vsel %vm579, %v497, %v436
      %v584 = vsel %vm578, %v518, %v417
      %v585 = vsel %vm579, %v498, %v437
      %v586 = vsel %vm578, %v519, %v418
      %v587 = vsel %vm579, %v499, %v438
      %v588 = vsel %vm578, %v520, %v419
      %v589 = vsel %vm579, %v500, %v439
      %v590 = vsel %vm578, %v521, %v420
      %v591 = vsel %vm579, %v501, %v440
      %v592 = vsel %vm578, %v522, %v421
      %v593 = vsel %vm579, %v502, %v441
      %v594 = vsel %vm578, %v523, %v422
      %v595 = vsel %vm579, %v503, %v442
      %v596 = vsel %vm578, %v524, %v423
      %v597 = vsel %vm579, %v504, %v443
      %v598 = vsel %vm578, %v525, %v424
      %v599 = vsel %vm579, %v505, %v444
      %v600 = vsel %vm578, %v526, %v425
      %v601 = vsel %vm579, %v506, %v445
      %v602 = vsel %vm578, %v527, %v426
      %v603 = vsel %vm579, %v507, %v446
      %v604 = vsel %vm578, %v528, %v427
      %v605 = vsel %vm579, %v508, %v447
      %v606 = vsel %vm578, %v529, %v428
      %v607 = vsel %vm579, %v509, %v448
      %v608 = vsel %vm578, %v530, %v429
      %v609 = vsel %vm579, %v510, %v449
      %v610 = vsel %vm578, %v531, %v430
      %v611 = vsel %vm579, %v511, %v450
      %v612 = vsel %vm578, %v532, %v431
      %v613 = vsel %vm579, %v512, %v451
      %v614 = vsel %vm578, %v533, %v432
      %v615 = vsel %vm579, %v513, %v452
      %v616 = vsel %vm578, %v534, %v433
      %v617 = vsel %vm579, %v514, %v453
      %v618 = vsel %vm578, %v535, %v434
      %v619 = vsel %vm579, %v515, %v454
      %660 = vrot.lane.b32.xlu0 %v363, 4
      %v661 = vpop.permute.xlu0 %660
      %662 = vrot.lane.b32.xlu0 %v364, 4
      %v663 = vpop.permute.xlu0 %662
      %664 = vrot.lane.b32.xlu0 %v365, 4
      %v665 = vpop.permute.xlu0 %664
      %666 = vrot.lane.b32.xlu0 %v366, 4
      %v667 = vpop.permute.xlu0 %666
      %668 = vrot.lane.b32.xlu0 %v331, 4
      %v669 = vpop.permute.xlu0 %668
      %670 = vrot.lane.b32.xlu0 %v332, 4
      %v671 = vpop.permute.xlu0 %670
      %672 = vrot.lane.b32.xlu0 %v333, 4
      %v673 = vpop.permute.xlu0 %672
      %674 = vrot.lane.b32.xlu0 %v334, 4
      %v675 = vpop.permute.xlu0 %674
      %676 = vrot.lane.b32.xlu0 %v335, 4
      %v677 = vpop.permute.xlu0 %676
      %678 = vrot.lane.b32.xlu0 %v336, 4
      %v679 = vpop.permute.xlu0 %678
      %680 = vrot.lane.b32.xlu0 %v337, 4
      %v681 = vpop.permute.xlu0 %680
      %682 = vrot.lane.b32.xlu0 %v338, 4
      %v683 = vpop.permute.xlu0 %682
      %684 = vrot.lane.b32.xlu0 %v339, 4
      %v685 = vpop.permute.xlu0 %684
      %686 = vrot.lane.b32.xlu0 %v340, 4
      %v687 = vpop.permute.xlu0 %686
      %688 = vrot.lane.b32.xlu0 %v341, 4
      %v689 = vpop.permute.xlu0 %688
      %690 = vrot.lane.b32.xlu0 %v342, 4
      %v691 = vpop.permute.xlu0 %690
      %692 = vrot.lane.b32.xlu0 %v343, 4
      %v693 = vpop.permute.xlu0 %692
      %694 = vrot.lane.b32.xlu0 %v344, 4
      %v695 = vpop.permute.xlu0 %694
      %696 = vrot.lane.b32.xlu0 %v345, 4
      %v697 = vpop.permute.xlu0 %696
      %698 = vrot.lane.b32.xlu0 %v346, 4
      %v699 = vpop.permute.xlu0 %698
      %700 = vrot.lane.b32.xlu0 %v347, 4
      %v701 = vpop.permute.xlu0 %700
      %702 = vrot.lane.b32.xlu0 %v348, 4
      %v703 = vpop.permute.xlu0 %702
      %704 = vrot.lane.b32.xlu0 %v349, 4
      %v705 = vpop.permute.xlu0 %704
      %706 = vrot.lane.b32.xlu0 %v350, 4
      %v707 = vpop.permute.xlu0 %706
      %708 = vrot.lane.b32.xlu0 %v351, 4
      %v709 = vpop.permute.xlu0 %708
      %710 = vrot.lane.b32.xlu0 %v352, 4
      %v711 = vpop.permute.xlu0 %710
      %712 = vrot.lane.b32.xlu0 %v353, 4
      %v713 = vpop.permute.xlu0 %712
      %714 = vrot.lane.b32.xlu0 %v354, 4
      %v715 = vpop.permute.xlu0 %714
      %716 = vrot.lane.b32.xlu0 %v355, 4
      %v717 = vpop.permute.xlu0 %716
      %718 = vrot.lane.b32.xlu0 %v356, 4
      %v719 = vpop.permute.xlu0 %718
      %720 = vrot.lane.b32.xlu0 %v357, 4
      %v721 = vpop.permute.xlu0 %720
      %722 = vrot.lane.b32.xlu0 %v358, 4
      %v723 = vpop.permute.xlu0 %722
      %724 = vrot.lane.b32.xlu0 %v359, 4
      %v725 = vpop.permute.xlu0 %724
      %726 = vrot.lane.b32.xlu0 %v360, 4
      %v727 = vpop.permute.xlu0 %726
      %728 = vrot.lane.b32.xlu0 %v361, 4
      %v729 = vpop.permute.xlu0 %728
      %730 = vrot.lane.b32.xlu0 %v362, 4
      %v731 = vpop.permute.xlu0 %730
      %732 = vrot.lane.b32.xlu0 %v367, 4
      %v733 = vpop.permute.xlu0 %732
      %734 = vrot.lane.b32.xlu0 %v368, 4
      %v735 = vpop.permute.xlu0 %734
      %736 = vrot.lane.b32.xlu0 %v369, 4
      %v737 = vpop.permute.xlu0 %736
      %738 = vrot.lane.b32.xlu0 %v370, 4
      %v739 = vpop.permute.xlu0 %738
      %820 = vrot.lane.b32.xlu0 %v580, 8
      %v821 = vpop.permute.xlu0 %820
      %822 = vrot.lane.b32.xlu0 %v581, 8
      %v823 = vpop.permute.xlu0 %822
      %824 = vrot.lane.b32.xlu0 %v582, 8
      %v825 = vpop.permute.xlu0 %824
      %826 = vrot.lane.b32.xlu0 %v583, 8
      %v827 = vpop.permute.xlu0 %826
      %828 = vrot.lane.b32.xlu0 %v584, 8
      %v829 = vpop.permute.xlu0 %828
      %830 = vrot.lane.b32.xlu0 %v585, 8
      %v831 = vpop.permute.xlu0 %830
      %832 = vrot.lane.b32.xlu0 %v586, 8
      %v833 = vpop.permute.xlu0 %832
      %834 = vrot.lane.b32.xlu0 %v587, 8
      %v835 = vpop.permute.xlu0 %834
      %836 = vrot.lane.b32.xlu0 %v588, 8
      %v837 = vpop.permute.xlu0 %836
      %838 = vrot.lane.b32.xlu0 %v589, 8
      %v839 = vpop.permute.xlu0 %838
      %840 = vrot.lane.b32.xlu0 %v590, 8
      %v841 = vpop.permute.xlu0 %840
      %842 = vrot.lane.b32.xlu0 %v591, 8
      %v843 = vpop.permute.xlu0 %842
      %844 = vrot.lane.b32.xlu0 %v592, 8
      %v845 = vpop.permute.xlu0 %844
      %846 = vrot.lane.b32.xlu0 %v593, 8
      %v847 = vpop.permute.xlu0 %846
      %848 = vrot.lane.b32.xlu0 %v594, 8
      %v849 = vpop.permute.xlu0 %848
      %850 = vrot.lane.b32.xlu0 %v595, 8
      %v851 = vpop.permute.xlu0 %850
      %852 = vrot.lane.b32.xlu0 %v596, 8
      %v853 = vpop.permute.xlu0 %852
      %854 = vrot.lane.b32.xlu0 %v597, 8
      %v855 = vpop.permute.xlu0 %854
      %856 = vrot.lane.b32.xlu0 %v598, 8
      %v857 = vpop.permute.xlu0 %856
      %858 = vrot.lane.b32.xlu0 %v599, 8
      %v859 = vpop.permute.xlu0 %858
      %860 = vrot.lane.b32.xlu0 %v600, 8
      %v861 = vpop.permute.xlu0 %860
      %862 = vrot.lane.b32.xlu0 %v601, 8
      %v863 = vpop.permute.xlu0 %862
      %864 = vrot.lane.b32.xlu0 %v602, 8
      %v865 = vpop.permute.xlu0 %864
      %866 = vrot.lane.b32.xlu0 %v603, 8
      %v867 = vpop.permute.xlu0 %866
      %868 = vrot.lane.b32.xlu0 %v604, 8
      %v869 = vpop.permute.xlu0 %868
      %870 = vrot.lane.b32.xlu0 %v605, 8
      %v871 = vpop.permute.xlu0 %870
      %872 = vrot.lane.b32.xlu0 %v606, 8
      %v873 = vpop.permute.xlu0 %872
      %874 = vrot.lane.b32.xlu0 %v607, 8
      %v875 = vpop.permute.xlu0 %874
      %876 = vrot.lane.b32.xlu0 %v608, 8
      %v877 = vpop.permute.xlu0 %876
      %878 = vrot.lane.b32.xlu0 %v609, 8
      %v879 = vpop.permute.xlu0 %878
      %880 = vrot.lane.b32.xlu0 %v610, 8
      %v881 = vpop.permute.xlu0 %880
      %882 = vrot.lane.b32.xlu0 %v611, 8
      %v883 = vpop.permute.xlu0 %882
      %884 = vrot.lane.b32.xlu0 %v612, 8
      %v885 = vpop.permute.xlu0 %884
      %886 = vrot.lane.b32.xlu0 %v613, 8
      %v887 = vpop.permute.xlu0 %886
      %888 = vrot.lane.b32.xlu0 %v614, 8
      %v889 = vpop.permute.xlu0 %888
      %890 = vrot.lane.b32.xlu0 %v615, 8
      %v891 = vpop.permute.xlu0 %890
      %892 = vrot.lane.b32.xlu0 %v616, 8
      %v893 = vpop.permute.xlu0 %892
      %894 = vrot.lane.b32.xlu0 %v617, 8
      %v895 = vpop.permute.xlu0 %894
      %896 = vrot.lane.b32.xlu0 %v618, 8
      %v897 = vpop.permute.xlu0 %896
      %898 = vrot.lane.b32.xlu0 %v619, 8
      %v899 = vpop.permute.xlu0 %898
      %vm940 = vcmask 31744
      %v941 = vsel %vm940, %v538, %v661
      %v942 = vsel %vm940, %v539, %v663
      %v943 = vsel %vm940, %v540, %v665
      %v944 = vsel %vm940, %v541, %v667
      %v945 = vsel %vm940, %v542, %v669
      %v946 = vsel %vm940, %v543, %v671
      %v947 = vsel %vm940, %v544, %v673
      %v948 = vsel %vm940, %v545, %v675
      %v949 = vsel %vm940, %v546, %v677
      %v950 = vsel %vm940, %v547, %v679
      %v951 = vsel %vm940, %v548, %v681
      %v952 = vsel %vm940, %v549, %v683
      %v953 = vsel %vm940, %v550, %v685
      %v954 = vsel %vm940, %v551, %v687
      %v955 = vsel %vm940, %v552, %v689
      %v956 = vsel %vm940, %v553, %v691
      %v957 = vsel %vm940, %v554, %v693
      %v958 = vsel %vm940, %v555, %v695
      %v959 = vsel %vm940, %v556, %v697
      %v960 = vsel %vm940, %v557, %v699
      %v961 = vsel %vm940, %v558, %v701
      %v962 = vsel %vm940, %v559, %v703
      %v963 = vsel %vm940, %v560, %v705
      %v964 = vsel %vm940, %v561, %v707
      %v965 = vsel %vm940, %v562, %v709
      %v966 = vsel %vm940, %v563, %v711
      %v967 = vsel %vm940, %v564, %v713
      %v968 = vsel %vm940, %v565, %v715
      %v969 = vsel %vm940, %v566, %v717
      %v970 = vsel %vm940, %v567, %v719
      %v971 = vsel %vm940, %v568, %v721
      %v972 = vsel %vm940, %v569, %v723
      %v973 = vsel %vm940, %v570, %v725
      %v974 = vsel %vm940, %v571, %v727
      %v975 = vsel %vm940, %v572, %v729
      %v976 = vsel %vm940, %v573, %v731
      %v977 = vsel %vm940, %v574, %v733
      %v978 = vsel %vm940, %v575, %v735
      %v979 = vsel %vm940, %v576, %v737
      %v980 = vsel %vm940, %v577, %v739
      %vm981 = vcmask 64512
      %v982 = vsel %vm981, %v941, %v821
      %v983 = vsel %vm981, %v942, %v823
      %v984 = vsel %vm981, %v943, %v825
      %v985 = vsel %vm981, %v944, %v827
      %v986 = vsel %vm981, %v945, %v829
      %v987 = vsel %vm981, %v946, %v831
      %v988 = vsel %vm981, %v947, %v833
      %v989 = vsel %vm981, %v948, %v835
      %v990 = vsel %vm981, %v949, %v837
      %v991 = vsel %vm981, %v950, %v839
      %v992 = vsel %vm981, %v951, %v841
      %v993 = vsel %vm981, %v952, %v843
      %v994 = vsel %vm981, %v953, %v845
      %v995 = vsel %vm981, %v954, %v847
      %v996 = vsel %vm981, %v955, %v849
      %v997 = vsel %vm981, %v956, %v851
      %v998 = vsel %vm981, %v957, %v853
      %v999 = vsel %vm981, %v958, %v855
      %v1000 = vsel %vm981, %v959, %v857
      %v1001 = vsel %vm981, %v960, %v859
      %v1002 = vsel %vm981, %v961, %v861
      %v1003 = vsel %vm981, %v962, %v863
      %v1004 = vsel %vm981, %v963, %v865
      %v1005 = vsel %vm981, %v964, %v867
      %v1006 = vsel %vm981, %v965, %v869
      %v1007 = vsel %vm981, %v966, %v871
      %v1008 = vsel %vm981, %v967, %v873
      %v1009 = vsel %vm981, %v968, %v875
      %v1010 = vsel %vm981, %v969, %v877
      %v1011 = vsel %vm981, %v970, %v879
      %v1012 = vsel %vm981, %v971, %v881
      %v1013 = vsel %vm981, %v972, %v883
      %v1014 = vsel %vm981, %v973, %v885
      %v1015 = vsel %vm981, %v974, %v887
      %v1016 = vsel %vm981, %v975, %v889
      %v1017 = vsel %vm981, %v976, %v891
      %v1018 = vsel %vm981, %v977, %v893
      %v1019 = vsel %vm981, %v978, %v895
      %v1020 = vsel %vm981, %v979, %v897
      %v1021 = vsel %vm981, %v980, %v899
      %v1022 = vpack.c.bf16 %v983, %v982
      %v1023 = vpack.c.bf16 %v985, %v984
      %v1024 = vpack.c.bf16 %v987, %v986
      %v1025 = vpack.c.bf16 %v989, %v988
      %v1026 = vpack.c.bf16 %v991, %v990
      %v1027 = vpack.c.bf16 %v993, %v992
      %v1028 = vpack.c.bf16 %v995, %v994
      %v1029 = vpack.c.bf16 %v997, %v996
      %v1030 = vpack.c.bf16 %v999, %v998
      %v1031 = vpack.c.bf16 %v1001, %v1000
      %v1032 = vpack.c.bf16 %v1003, %v1002
      %v1033 = vpack.c.bf16 %v1005, %v1004
      %v1034 = vpack.c.bf16 %v1007, %v1006
      %v1035 = vpack.c.bf16 %v1009, %v1008
      %v1036 = vpack.c.bf16 %v1011, %v1010
      %v1037 = vpack.c.bf16 %v1013, %v1012
      %v1038 = vpack.c.bf16 %v1015, %v1014
      %v1039 = vpack.c.bf16 %v1017, %v1016
      %v1040 = vpack.c.bf16 %v1019, %v1018
      %v1041 = vpack.c.bf16 %v1021, %v1020
      %v1042 = vld [vmem:[%s3] sm:$0x1]
      %v1044 = vlaneseq
      %v1045 = vshrl.u32 %v1044, 7
      %v1046 = vsub.s32 0, %v1045
      %v1047 = vrot.slane %v1042, %v1046
      %v1049 = vld [vmem:[%s2] sm:$0xf]
      %v1050 = vld [vmem:[%s2 + $0x4] sm:$0x3]
      %v1053 = vunpack.c.l.b16 %v1049
      %v1054 = vunpack.c.l.b16 %v1050
      %v1055 = vpack.c.b16 %v1054, %v1053
      %vm1056 = vcmask 97280
      %v1058 = vsel %vm1056, %v1022, 0
      %v1061 = vsel %vm1056, %v1023, 0
      %v1064 = vsel %vm1056, %v1024, 0
      %v1067 = vsel %vm1056, %v1025, 0
      %v1070 = vsel %vm1056, %v1026, 0
      %v1073 = vsel %vm1056, %v1027, 0
      %v1076 = vsel %vm1056, %v1028, 0
      %v1079 = vsel %vm1056, %v1029, 0
      %v1082 = vsel %vm1056, %v1030, 0
      %v1085 = vsel %vm1056, %v1031, 0
      %v1088 = vsel %vm1056, %v1032, 0
      %v1091 = vsel %vm1056, %v1033, 0
      %v1094 = vsel %vm1056, %v1034, 0
      %v1097 = vsel %vm1056, %v1035, 0
      %v1100 = vsel %vm1056, %v1036, 0
      %v1103 = vsel %vm1056, %v1037, 0
      %v1106 = vsel %vm1056, %v1038, 0
      %v1109 = vsel %vm1056, %v1039, 0
      %vm1111 = vcmask 1045504
      %v1113 = vsel %vm1111, %v1055, 0
      %1115 = vmatprep.subr.bf16.mxu0 0
      %1116 = vmatpush1.bf16.msra.mxu0 %v1113
      %1117 = vmatprep.subr.bf16.mxu0 0
      %1118 = vmatpush1.bf16.msra.mxu0 0
      %1119 = vmatprep.subr.bf16.mxu0 0
      %1120 = vmatpush1.bf16.msra.mxu0 0
      %1121 = vmatprep.subr.bf16.mxu0 0
      %1122 = vmatpush1.bf16.msra.mxu0 0
      %1123 = vmatprep.subr.bf16.mxu0 0
      %1124 = vmatpush1.bf16.msra.mxu0 0
      %1125 = vmatprep.subr.bf16.mxu0 0
      %1126 = vmatpush1.bf16.msra.mxu0 0
      %1127 = vmatprep.subr.bf16.mxu0 0
      %1128 = vmatpush1.bf16.msra.mxu0 0
      %1129 = vmatprep.subr.bf16.mxu0 0
      %1130 = vmatpush1.bf16.msra.mxu0 0
      %1131 = vmatprep.subr.bf16.mxu0 0
      %1132 = vmatpush1.bf16.msra.mxu0 0
      %1133 = vmatprep.subr.bf16.mxu0 0
      %1134 = vmatpush1.bf16.msra.mxu0 0
      %1135 = vmatprep.subr.bf16.mxu0 0
      %1136 = vmatpush1.bf16.msra.mxu0 0
      %1137 = vmatprep.subr.bf16.mxu0 0
      %1138 = vmatpush1.bf16.msra.mxu0 0
      %1139 = vmatprep.subr.bf16.mxu0 0
      %1140 = vmatpush1.bf16.msra.mxu0 0
      %1141 = vmatprep.subr.bf16.mxu0 0
      %1142 = vmatpush1.bf16.msra.mxu0 0
      %1143 = vmatprep.subr.bf16.mxu0 0
      %1144 = vmatpush1.bf16.msra.mxu0 0
      %1145 = vmatprep.subr.bf16.mxu0 0
      %1146 = vmatpush1.bf16.msra.mxu0 0
      %1147 = vmatprep.mubr.bf16.mxu0 0
      %1148 = vmatmul.mubr.bf16.gmra.mrb[0].mxu0 %v1058
      %v1149 = vpop.f32.mrb[0].mxu0
      %v1150 = vadd.f32 0.0, %v1149
      %v1151 = vpop.f32.mrb[0].mxu0
      %v1152 = vpop.f32.mrb[0].mxu0
      %v1153 = vadd.f32 0.0, %v1152
      %v1154 = vpop.f32.mrb[0].mxu0
      %1155 = vmatprep.mubr.bf16.mxu0 0
      %1156 = vmatmul.mubr.bf16.gmra.mrb[0].mxu0 %v1061
      %v1157 = vpop.f32.mrb[0].mxu0
      %v1158 = vadd.f32 0.0, %v1157
      %v1159 = vpop.f32.mrb[0].mxu0
      %v1160 = vpop.f32.mrb[0].mxu0
      %v1161 = vadd.f32 0.0, %v1160
      %v1162 = vpop.f32.mrb[0].mxu0
      %1163 = vmatprep.mubr.bf16.mxu0 0
      %1164 = vmatmul.mubr.bf16.gmra.mrb[0].mxu0 %v1064
      %v1165 = vpop.f32.mrb[0].mxu0
      %v1166 = vadd.f32 0.0, %v1165
      %v1167 = vpop.f32.mrb[0].mxu0
      %v1168 = vpop.f32.mrb[0].mxu0
      %v1169 = vadd.f32 0.0, %v1168
      %v1170 = vpop.f32.mrb[0].mxu0
      %1171 = vmatprep.mubr.bf16.mxu0 0
      %1172 = vmatmul.mubr.bf16.gmra.mrb[0].mxu0 %v1067
      %v1173 = vpop.f32.mrb[0].mxu0
      %v1174 = vadd.f32 0.0, %v1173
      %v1175 = vpop.f32.mrb[0].mxu0
      %v1176 = vpop.f32.mrb[0].mxu0
      %v1177 = vadd.f32 0.0, %v1176
      %v1178 = vpop.f32.mrb[0].mxu0
      %1179 = vmatprep.mubr.bf16.mxu0 0
      %1180 = vmatmul.mubr.bf16.gmra.mrb[0].mxu0 %v1070
      %v1181 = vpop.f32.mrb[0].mxu0
      %v1182 = vadd.f32 0.0, %v1181
      %v1183 = vpop.f32.mrb[0].mxu0
      %v1184 = vpop.f32.mrb[0].mxu0
      %v1185 = vadd.f32 0.0, %v1184
      %v1186 = vpop.f32.mrb[0].mxu0
      %1187 = vmatprep.mubr.bf16.mxu0 0
      %1188 = vmatmul.mubr.bf16.gmra.mrb[0].mxu0 %v1073
      %v1189 = vpop.f32.mrb[0].mxu0
      %v1190 = vadd.f32 0.0, %v1189
      %v1191 = vpop.f32.mrb[0].mxu0
      %v1192 = vpop.f32.mrb[0].mxu0
      %v1193 = vadd.f32 0.0, %v1192
      %v1194 = vpop.f32.mrb[0].mxu0
      %1195 = vmatprep.mubr.bf16.mxu0 0
      %1196 = vmatmul.mubr.bf16.gmra.mrb[0].mxu0 %v1076
      %v1197 = vpop.f32.mrb[0].mxu0
      %v1198 = vadd.f32 0.0, %v1197
      %v1199 = vpop.f32.mrb[0].mxu0
      %v1200 = vpop.f32.mrb[0].mxu0
      %v1201 = vadd.f32 0.0, %v1200
      %v1202 = vpop.f32.mrb[0].mxu0
      %1203 = vmatprep.mubr.bf16.mxu0 0
      %1204 = vmatmul.mubr.bf16.gmra.mrb[0].mxu0 %v1079
      %v1205 = vpop.f32.mrb[0].mxu0
      %v1206 = vadd.f32 0.0, %v1205
      %v1207 = vpop.f32.mrb[0].mxu0
      %v1208 = vpop.f32.mrb[0].mxu0
      %v1209 = vadd.f32 0.0, %v1208
      %v1210 = vpop.f32.mrb[0].mxu0
      %1211 = vmatprep.mubr.bf16.mxu0 0
      %1212 = vmatmul.mubr.bf16.gmra.mrb[0].mxu0 %v1082
      %v1213 = vpop.f32.mrb[0].mxu0
      %v1214 = vadd.f32 0.0, %v1213
      %v1215 = vpop.f32.mrb[0].mxu0
      %v1216 = vpop.f32.mrb[0].mxu0
      %v1217 = vadd.f32 0.0, %v1216
      %v1218 = vpop.f32.mrb[0].mxu0
      %1219 = vmatprep.mubr.bf16.mxu0 0
      %1220 = vmatmul.mubr.bf16.gmra.mrb[0].mxu0 %v1085
      %v1221 = vpop.f32.mrb[0].mxu0
      %v1222 = vadd.f32 0.0, %v1221
      %v1223 = vpop.f32.mrb[0].mxu0
      %v1224 = vpop.f32.mrb[0].mxu0
      %v1225 = vadd.f32 0.0, %v1224
      %v1226 = vpop.f32.mrb[0].mxu0
      %1227 = vmatprep.mubr.bf16.mxu0 0
      %1228 = vmatmul.mubr.bf16.gmra.mrb[0].mxu0 %v1088
      %v1229 = vpop.f32.mrb[0].mxu0
      %v1230 = vadd.f32 0.0, %v1229
      %v1231 = vpop.f32.mrb[0].mxu0
      %v1232 = vpop.f32.mrb[0].mxu0
      %v1233 = vadd.f32 0.0, %v1232
      %v1234 = vpop.f32.mrb[0].mxu0
      %1235 = vmatprep.mubr.bf16.mxu0 0
      %1236 = vmatmul.mubr.bf16.gmra.mrb[0].mxu0 %v1091
      %v1237 = vpop.f32.mrb[0].mxu0
      %v1238 = vadd.f32 0.0, %v1237
      %v1239 = vpop.f32.mrb[0].mxu0
      %v1240 = vpop.f32.mrb[0].mxu0
      %v1241 = vadd.f32 0.0, %v1240
      %v1242 = vpop.f32.mrb[0].mxu0
      %1243 = vmatprep.mubr.bf16.mxu0 0
      %1244 = vmatmul.mubr.bf16.gmra.mrb[0].mxu0 %v1094
      %v1245 = vpop.f32.mrb[0].mxu0
      %v1246 = vadd.f32 0.0, %v1245
      %v1247 = vpop.f32.mrb[0].mxu0
      %v1248 = vpop.f32.mrb[0].mxu0
      %v1249 = vadd.f32 0.0, %v1248
      %v1250 = vpop.f32.mrb[0].mxu0
      %1251 = vmatprep.mubr.bf16.mxu0 0
      %1252 = vmatmul.mubr.bf16.gmra.mrb[0].mxu0 %v1097
      %v1253 = vpop.f32.mrb[0].mxu0
      %v1254 = vadd.f32 0.0, %v1253
      %v1255 = vpop.f32.mrb[0].mxu0
      %v1256 = vpop.f32.mrb[0].mxu0
      %v1257 = vadd.f32 0.0, %v1256
      %v1258 = vpop.f32.mrb[0].mxu0
      %1259 = vmatprep.mubr.bf16.mxu0 0
      %1260 = vmatmul.mubr.bf16.gmra.mrb[0].mxu0 %v1100
      %v1261 = vpop.f32.mrb[0].mxu0
      %v1262 = vadd.f32 0.0, %v1261
      %v1263 = vpop.f32.mrb[0].mxu0
      %v1264 = vpop.f32.mrb[0].mxu0
      %v1265 = vadd.f32 0.0, %v1264
      %v1266 = vpop.f32.mrb[0].mxu0
      %1267 = vmatprep.mubr.bf16.mxu0 0
      %1268 = vmatmul.mubr.bf16.gmra.mrb[0].mxu0 %v1103
      %v1269 = vpop.f32.mrb[0].mxu0
      %v1270 = vadd.f32 0.0, %v1269
      %v1271 = vpop.f32.mrb[0].mxu0
      %v1272 = vpop.f32.mrb[0].mxu0
      %v1273 = vadd.f32 0.0, %v1272
      %v1274 = vpop.f32.mrb[0].mxu0
      %1275 = vmatprep.mubr.bf16.mxu0 0
      %1276 = vmatmul.mubr.bf16.gmra.mrb[0].mxu0 %v1106
      %v1277 = vpop.f32.mrb[0].mxu0
      %v1278 = vadd.f32 0.0, %v1277
      %v1279 = vpop.f32.mrb[0].mxu0
      %v1280 = vpop.f32.mrb[0].mxu0
      %v1281 = vadd.f32 0.0, %v1280
      %v1282 = vpop.f32.mrb[0].mxu0
      %1283 = vmatprep.mubr.bf16.mxu0 0
      %1284 = vmatmul.mubr.bf16.gmra.mrb[0].mxu0 %v1109
      %v1285 = vpop.f32.mrb[0].mxu0
      %v1286 = vadd.f32 0.0, %v1285
      %v1287 = vpop.f32.mrb[0].mxu0
      %v1288 = vpop.f32.mrb[0].mxu0
      %v1289 = vadd.f32 0.0, %v1288
      %v1290 = vpop.f32.mrb[0].mxu0
      %1291 = vdwg.mxu0
      %v1292 = vadd.f32 %v1047, %v1150
      %v1293 = vadd.f32 %v1047, %v1153
      %v1294 = vadd.f32 %v1047, %v1158
      %v1295 = vadd.f32 %v1047, %v1161
      %v1296 = vadd.f32 %v1047, %v1166
      %v1297 = vadd.f32 %v1047, %v1169
      %v1298 = vadd.f32 %v1047, %v1174
      %v1299 = vadd.f32 %v1047, %v1177
      %v1300 = vadd.f32 %v1047, %v1182
      %v1301 = vadd.f32 %v1047, %v1185
      %v1302 = vadd.f32 %v1047, %v1190
      %v1303 = vadd.f32 %v1047, %v1193
      %v1304 = vadd.f32 %v1047, %v1198
      %v1305 = vadd.f32 %v1047, %v1201
      %v1306 = vadd.f32 %v1047, %v1206
      %v1307 = vadd.f32 %v1047, %v1209
      %v1308 = vadd.f32 %v1047, %v1214
      %v1309 = vadd.f32 %v1047, %v1217
      %v1310 = vadd.f32 %v1047, %v1222
      %v1311 = vadd.f32 %v1047, %v1225
      %v1312 = vadd.f32 %v1047, %v1230
      %v1313 = vadd.f32 %v1047, %v1233
      %v1314 = vadd.f32 %v1047, %v1238
      %v1315 = vadd.f32 %v1047, %v1241
      %v1316 = vadd.f32 %v1047, %v1246
      %v1317 = vadd.f32 %v1047, %v1249
      %v1318 = vadd.f32 %v1047, %v1254
      %v1319 = vadd.f32 %v1047, %v1257
      %v1320 = vadd.f32 %v1047, %v1262
      %v1321 = vadd.f32 %v1047, %v1265
      %v1322 = vadd.f32 %v1047, %v1270
      %v1323 = vadd.f32 %v1047, %v1273
      %v1324 = vadd.f32 %v1047, %v1278
      %v1325 = vadd.f32 %v1047, %v1281
      %v1326 = vadd.f32 %v1047, %v1286
      %v1327 = vadd.f32 %v1047, %v1289
      %s1328 = scalar_lea.vmem %s2, 8
      %v1329 = vld [vmem:[%s1328] sm:$0xf]
      %v1330 = vld [vmem:[%s1328 + $0x4] sm:$0x3]
      %v1333 = vunpack.c.l.b16 %v1329
      %v1334 = vunpack.c.l.b16 %v1330
      %v1335 = vpack.c.b16 %v1334, %v1333
      %v1337 = vsel %vm1056, %v1040, 0
      %v1340 = vsel %vm1111, %v1335, 0
      %1342 = vmatprep.subr.bf16.mxu0 0
      %1343 = vmatpush1.bf16.msra.mxu0 %v1340
      %1344 = vmatprep.subr.bf16.mxu0 0
      %1345 = vmatpush1.bf16.msra.mxu0 0
      %1346 = vmatprep.subr.bf16.mxu0 0
      %1347 = vmatpush1.bf16.msra.mxu0 0
      %1348 = vmatprep.subr.bf16.mxu0 0
      %1349 = vmatpush1.bf16.msra.mxu0 0
      %1350 = vmatprep.subr.bf16.mxu0 0
      %1351 = vmatpush1.bf16.msra.mxu0 0
      %1352 = vmatprep.subr.bf16.mxu0 0
      %1353 = vmatpush1.bf16.msra.mxu0 0
      %1354 = vmatprep.subr.bf16.mxu0 0
      %1355 = vmatpush1.bf16.msra.mxu0 0
      %1356 = vmatprep.subr.bf16.mxu0 0
      %1357 = vmatpush1.bf16.msra.mxu0 0
      %1358 = vmatprep.subr.bf16.mxu0 0
      %1359 = vmatpush1.bf16.msra.mxu0 0
      %1360 = vmatprep.subr.bf16.mxu0 0
      %1361 = vmatpush1.bf16.msra.mxu0 0
      %1362 = vmatprep.subr.bf16.mxu0 0
      %1363 = vmatpush1.bf16.msra.mxu0 0
      %1364 = vmatprep.subr.bf16.mxu0 0
      %1365 = vmatpush1.bf16.msra.mxu0 0
      %1366 = vmatprep.subr.bf16.mxu0 0
      %1367 = vmatpush1.bf16.msra.mxu0 0
      %1368 = vmatprep.subr.bf16.mxu0 0
      %1369 = vmatpush1.bf16.msra.mxu0 0
      %1370 = vmatprep.subr.bf16.mxu0 0
      %1371 = vmatpush1.bf16.msra.mxu0 0
      %1372 = vmatprep.subr.bf16.mxu0 0
      %1373 = vmatpush1.bf16.msra.mxu0 0
      %1374 = vmatprep.mubr.bf16.mxu0 0
      %1375 = vmatmul.mubr.bf16.gmra.mrb[0].mxu0 %v1061
      %v1376 = vpop.f32.mrb[0].mxu0
      %v1377 = vadd.f32 0.0, %v1376
      %v1378 = vpop.f32.mrb[0].mxu0
      %v1379 = vpop.f32.mrb[0].mxu0
      %v1380 = vadd.f32 0.0, %v1379
      %v1381 = vpop.f32.mrb[0].mxu0
      %1382 = vmatprep.mubr.bf16.mxu0 0
      %1383 = vmatmul.mubr.bf16.gmra.mrb[0].mxu0 %v1064
      %v1384 = vpop.f32.mrb[0].mxu0
      %v1385 = vadd.f32 0.0, %v1384
      %v1386 = vpop.f32.mrb[0].mxu0
      %v1387 = vpop.f32.mrb[0].mxu0
      %v1388 = vadd.f32 0.0, %v1387
      %v1389 = vpop.f32.mrb[0].mxu0
      %1390 = vmatprep.mubr.bf16.mxu0 0
      %1391 = vmatmul.mubr.bf16.gmra.mrb[0].mxu0 %v1067
      %v1392 = vpop.f32.mrb[0].mxu0
      %v1393 = vadd.f32 0.0, %v1392
      %v1394 = vpop.f32.mrb[0].mxu0
      %v1395 = vpop.f32.mrb[0].mxu0
      %v1396 = vadd.f32 0.0, %v1395
      %v1397 = vpop.f32.mrb[0].mxu0
      %1398 = vmatprep.mubr.bf16.mxu0 0
      %1399 = vmatmul.mubr.bf16.gmra.mrb[0].mxu0 %v1070
      %v1400 = vpop.f32.mrb[0].mxu0
      %v1401 = vadd.f32 0.0, %v1400
      %v1402 = vpop.f32.mrb[0].mxu0
      %v1403 = vpop.f32.mrb[0].mxu0
      %v1404 = vadd.f32 0.0, %v1403
      %v1405 = vpop.f32.mrb[0].mxu0
      %1406 = vmatprep.mubr.bf16.mxu0 0
      %1407 = vmatmul.mubr.bf16.gmra.mrb[0].mxu0 %v1073
      %v1408 = vpop.f32.mrb[0].mxu0
      %v1409 = vadd.f32 0.0, %v1408
      %v1410 = vpop.f32.mrb[0].mxu0
      %v1411 = vpop.f32.mrb[0].mxu0
      %v1412 = vadd.f32 0.0, %v1411
      %v1413 = vpop.f32.mrb[0].mxu0
      %1414 = vmatprep.mubr.bf16.mxu0 0
      %1415 = vmatmul.mubr.bf16.gmra.mrb[0].mxu0 %v1076
      %v1416 = vpop.f32.mrb[0].mxu0
      %v1417 = vadd.f32 0.0, %v1416
      %v1418 = vpop.f32.mrb[0].mxu0
      %v1419 = vpop.f32.mrb[0].mxu0
      %v1420 = vadd.f32 0.0, %v1419
      %v1421 = vpop.f32.mrb[0].mxu0
      %1422 = vmatprep.mubr.bf16.mxu0 0
      %1423 = vmatmul.mubr.bf16.gmra.mrb[0].mxu0 %v1079
      %v1424 = vpop.f32.mrb[0].mxu0
      %v1425 = vadd.f32 0.0, %v1424
      %v1426 = vpop.f32.mrb[0].mxu0
      %v1427 = vpop.f32.mrb[0].mxu0
      %v1428 = vadd.f32 0.0, %v1427
      %v1429 = vpop.f32.mrb[0].mxu0
      %1430 = vmatprep.mubr.bf16.mxu0 0
      %1431 = vmatmul.mubr.bf16.gmra.mrb[0].mxu0 %v1082
      %v1432 = vpop.f32.mrb[0].mxu0
      %v1433 = vadd.f32 0.0, %v1432
      %v1434 = vpop.f32.mrb[0].mxu0
      %v1435 = vpop.f32.mrb[0].mxu0
      %v1436 = vadd.f32 0.0, %v1435
      %v1437 = vpop.f32.mrb[0].mxu0
      %1438 = vmatprep.mubr.bf16.mxu0 0
      %1439 = vmatmul.mubr.bf16.gmra.mrb[0].mxu0 %v1085
      %v1440 = vpop.f32.mrb[0].mxu0
      %v1441 = vadd.f32 0.0, %v1440
      %v1442 = vpop.f32.mrb[0].mxu0
      %v1443 = vpop.f32.mrb[0].mxu0
      %v1444 = vadd.f32 0.0, %v1443
      %v1445 = vpop.f32.mrb[0].mxu0
      %1446 = vmatprep.mubr.bf16.mxu0 0
      %1447 = vmatmul.mubr.bf16.gmra.mrb[0].mxu0 %v1088
      %v1448 = vpop.f32.mrb[0].mxu0
      %v1449 = vadd.f32 0.0, %v1448
      %v1450 = vpop.f32.mrb[0].mxu0
      %v1451 = vpop.f32.mrb[0].mxu0
      %v1452 = vadd.f32 0.0, %v1451
      %v1453 = vpop.f32.mrb[0].mxu0
      %1454 = vmatprep.mubr.bf16.mxu0 0
      %1455 = vmatmul.mubr.bf16.gmra.mrb[0].mxu0 %v1091
      %v1456 = vpop.f32.mrb[0].mxu0
      %v1457 = vadd.f32 0.0, %v1456
      %v1458 = vpop.f32.mrb[0].mxu0
      %v1459 = vpop.f32.mrb[0].mxu0
      %v1460 = vadd.f32 0.0, %v1459
      %v1461 = vpop.f32.mrb[0].mxu0
      %1462 = vmatprep.mubr.bf16.mxu0 0
      %1463 = vmatmul.mubr.bf16.gmra.mrb[0].mxu0 %v1094
      %v1464 = vpop.f32.mrb[0].mxu0
      %v1465 = vadd.f32 0.0, %v1464
      %v1466 = vpop.f32.mrb[0].mxu0
      %v1467 = vpop.f32.mrb[0].mxu0
      %v1468 = vadd.f32 0.0, %v1467
      %v1469 = vpop.f32.mrb[0].mxu0
      %1470 = vmatprep.mubr.bf16.mxu0 0
      %1471 = vmatmul.mubr.bf16.gmra.mrb[0].mxu0 %v1097
      %v1472 = vpop.f32.mrb[0].mxu0
      %v1473 = vadd.f32 0.0, %v1472
      %v1474 = vpop.f32.mrb[0].mxu0
      %v1475 = vpop.f32.mrb[0].mxu0
      %v1476 = vadd.f32 0.0, %v1475
      %v1477 = vpop.f32.mrb[0].mxu0
      %1478 = vmatprep.mubr.bf16.mxu0 0
      %1479 = vmatmul.mubr.bf16.gmra.mrb[0].mxu0 %v1100
      %v1480 = vpop.f32.mrb[0].mxu0
      %v1481 = vadd.f32 0.0, %v1480
      %v1482 = vpop.f32.mrb[0].mxu0
      %v1483 = vpop.f32.mrb[0].mxu0
      %v1484 = vadd.f32 0.0, %v1483
      %v1485 = vpop.f32.mrb[0].mxu0
      %1486 = vmatprep.mubr.bf16.mxu0 0
      %1487 = vmatmul.mubr.bf16.gmra.mrb[0].mxu0 %v1103
      %v1488 = vpop.f32.mrb[0].mxu0
      %v1489 = vadd.f32 0.0, %v1488
      %v1490 = vpop.f32.mrb[0].mxu0
      %v1491 = vpop.f32.mrb[0].mxu0
      %v1492 = vadd.f32 0.0, %v1491
      %v1493 = vpop.f32.mrb[0].mxu0
      %1494 = vmatprep.mubr.bf16.mxu0 0
      %1495 = vmatmul.mubr.bf16.gmra.mrb[0].mxu0 %v1106
      %v1496 = vpop.f32.mrb[0].mxu0
      %v1497 = vadd.f32 0.0, %v1496
      %v1498 = vpop.f32.mrb[0].mxu0
      %v1499 = vpop.f32.mrb[0].mxu0
      %v1500 = vadd.f32 0.0, %v1499
      %v1501 = vpop.f32.mrb[0].mxu0
      %1502 = vmatprep.mubr.bf16.mxu0 0
      %1503 = vmatmul.mubr.bf16.gmra.mrb[0].mxu0 %v1109
      %v1504 = vpop.f32.mrb[0].mxu0
      %v1505 = vadd.f32 0.0, %v1504
      %v1506 = vpop.f32.mrb[0].mxu0
      %v1507 = vpop.f32.mrb[0].mxu0
      %v1508 = vadd.f32 0.0, %v1507
      %v1509 = vpop.f32.mrb[0].mxu0
      %1510 = vmatprep.mubr.bf16.mxu0 0
      %1511 = vmatmul.mubr.bf16.gmra.mrb[0].mxu0 %v1337
      %v1512 = vpop.f32.mrb[0].mxu0
      %v1513 = vadd.f32 0.0, %v1512
      %v1514 = vpop.f32.mrb[0].mxu0
      %v1515 = vpop.f32.mrb[0].mxu0
      %v1516 = vadd.f32 0.0, %v1515
      %v1517 = vpop.f32.mrb[0].mxu0
      %1518 = vdwg.mxu0
      %v1519 = vadd.f32 %v1292, %v1377
      %v1520 = vadd.f32 %v1293, %v1380
      %v1521 = vadd.f32 %v1294, %v1385
      %v1522 = vadd.f32 %v1295, %v1388
      %v1523 = vadd.f32 %v1296, %v1393
      %v1524 = vadd.f32 %v1297, %v1396
      %v1525 = vadd.f32 %v1298, %v1401
      %v1526 = vadd.f32 %v1299, %v1404
      %v1527 = vadd.f32 %v1300, %v1409
      %v1528 = vadd.f32 %v1301, %v1412
      %v1529 = vadd.f32 %v1302, %v1417
      %v1530 = vadd.f32 %v1303, %v1420
      %v1531 = vadd.f32 %v1304, %v1425
      %v1532 = vadd.f32 %v1305, %v1428
      %v1533 = vadd.f32 %v1306, %v1433
      %v1534 = vadd.f32 %v1307, %v1436
      %v1535 = vadd.f32 %v1308, %v1441
      %v1536 = vadd.f32 %v1309, %v1444
      %v1537 = vadd.f32 %v1310, %v1449
      %v1538 = vadd.f32 %v1311, %v1452
      %v1539 = vadd.f32 %v1312, %v1457
      %v1540 = vadd.f32 %v1313, %v1460
      %v1541 = vadd.f32 %v1314, %v1465
      %v1542 = vadd.f32 %v1315, %v1468
      %v1543 = vadd.f32 %v1316, %v1473
      %v1544 = vadd.f32 %v1317, %v1476
      %v1545 = vadd.f32 %v1318, %v1481
      %v1546 = vadd.f32 %v1319, %v1484
      %v1547 = vadd.f32 %v1320, %v1489
      %v1548 = vadd.f32 %v1321, %v1492
      %v1549 = vadd.f32 %v1322, %v1497
      %v1550 = vadd.f32 %v1323, %v1500
      %v1551 = vadd.f32 %v1324, %v1505
      %v1552 = vadd.f32 %v1325, %v1508
      %v1553 = vadd.f32 %v1326, %v1513
      %v1554 = vadd.f32 %v1327, %v1516
      %s1555 = scalar_lea.vmem %s2, 16
      %v1556 = vld [vmem:[%s1555] sm:$0xf]
      %v1557 = vld [vmem:[%s1555 + $0x4] sm:$0x3]
      %v1560 = vunpack.c.l.b16 %v1556
      %v1561 = vunpack.c.l.b16 %v1557
      %v1562 = vpack.c.b16 %v1561, %v1560
      %v1564 = vsel %vm1056, %v1041, 0
      %v1567 = vsel %vm1111, %v1562, 0
      %1569 = vmatprep.subr.bf16.mxu0 0
      %1570 = vmatpush1.bf16.msra.mxu0 %v1567
      %1571 = vmatprep.subr.bf16.mxu0 0
      %1572 = vmatpush1.bf16.msra.mxu0 0
      %1573 = vmatprep.subr.bf16.mxu0 0
      %1574 = vmatpush1.bf16.msra.mxu0 0
      %1575 = vmatprep.subr.bf16.mxu0 0
      %1576 = vmatpush1.bf16.msra.mxu0 0
      %1577 = vmatprep.subr.bf16.mxu0 0
      %1578 = vmatpush1.bf16.msra.mxu0 0
      %1579 = vmatprep.subr.bf16.mxu0 0
      %1580 = vmatpush1.bf16.msra.mxu0 0
      %1581 = vmatprep.subr.bf16.mxu0 0
      %1582 = vmatpush1.bf16.msra.mxu0 0
      %1583 = vmatprep.subr.bf16.mxu0 0
      %1584 = vmatpush1.bf16.msra.mxu0 0
      %1585 = vmatprep.subr.bf16.mxu0 0
      %1586 = vmatpush1.bf16.msra.mxu0 0
      %1587 = vmatprep.subr.bf16.mxu0 0
      %1588 = vmatpush1.bf16.msra.mxu0 0
      %1589 = vmatprep.subr.bf16.mxu0 0
      %1590 = vmatpush1.bf16.msra.mxu0 0
      %1591 = vmatprep.subr.bf16.mxu0 0
      %1592 = vmatpush1.bf16.msra.mxu0 0
      %1593 = vmatprep.subr.bf16.mxu0 0
      %1594 = vmatpush1.bf16.msra.mxu0 0
      %1595 = vmatprep.subr.bf16.mxu0 0
      %1596 = vmatpush1.bf16.msra.mxu0 0
      %1597 = vmatprep.subr.bf16.mxu0 0
      %1598 = vmatpush1.bf16.msra.mxu0 0
      %1599 = vmatprep.subr.bf16.mxu0 0
      %1600 = vmatpush1.bf16.msra.mxu0 0
      %1601 = vmatprep.mubr.bf16.mxu0 0
      %1602 = vmatmul.mubr.bf16.gmra.mrb[0].mxu0 %v1064
      %v1603 = vpop.f32.mrb[0].mxu0
      %v1604 = vadd.f32 0.0, %v1603
      %v1605 = vpop.f32.mrb[0].mxu0
      %v1606 = vpop.f32.mrb[0].mxu0
      %v1607 = vadd.f32 0.0, %v1606
      %v1608 = vpop.f32.mrb[0].mxu0
      %1609 = vmatprep.mubr.bf16.mxu0 0
      %1610 = vmatmul.mubr.bf16.gmra.mrb[0].mxu0 %v1067
      %v1611 = vpop.f32.mrb[0].mxu0
      %v1612 = vadd.f32 0.0, %v1611
      %v1613 = vpop.f32.mrb[0].mxu0
      %v1614 = vpop.f32.mrb[0].mxu0
      %v1615 = vadd.f32 0.0, %v1614
      %v1616 = vpop.f32.mrb[0].mxu0
      %1617 = vmatprep.mubr.bf16.mxu0 0
      %1618 = vmatmul.mubr.bf16.gmra.mrb[0].mxu0 %v1070
      %v1619 = vpop.f32.mrb[0].mxu0
      %v1620 = vadd.f32 0.0, %v1619
      %v1621 = vpop.f32.mrb[0].mxu0
      %v1622 = vpop.f32.mrb[0].mxu0
      %v1623 = vadd.f32 0.0, %v1622
      %v1624 = vpop.f32.mrb[0].mxu0
      %1625 = vmatprep.mubr.bf16.mxu0 0
      %1626 = vmatmul.mubr.bf16.gmra.mrb[0].mxu0 %v1073
      %v1627 = vpop.f32.mrb[0].mxu0
      %v1628 = vadd.f32 0.0, %v1627
      %v1629 = vpop.f32.mrb[0].mxu0
      %v1630 = vpop.f32.mrb[0].mxu0
      %v1631 = vadd.f32 0.0, %v1630
      %v1632 = vpop.f32.mrb[0].mxu0
      %1633 = vmatprep.mubr.bf16.mxu0 0
      %1634 = vmatmul.mubr.bf16.gmra.mrb[0].mxu0 %v1076
      %v1635 = vpop.f32.mrb[0].mxu0
      %v1636 = vadd.f32 0.0, %v1635
      %v1637 = vpop.f32.mrb[0].mxu0
      %v1638 = vpop.f32.mrb[0].mxu0
      %v1639 = vadd.f32 0.0, %v1638
      %v1640 = vpop.f32.mrb[0].mxu0
      %1641 = vmatprep.mubr.bf16.mxu0 0
      %1642 = vmatmul.mubr.bf16.gmra.mrb[0].mxu0 %v1079
      %v1643 = vpop.f32.mrb[0].mxu0
      %v1644 = vadd.f32 0.0, %v1643
      %v1645 = vpop.f32.mrb[0].mxu0
      %v1646 = vpop.f32.mrb[0].mxu0
      %v1647 = vadd.f32 0.0, %v1646
      %v1648 = vpop.f32.mrb[0].mxu0
      %1649 = vmatprep.mubr.bf16.mxu0 0
      %1650 = vmatmul.mubr.bf16.gmra.mrb[0].mxu0 %v1082
      %v1651 = vpop.f32.mrb[0].mxu0
      %v1652 = vadd.f32 0.0, %v1651
      %v1653 = vpop.f32.mrb[0].mxu0
      %v1654 = vpop.f32.mrb[0].mxu0
      %v1655 = vadd.f32 0.0, %v1654
      %v1656 = vpop.f32.mrb[0].mxu0
      %1657 = vmatprep.mubr.bf16.mxu0 0
      %1658 = vmatmul.mubr.bf16.gmra.mrb[0].mxu0 %v1085
      %v1659 = vpop.f32.mrb[0].mxu0
      %v1660 = vadd.f32 0.0, %v1659
      %v1661 = vpop.f32.mrb[0].mxu0
      %v1662 = vpop.f32.mrb[0].mxu0
      %v1663 = vadd.f32 0.0, %v1662
      %v1664 = vpop.f32.mrb[0].mxu0
      %1665 = vmatprep.mubr.bf16.mxu0 0
      %1666 = vmatmul.mubr.bf16.gmra.mrb[0].mxu0 %v1088
      %v1667 = vpop.f32.mrb[0].mxu0
      %v1668 = vadd.f32 0.0, %v1667
      %v1669 = vpop.f32.mrb[0].mxu0
      %v1670 = vpop.f32.mrb[0].mxu0
      %v1671 = vadd.f32 0.0, %v1670
      %v1672 = vpop.f32.mrb[0].mxu0
      %1673 = vmatprep.mubr.bf16.mxu0 0
      %1674 = vmatmul.mubr.bf16.gmra.mrb[0].mxu0 %v1091
      %v1675 = vpop.f32.mrb[0].mxu0
      %v1676 = vadd.f32 0.0, %v1675
      %v1677 = vpop.f32.mrb[0].mxu0
      %v1678 = vpop.f32.mrb[0].mxu0
      %v1679 = vadd.f32 0.0, %v1678
      %v1680 = vpop.f32.mrb[0].mxu0
      %1681 = vmatprep.mubr.bf16.mxu0 0
      %1682 = vmatmul.mubr.bf16.gmra.mrb[0].mxu0 %v1094
      %v1683 = vpop.f32.mrb[0].mxu0
      %v1684 = vadd.f32 0.0, %v1683
      %v1685 = vpop.f32.mrb[0].mxu0
      %v1686 = vpop.f32.mrb[0].mxu0
      %v1687 = vadd.f32 0.0, %v1686
      %v1688 = vpop.f32.mrb[0].mxu0
      %1689 = vmatprep.mubr.bf16.mxu0 0
      %1690 = vmatmul.mubr.bf16.gmra.mrb[0].mxu0 %v1097
      %v1691 = vpop.f32.mrb[0].mxu0
      %v1692 = vadd.f32 0.0, %v1691
      %v1693 = vpop.f32.mrb[0].mxu0
      %v1694 = vpop.f32.mrb[0].mxu0
      %v1695 = vadd.f32 0.0, %v1694
      %v1696 = vpop.f32.mrb[0].mxu0
      %1697 = vmatprep.mubr.bf16.mxu0 0
      %1698 = vmatmul.mubr.bf16.gmra.mrb[0].mxu0 %v1100
      %v1699 = vpop.f32.mrb[0].mxu0
      %v1700 = vadd.f32 0.0, %v1699
      %v1701 = vpop.f32.mrb[0].mxu0
      %v1702 = vpop.f32.mrb[0].mxu0
      %v1703 = vadd.f32 0.0, %v1702
      %v1704 = vpop.f32.mrb[0].mxu0
      %1705 = vmatprep.mubr.bf16.mxu0 0
      %1706 = vmatmul.mubr.bf16.gmra.mrb[0].mxu0 %v1103
      %v1707 = vpop.f32.mrb[0].mxu0
      %v1708 = vadd.f32 0.0, %v1707
      %v1709 = vpop.f32.mrb[0].mxu0
      %v1710 = vpop.f32.mrb[0].mxu0
      %v1711 = vadd.f32 0.0, %v1710
      %v1712 = vpop.f32.mrb[0].mxu0
      %1713 = vmatprep.mubr.bf16.mxu0 0
      %1714 = vmatmul.mubr.bf16.gmra.mrb[0].mxu0 %v1106
      %v1715 = vpop.f32.mrb[0].mxu0
      %v1716 = vadd.f32 0.0, %v1715
      %v1717 = vpop.f32.mrb[0].mxu0
      %v1718 = vpop.f32.mrb[0].mxu0
      %v1719 = vadd.f32 0.0, %v1718
      %v1720 = vpop.f32.mrb[0].mxu0
      %1721 = vmatprep.mubr.bf16.mxu0 0
      %1722 = vmatmul.mubr.bf16.gmra.mrb[0].mxu0 %v1109
      %v1723 = vpop.f32.mrb[0].mxu0
      %v1724 = vadd.f32 0.0, %v1723
      %v1725 = vpop.f32.mrb[0].mxu0
      %v1726 = vpop.f32.mrb[0].mxu0
      %v1727 = vadd.f32 0.0, %v1726
      %v1728 = vpop.f32.mrb[0].mxu0
      %1729 = vmatprep.mubr.bf16.mxu0 0
      %1730 = vmatmul.mubr.bf16.gmra.mrb[0].mxu0 %v1337
      %v1731 = vpop.f32.mrb[0].mxu0
      %v1732 = vadd.f32 0.0, %v1731
      %v1733 = vpop.f32.mrb[0].mxu0
      %v1734 = vpop.f32.mrb[0].mxu0
      %v1735 = vadd.f32 0.0, %v1734
      %v1736 = vpop.f32.mrb[0].mxu0
      %1737 = vmatprep.mubr.bf16.mxu0 0
      %1738 = vmatmul.mubr.bf16.gmra.mrb[0].mxu0 %v1564
      %v1739 = vpop.f32.mrb[0].mxu0
      %v1740 = vadd.f32 0.0, %v1739
      %v1741 = vpop.f32.mrb[0].mxu0
      %v1742 = vpop.f32.mrb[0].mxu0
      %v1743 = vadd.f32 0.0, %v1742
      %v1744 = vpop.f32.mrb[0].mxu0
      %1745 = vdwg.mxu0
      %v1746 = vadd.f32 %v1519, %v1604
      %v1747 = vadd.f32 %v1520, %v1607
      %v1748 = vadd.f32 %v1521, %v1612
      %v1749 = vadd.f32 %v1522, %v1615
      %v1750 = vadd.f32 %v1523, %v1620
      %v1751 = vadd.f32 %v1524, %v1623
      %v1752 = vadd.f32 %v1525, %v1628
      %v1753 = vadd.f32 %v1526, %v1631
      %v1754 = vadd.f32 %v1527, %v1636
      %v1755 = vadd.f32 %v1528, %v1639
      %v1756 = vadd.f32 %v1529, %v1644
      %v1757 = vadd.f32 %v1530, %v1647
      %v1758 = vadd.f32 %v1531, %v1652
      %v1759 = vadd.f32 %v1532, %v1655
      %v1760 = vadd.f32 %v1533, %v1660
      %v1761 = vadd.f32 %v1534, %v1663
      %v1762 = vadd.f32 %v1535, %v1668
      %v1763 = vadd.f32 %v1536, %v1671
      %v1764 = vadd.f32 %v1537, %v1676
      %v1765 = vadd.f32 %v1538, %v1679
      %v1766 = vadd.f32 %v1539, %v1684
      %v1767 = vadd.f32 %v1540, %v1687
      %v1768 = vadd.f32 %v1541, %v1692
      %v1769 = vadd.f32 %v1542, %v1695
      %v1770 = vadd.f32 %v1543, %v1700
      %v1771 = vadd.f32 %v1544, %v1703
      %v1772 = vadd.f32 %v1545, %v1708
      %v1773 = vadd.f32 %v1546, %v1711
      %v1774 = vadd.f32 %v1547, %v1716
      %v1775 = vadd.f32 %v1548, %v1719
      %v1776 = vadd.f32 %v1549, %v1724
      %v1777 = vadd.f32 %v1550, %v1727
      %v1778 = vadd.f32 %v1551, %v1732
      %v1779 = vadd.f32 %v1552, %v1735
      %v1780 = vadd.f32 %v1553, %v1740
      %v1781 = vadd.f32 %v1554, %v1743
      %v1782 = vmax.f32 %v1746, 0.0
      %v1783 = vmax.f32 %v1747, 0.0
      %v1784 = vmax.f32 %v1748, 0.0
      %v1785 = vmax.f32 %v1749, 0.0
      %v1786 = vmax.f32 %v1750, 0.0
      %v1787 = vmax.f32 %v1751, 0.0
      %v1788 = vmax.f32 %v1752, 0.0
      %v1789 = vmax.f32 %v1753, 0.0
      %v1790 = vmax.f32 %v1754, 0.0
      %v1791 = vmax.f32 %v1755, 0.0
      %v1792 = vmax.f32 %v1756, 0.0
      %v1793 = vmax.f32 %v1757, 0.0
      %v1794 = vmax.f32 %v1758, 0.0
      %v1795 = vmax.f32 %v1759, 0.0
      %v1796 = vmax.f32 %v1760, 0.0
      %v1797 = vmax.f32 %v1761, 0.0
      %v1798 = vmax.f32 %v1762, 0.0
      %v1799 = vmax.f32 %v1763, 0.0
      %v1800 = vmax.f32 %v1764, 0.0
      %v1801 = vmax.f32 %v1765, 0.0
      %v1802 = vmax.f32 %v1766, 0.0
      %v1803 = vmax.f32 %v1767, 0.0
      %v1804 = vmax.f32 %v1768, 0.0
      %v1805 = vmax.f32 %v1769, 0.0
      %v1806 = vmax.f32 %v1770, 0.0
      %v1807 = vmax.f32 %v1771, 0.0
      %v1808 = vmax.f32 %v1772, 0.0
      %v1809 = vmax.f32 %v1773, 0.0
      %v1810 = vmax.f32 %v1774, 0.0
      %v1811 = vmax.f32 %v1775, 0.0
      %v1812 = vmax.f32 %v1776, 0.0
      %v1813 = vmax.f32 %v1777, 0.0
      %v1814 = vmax.f32 %v1778, 0.0
      %v1815 = vmax.f32 %v1779, 0.0
      %v1816 = vmax.f32 %v1780, 0.0
      %v1817 = vmax.f32 %v1781, 0.0
      %1818 = vst.msk [vmem:[#allocation2] sm:$0xff] %vm940, %v1782
      %1819 = vst.msk [vmem:[#allocation2 + $0x8] sm:$0xff] %vm940, %v1783
      %1820 = vst.msk [vmem:[#allocation2 + $0x10] sm:$0xff] %vm940, %v1784
      %1821 = vst.msk [vmem:[#allocation2 + $0x18] sm:$0xff] %vm940, %v1785
      %1822 = vst.msk [vmem:[#allocation2 + $0x20] sm:$0xff] %vm940, %v1786
      %1823 = vst.msk [vmem:[#allocation2 + $0x28] sm:$0xff] %vm940, %v1787
      %1824 = vst.msk [vmem:[#allocation2 + $0x30] sm:$0xff] %vm940, %v1788
      %1825 = vst.msk [vmem:[#allocation2 + $0x38] sm:$0xff] %vm940, %v1789
      %1826 = vst.msk [vmem:[#allocation2 + $0x40] sm:$0xff] %vm940, %v1790
      %1827 = vst.msk [vmem:[#allocation2 + $0x48] sm:$0xff] %vm940, %v1791
      %1828 = vst.msk [vmem:[#allocation2 + $0x50] sm:$0xff] %vm940, %v1792
      %1829 = vst.msk [vmem:[#allocation2 + $0x58] sm:$0xff] %vm940, %v1793
      %1830 = vst.msk [vmem:[#allocation2 + $0x60] sm:$0xff] %vm940, %v1794
      %1831 = vst.msk [vmem:[#allocation2 + $0x68] sm:$0xff] %vm940, %v1795
      %1832 = vst.msk [vmem:[#allocation2 + $0x70] sm:$0xff] %vm940, %v1796
      %1833 = vst.msk [vmem:[#allocation2 + $0x78] sm:$0xff] %vm940, %v1797
      %1834 = vst.msk [vmem:[#allocation2 + $0x80] sm:$0xff] %vm940, %v1798
      %1835 = vst.msk [vmem:[#allocation2 + $0x88] sm:$0xff] %vm940, %v1799
      %1836 = vst.msk [vmem:[#allocation2 + $0x90] sm:$0xff] %vm940, %v1800
      %1837 = vst.msk [vmem:[#allocation2 + $0x98] sm:$0xff] %vm940, %v1801
      %1838 = vst.msk [vmem:[#allocation2 + $0xa0] sm:$0xff] %vm940, %v1802
      %1839 = vst.msk [vmem:[#allocation2 + $0xa8] sm:$0xff] %vm940, %v1803
      %1840 = vst.msk [vmem:[#allocation2 + $0xb0] sm:$0xff] %vm940, %v1804
      %1841 = vst.msk [vmem:[#allocation2 + $0xb8] sm:$0xff] %vm940, %v1805
      %1842 = vst.msk [vmem:[#allocation2 + $0xc0] sm:$0xff] %vm940, %v1806
      %1843 = vst.msk [vmem:[#allocation2 + $0xc8] sm:$0xff] %vm940, %v1807
      %1844 = vst.msk [vmem:[#allocation2 + $0xd0] sm:$0xff] %vm940, %v1808
      %1845 = vst.msk [vmem:[#allocation2 + $0xd8] sm:$0xff] %vm940, %v1809
      %1846 = vst.msk [vmem:[#allocation2 + $0xe0] sm:$0xff] %vm940, %v1810
      %1847 = vst.msk [vmem:[#allocation2 + $0xe8] sm:$0xff] %vm940, %v1811
      %1848 = vst.msk [vmem:[#allocation2 + $0xf0] sm:$0xff] %vm940, %v1812
      %1849 = vst.msk [vmem:[#allocation2 + $0xf8] sm:$0xff] %vm940, %v1813
      %1850 = vst.msk [vmem:[#allocation2 + $0x100] sm:$0xff] %vm940, %v1814
      %1851 = vst.msk [vmem:[#allocation2 + $0x108] sm:$0xff] %vm940, %v1815
      %1852 = vst.msk [vmem:[#allocation2 + $0x110] sm:$0xff] %vm940, %v1816
      %1853 = vst.msk [vmem:[#allocation2 + $0x118] sm:$0xff] %vm940, %v1817
      %p1854 = scmp.eq.s32.totalorder %s22, 0
      // Predicated region
      $region45: #{tpu_custom_call.1} parent=43 // pred_check
        %p1855 = pneg %p1854
      $region46: #{tpu_custom_call.1} parent=43 // pred_check_branch
        %1857 = sbr.rel (%p1855) target = $region48
      $region47: #{tpu_custom_call.1} parent=43 // pred_region
        %s1858 = scalar_lea.vmem [#allocation2], 32
        %v1859 = vld [vmem:[%s1858] sm:$0xff]
        %v1860 = vld [vmem:[%s1858 + $0x8] sm:$0xff]
        %1861 = vst.msk [vmem:[#allocation2] sm:$0xff] %vm940, %v1859
        %1862 = vst.msk [vmem:[#allocation2 + $0x8] sm:$0xff] %vm940, %v1860
        %s1863 = scalar_lea.vmem [#allocation2], 240
        %v1864 = vld [vmem:[%s1863] sm:$0xff]
        %v1865 = vld [vmem:[%s1863 + $0x8] sm:$0xff]
        %s1866 = scalar_lea.vmem [#allocation2], 272
        %1867 = vst.msk [vmem:[%s1866] sm:$0xff] %vm940, %v1864
        %1868 = vst.msk [vmem:[%s1866 + $0x8] sm:$0xff] %vm940, %v1865
      $region48: #{tpu_custom_call.1} parent=43 // pred_fallthru
        _
      %v1869 = vld [vmem:[#allocation2] sm:$0xff]
      %v1870 = vld [vmem:[#allocation2 + $0x8] sm:$0xff]
      %v1871 = vld [vmem:[#allocation2 + $0x10] sm:$0xff]
      %v1872 = vld [vmem:[#allocation2 + $0x18] sm:$0xff]
      %v1873 = vld [vmem:[#allocation2 + $0x20] sm:$0xff]
      %v1874 = vld [vmem:[#allocation2 + $0x28] sm:$0xff]
      %v1875 = vld [vmem:[#allocation2 + $0x30] sm:$0xff]
      %v1876 = vld [vmem:[#allocation2 + $0x38] sm:$0xff]
      %v1877 = vld [vmem:[#allocation2 + $0x40] sm:$0xff]
      %v1878 = vld [vmem:[#allocation2 + $0x48] sm:$0xff]
      %v1879 = vld [vmem:[#allocation2 + $0x50] sm:$0xff]
      %v1880 = vld [vmem:[#allocation2 + $0x58] sm:$0xff]
      %v1881 = vld [vmem:[#allocation2 + $0x60] sm:$0xff]
      %v1882 = vld [vmem:[#allocation2 + $0x68] sm:$0xff]
      %v1883 = vld [vmem:[#allocation2 + $0x70] sm:$0xff]
      %v1884 = vld [vmem:[#allocation2 + $0x78] sm:$0xff]
      %v1885 = vld [vmem:[#allocation2 + $0x80] sm:$0xff]
      %v1886 = vld [vmem:[#allocation2 + $0x88] sm:$0xff]
      %v1887 = vld [vmem:[#allocation2 + $0x90] sm:$0xff]
      %v1888 = vld [vmem:[#allocation2 + $0x98] sm:$0xff]
      %v1889 = vld [vmem:[#allocation2 + $0xa0] sm:$0xff]
      %v1890 = vld [vmem:[#allocation2 + $0xa8] sm:$0xff]
      %v1891 = vld [vmem:[#allocation2 + $0xb0] sm:$0xff]
      %v1892 = vld [vmem:[#allocation2 + $0xb8] sm:$0xff]
      %v1893 = vld [vmem:[#allocation2 + $0xc0] sm:$0xff]
      %v1894 = vld [vmem:[#allocation2 + $0xc8] sm:$0xff]
      %v1895 = vld [vmem:[#allocation2 + $0xd0] sm:$0xff]
      %v1896 = vld [vmem:[#allocation2 + $0xd8] sm:$0xff]
      %v1897 = vld [vmem:[#allocation2 + $0xe0] sm:$0xff]
      %v1898 = vld [vmem:[#allocation2 + $0xe8] sm:$0xff]
      %v1899 = vld [vmem:[#allocation2 + $0xf0] sm:$0xff]
      %v1900 = vld [vmem:[#allocation2 + $0xf8] sm:$0xff]
      %v1901 = vld [vmem:[#allocation2 + $0x100] sm:$0xff]
      %v1902 = vld [vmem:[#allocation2 + $0x108] sm:$0xff]
      %v1903 = vld [vmem:[#allocation2 + $0x110] sm:$0xff]
      %v1904 = vld [vmem:[#allocation2 + $0x118] sm:$0xff]
      %v1905 = vrot.slane %v1869, 1
      %v1906 = vrot.slane %v1871, 1
      %v1907 = vrot.slane %v1873, 1
      %v1908 = vrot.slane %v1875, 1
      %v1909 = vrot.slane %v1877, 1
      %v1910 = vrot.slane %v1879, 1
      %v1911 = vrot.slane %v1881, 1
      %v1912 = vrot.slane %v1883, 1
      %v1913 = vrot.slane %v1885, 1
      %v1914 = vrot.slane %v1887, 1
      %v1915 = vrot.slane %v1889, 1
      %v1916 = vrot.slane %v1891, 1
      %v1917 = vrot.slane %v1893, 1
      %v1918 = vrot.slane %v1895, 1
      %v1919 = vrot.slane %v1897, 1
      %v1920 = vrot.slane %v1899, 1
      %v1921 = vrot.slane %v1901, 1
      %v1922 = vrot.slane %v1903, 1
      %v1923 = vrot.slane %v1870, 1
      %v1924 = vrot.slane %v1872, 1
      %v1925 = vrot.slane %v1874, 1
      %v1926 = vrot.slane %v1876, 1
      %v1927 = vrot.slane %v1878, 1
      %v1928 = vrot.slane %v1880, 1
      %v1929 = vrot.slane %v1882, 1
      %v1930 = vrot.slane %v1884, 1
      %v1931 = vrot.slane %v1886, 1
      %v1932 = vrot.slane %v1888, 1
      %v1933 = vrot.slane %v1890, 1
      %v1934 = vrot.slane %v1892, 1
      %v1935 = vrot.slane %v1894, 1
      %v1936 = vrot.slane %v1896, 1
      %v1937 = vrot.slane %v1898, 1
      %v1938 = vrot.slane %v1900, 1
      %v1939 = vrot.slane %v1902, 1
      %v1940 = vrot.slane %v1904, 1
      %v1941 = vsel %vm414, %v1905, %v1923
      %v1942 = vsel %vm414, %v1906, %v1924
      %v1943 = vsel %vm414, %v1907, %v1925
      %v1944 = vsel %vm414, %v1908, %v1926
      %v1945 = vsel %vm414, %v1909, %v1927
      %v1946 = vsel %vm414, %v1910, %v1928
      %v1947 = vsel %vm414, %v1911, %v1929
      %v1948 = vsel %vm414, %v1912, %v1930
      %v1949 = vsel %vm414, %v1913, %v1931
      %v1950 = vsel %vm414, %v1914, %v1932
      %v1951 = vsel %vm414, %v1915, %v1933
      %v1952 = vsel %vm414, %v1916, %v1934
      %v1953 = vsel %vm414, %v1917, %v1935
      %v1954 = vsel %vm414, %v1918, %v1936
      %v1955 = vsel %vm414, %v1919, %v1937
      %v1956 = vsel %vm414, %v1920, %v1938
      %v1957 = vsel %vm414, %v1921, %v1939
      %v1958 = vsel %vm414, %v1922, %v1940
      %v1959 = vsel %vm414, %v1923, %v1905
      %v1960 = vsel %vm414, %v1924, %v1906
      %v1961 = vsel %vm414, %v1925, %v1907
      %v1962 = vsel %vm414, %v1926, %v1908
      %v1963 = vsel %vm414, %v1927, %v1909
      %v1964 = vsel %vm414, %v1928, %v1910
      %v1965 = vsel %vm414, %v1929, %v1911
      %v1966 = vsel %vm414, %v1930, %v1912
      %v1967 = vsel %vm414, %v1931, %v1913
      %v1968 = vsel %vm414, %v1932, %v1914
      %v1969 = vsel %vm414, %v1933, %v1915
      %v1970 = vsel %vm414, %v1934, %v1916
      %v1971 = vsel %vm414, %v1935, %v1917
      %v1972 = vsel %vm414, %v1936, %v1918
      %v1973 = vsel %vm414, %v1937, %v1919
      %v1974 = vsel %vm414, %v1938, %v1920
      %v1975 = vsel %vm414, %v1939, %v1921
      %v1976 = vsel %vm414, %v1940, %v1922
      %v1977 = vrot.slane %v1869, 7
      %v1978 = vrot.slane %v1871, 7
      %v1979 = vrot.slane %v1873, 7
      %v1980 = vrot.slane %v1875, 7
      %v1981 = vrot.slane %v1877, 7
      %v1982 = vrot.slane %v1879, 7
      %v1983 = vrot.slane %v1881, 7
      %v1984 = vrot.slane %v1883, 7
      %v1985 = vrot.slane %v1885, 7
      %v1986 = vrot.slane %v1887, 7
      %v1987 = vrot.slane %v1889, 7
      %v1988 = vrot.slane %v1891, 7
      %v1989 = vrot.slane %v1893, 7
      %v1990 = vrot.slane %v1895, 7
      %v1991 = vrot.slane %v1897, 7
      %v1992 = vrot.slane %v1899, 7
      %v1993 = vrot.slane %v1901, 7
      %v1994 = vrot.slane %v1903, 7
      %v1995 = vrot.slane %v1870, 7
      %v1996 = vrot.slane %v1872, 7
      %v1997 = vrot.slane %v1874, 7
      %v1998 = vrot.slane %v1876, 7
      %v1999 = vrot.slane %v1878, 7
      %v2000 = vrot.slane %v1880, 7
      %v2001 = vrot.slane %v1882, 7
      %v2002 = vrot.slane %v1884, 7
      %v2003 = vrot.slane %v1886, 7
      %v2004 = vrot.slane %v1888, 7
      %v2005 = vrot.slane %v1890, 7
      %v2006 = vrot.slane %v1892, 7
      %v2007 = vrot.slane %v1894, 7
      %v2008 = vrot.slane %v1896, 7
      %v2009 = vrot.slane %v1898, 7
      %v2010 = vrot.slane %v1900, 7
      %v2011 = vrot.slane %v1902, 7
      %v2012 = vrot.slane %v1904, 7
      %v2013 = vsel %vm495, %v1977, %v1995
      %v2014 = vsel %vm495, %v1978, %v1996
      %v2015 = vsel %vm495, %v1979, %v1997
      %v2016 = vsel %vm495, %v1980, %v1998
      %v2017 = vsel %vm495, %v1981, %v1999
      %v2018 = vsel %vm495, %v1982, %v2000
      %v2019 = vsel %vm495, %v1983, %v2001
      %v2020 = vsel %vm495, %v1984, %v2002
      %v2021 = vsel %vm495, %v1985, %v2003
      %v2022 = vsel %vm495, %v1986, %v2004
      %v2023 = vsel %vm495, %v1987, %v2005
      %v2024 = vsel %vm495, %v1988, %v2006
      %v2025 = vsel %vm495, %v1989, %v2007
      %v2026 = vsel %vm495, %v1990, %v2008
      %v2027 = vsel %vm495, %v1991, %v2009
      %v2028 = vsel %vm495, %v1992, %v2010
      %v2029 = vsel %vm495, %v1993, %v2011
      %v2030 = vsel %vm495, %v1994, %v2012
      %v2031 = vsel %vm495, %v1995, %v1977
      %v2032 = vsel %vm495, %v1996, %v1978
      %v2033 = vsel %vm495, %v1997, %v1979
      %v2034 = vsel %vm495, %v1998, %v1980
      %v2035 = vsel %vm495, %v1999, %v1981
      %v2036 = vsel %vm495, %v2000, %v1982
      %v2037 = vsel %vm495, %v2001, %v1983
      %v2038 = vsel %vm495, %v2002, %v1984
      %v2039 = vsel %vm495, %v2003, %v1985
      %v2040 = vsel %vm495, %v2004, %v1986
      %v2041 = vsel %vm495, %v2005, %v1987
      %v2042 = vsel %vm495, %v2006, %v1988
      %v2043 = vsel %vm495, %v2007, %v1989
      %v2044 = vsel %vm495, %v2008, %v1990
      %v2045 = vsel %vm495, %v2009, %v1991
      %v2046 = vsel %vm495, %v2010, %v1992
      %v2047 = vsel %vm495, %v2011, %v1993
      %v2048 = vsel %vm495, %v2012, %v1994
      %v2049 = vsel %vm536, %v1941, %v2031
      %v2050 = vsel %vm537, %v1959, %v2013
      %v2051 = vsel %vm536, %v1942, %v2032
      %v2052 = vsel %vm537, %v1960, %v2014
      %v2053 = vsel %vm536, %v1943, %v2033
      %v2054 = vsel %vm537, %v1961, %v2015
      %v2055 = vsel %vm536, %v1944, %v2034
      %v2056 = vsel %vm537, %v1962, %v2016
      %v2057 = vsel %vm536, %v1945, %v2035
      %v2058 = vsel %vm537, %v1963, %v2017
      %v2059 = vsel %vm536, %v1946, %v2036
      %v2060 = vsel %vm537, %v1964, %v2018
      %v2061 = vsel %vm536, %v1947, %v2037
      %v2062 = vsel %vm537, %v1965, %v2019
      %v2063 = vsel %vm536, %v1948, %v2038
      %v2064 = vsel %vm537, %v1966, %v2020
      %v2065 = vsel %vm536, %v1949, %v2039
      %v2066 = vsel %vm537, %v1967, %v2021
      %v2067 = vsel %vm536, %v1950, %v2040
      %v2068 = vsel %vm537, %v1968, %v2022
      %v2069 = vsel %vm536, %v1951, %v2041
      %v2070 = vsel %vm537, %v1969, %v2023
      %v2071 = vsel %vm536, %v1952, %v2042
      %v2072 = vsel %vm537, %v1970, %v2024
      %v2073 = vsel %vm536, %v1953, %v2043
      %v2074 = vsel %vm537, %v1971, %v2025
      %v2075 = vsel %vm536, %v1954, %v2044
      %v2076 = vsel %vm537, %v1972, %v2026
      %v2077 = vsel %vm536, %v1955, %v2045
      %v2078 = vsel %vm537, %v1973, %v2027
      %v2079 = vsel %vm536, %v1956, %v2046
      %v2080 = vsel %vm537, %v1974, %v2028
      %v2081 = vsel %vm536, %v1957, %v2047
      %v2082 = vsel %vm537, %v1975, %v2029
      %v2083 = vsel %vm536, %v1958, %v2048
      %v2084 = vsel %vm537, %v1976, %v2030
      %v2085 = vsel %vm578, %v2031, %v1941
      %v2086 = vsel %vm579, %v2013, %v1959
      %v2087 = vsel %vm578, %v2032, %v1942
      %v2088 = vsel %vm579, %v2014, %v1960
      %v2089 = vsel %vm578, %v2033, %v1943
      %v2090 = vsel %vm579, %v2015, %v1961
      %v2091 = vsel %vm578, %v2034, %v1944
      %v2092 = vsel %vm579, %v2016, %v1962
      %v2093 = vsel %vm578, %v2035, %v1945
      %v2094 = vsel %vm579, %v2017, %v1963
      %v2095 = vsel %vm578, %v2036, %v1946
      %v2096 = vsel %vm579, %v2018, %v1964
      %v2097 = vsel %vm578, %v2037, %v1947
      %v2098 = vsel %vm579, %v2019, %v1965
      %v2099 = vsel %vm578, %v2038, %v1948
      %v2100 = vsel %vm579, %v2020, %v1966
      %v2101 = vsel %vm578, %v2039, %v1949
      %v2102 = vsel %vm579, %v2021, %v1967
      %v2103 = vsel %vm578, %v2040, %v1950
      %v2104 = vsel %vm579, %v2022, %v1968
      %v2105 = vsel %vm578, %v2041, %v1951
      %v2106 = vsel %vm579, %v2023, %v1969
      %v2107 = vsel %vm578, %v2042, %v1952
      %v2108 = vsel %vm579, %v2024, %v1970
      %v2109 = vsel %vm578, %v2043, %v1953
      %v2110 = vsel %vm579, %v2025, %v1971
      %v2111 = vsel %vm578, %v2044, %v1954
      %v2112 = vsel %vm579, %v2026, %v1972
      %v2113 = vsel %vm578, %v2045, %v1955
      %v2114 = vsel %vm579, %v2027, %v1973
      %v2115 = vsel %vm578, %v2046, %v1956
      %v2116 = vsel %vm579, %v2028, %v1974
      %v2117 = vsel %vm578, %v2047, %v1957
      %v2118 = vsel %vm579, %v2029, %v1975
      %v2119 = vsel %vm578, %v2048, %v1958
      %v2120 = vsel %vm579, %v2030, %v1976
      %2157 = vrot.lane.b32.xlu0 %v1869, 4
      %v2158 = vpop.permute.xlu0 %2157
      %2159 = vrot.lane.b32.xlu0 %v1870, 4
      %v2160 = vpop.permute.xlu0 %2159
      %2161 = vrot.lane.b32.xlu0 %v1871, 4
      %v2162 = vpop.permute.xlu0 %2161
      %2163 = vrot.lane.b32.xlu0 %v1872, 4
      %v2164 = vpop.permute.xlu0 %2163
      %2165 = vrot.lane.b32.xlu0 %v1873, 4
      %v2166 = vpop.permute.xlu0 %2165
      %2167 = vrot.lane.b32.xlu0 %v1874, 4
      %v2168 = vpop.permute.xlu0 %2167
      %2169 = vrot.lane.b32.xlu0 %v1875, 4
      %v2170 = vpop.permute.xlu0 %2169
      %2171 = vrot.lane.b32.xlu0 %v1876, 4
      %v2172 = vpop.permute.xlu0 %2171
      %2173 = vrot.lane.b32.xlu0 %v1877, 4
      %v2174 = vpop.permute.xlu0 %2173
      %2175 = vrot.lane.b32.xlu0 %v1878, 4
      %v2176 = vpop.permute.xlu0 %2175
      %2177 = vrot.lane.b32.xlu0 %v1879, 4
      %v2178 = vpop.permute.xlu0 %2177
      %2179 = vrot.lane.b32.xlu0 %v1880, 4
      %v2180 = vpop.permute.xlu0 %2179
      %2181 = vrot.lane.b32.xlu0 %v1881, 4
      %v2182 = vpop.permute.xlu0 %2181
      %2183 = vrot.lane.b32.xlu0 %v1882, 4
      %v2184 = vpop.permute.xlu0 %2183
      %2185 = vrot.lane.b32.xlu0 %v1883, 4
      %v2186 = vpop.permute.xlu0 %2185
      %2187 = vrot.lane.b32.xlu0 %v1884, 4
      %v2188 = vpop.permute.xlu0 %2187
      %2189 = vrot.lane.b32.xlu0 %v1885, 4
      %v2190 = vpop.permute.xlu0 %2189
      %2191 = vrot.lane.b32.xlu0 %v1886, 4
      %v2192 = vpop.permute.xlu0 %2191
      %2193 = vrot.lane.b32.xlu0 %v1887, 4
      %v2194 = vpop.permute.xlu0 %2193
      %2195 = vrot.lane.b32.xlu0 %v1888, 4
      %v2196 = vpop.permute.xlu0 %2195
      %2197 = vrot.lane.b32.xlu0 %v1889, 4
      %v2198 = vpop.permute.xlu0 %2197
      %2199 = vrot.lane.b32.xlu0 %v1890, 4
      %v2200 = vpop.permute.xlu0 %2199
      %2201 = vrot.lane.b32.xlu0 %v1891, 4
      %v2202 = vpop.permute.xlu0 %2201
      %2203 = vrot.lane.b32.xlu0 %v1892, 4
      %v2204 = vpop.permute.xlu0 %2203
      %2205 = vrot.lane.b32.xlu0 %v1893, 4
      %v2206 = vpop.permute.xlu0 %2205
      %2207 = vrot.lane.b32.xlu0 %v1894, 4
      %v2208 = vpop.permute.xlu0 %2207
      %2209 = vrot.lane.b32.xlu0 %v1895, 4
      %v2210 = vpop.permute.xlu0 %2209
      %2211 = vrot.lane.b32.xlu0 %v1896, 4
      %v2212 = vpop.permute.xlu0 %2211
      %2213 = vrot.lane.b32.xlu0 %v1897, 4
      %v2214 = vpop.permute.xlu0 %2213
      %2215 = vrot.lane.b32.xlu0 %v1898, 4
      %v2216 = vpop.permute.xlu0 %2215
      %2217 = vrot.lane.b32.xlu0 %v1899, 4
      %v2218 = vpop.permute.xlu0 %2217
      %2219 = vrot.lane.b32.xlu0 %v1900, 4
      %v2220 = vpop.permute.xlu0 %2219
      %2221 = vrot.lane.b32.xlu0 %v1901, 4
      %v2222 = vpop.permute.xlu0 %2221
      %2223 = vrot.lane.b32.xlu0 %v1902, 4
      %v2224 = vpop.permute.xlu0 %2223
      %2225 = vrot.lane.b32.xlu0 %v1903, 4
      %v2226 = vpop.permute.xlu0 %2225
      %2227 = vrot.lane.b32.xlu0 %v1904, 4
      %v2228 = vpop.permute.xlu0 %2227
      %2301 = vrot.lane.b32.xlu0 %v2085, 8
      %v2302 = vpop.permute.xlu0 %2301
      %2303 = vrot.lane.b32.xlu0 %v2086, 8
      %v2304 = vpop.permute.xlu0 %2303
      %2305 = vrot.lane.b32.xlu0 %v2087, 8
      %v2306 = vpop.permute.xlu0 %2305
      %2307 = vrot.lane.b32.xlu0 %v2088, 8
      %v2308 = vpop.permute.xlu0 %2307
      %2309 = vrot.lane.b32.xlu0 %v2089, 8
      %v2310 = vpop.permute.xlu0 %2309
      %2311 = vrot.lane.b32.xlu0 %v2090, 8
      %v2312 = vpop.permute.xlu0 %2311
      %2313 = vrot.lane.b32.xlu0 %v2091, 8
      %v2314 = vpop.permute.xlu0 %2313
      %2315 = vrot.lane.b32.xlu0 %v2092, 8
      %v2316 = vpop.permute.xlu0 %2315
      %2317 = vrot.lane.b32.xlu0 %v2093, 8
      %v2318 = vpop.permute.xlu0 %2317
      %2319 = vrot.lane.b32.xlu0 %v2094, 8
      %v2320 = vpop.permute.xlu0 %2319
      %2321 = vrot.lane.b32.xlu0 %v2095, 8
      %v2322 = vpop.permute.xlu0 %2321
      %2323 = vrot.lane.b32.xlu0 %v2096, 8
      %v2324 = vpop.permute.xlu0 %2323
      %2325 = vrot.lane.b32.xlu0 %v2097, 8
      %v2326 = vpop.permute.xlu0 %2325
      %2327 = vrot.lane.b32.xlu0 %v2098, 8
      %v2328 = vpop.permute.xlu0 %2327
      %2329 = vrot.lane.b32.xlu0 %v2099, 8
      %v2330 = vpop.permute.xlu0 %2329
      %2331 = vrot.lane.b32.xlu0 %v2100, 8
      %v2332 = vpop.permute.xlu0 %2331
      %2333 = vrot.lane.b32.xlu0 %v2101, 8
      %v2334 = vpop.permute.xlu0 %2333
      %2335 = vrot.lane.b32.xlu0 %v2102, 8
      %v2336 = vpop.permute.xlu0 %2335
      %2337 = vrot.lane.b32.xlu0 %v2103, 8
      %v2338 = vpop.permute.xlu0 %2337
      %2339 = vrot.lane.b32.xlu0 %v2104, 8
      %v2340 = vpop.permute.xlu0 %2339
      %2341 = vrot.lane.b32.xlu0 %v2105, 8
      %v2342 = vpop.permute.xlu0 %2341
      %2343 = vrot.lane.b32.xlu0 %v2106, 8
      %v2344 = vpop.permute.xlu0 %2343
      %2345 = vrot.lane.b32.xlu0 %v2107, 8
      %v2346 = vpop.permute.xlu0 %2345
      %2347 = vrot.lane.b32.xlu0 %v2108, 8
      %v2348 = vpop.permute.xlu0 %2347
      %2349 = vrot.lane.b32.xlu0 %v2109, 8
      %v2350 = vpop.permute.xlu0 %2349
      %2351 = vrot.lane.b32.xlu0 %v2110, 8
      %v2352 = vpop.permute.xlu0 %2351
      %2353 = vrot.lane.b32.xlu0 %v2111, 8
      %v2354 = vpop.permute.xlu0 %2353
      %2355 = vrot.lane.b32.xlu0 %v2112, 8
      %v2356 = vpop.permute.xlu0 %2355
      %2357 = vrot.lane.b32.xlu0 %v2113, 8
      %v2358 = vpop.permute.xlu0 %2357
      %2359 = vrot.lane.b32.xlu0 %v2114, 8
      %v2360 = vpop.permute.xlu0 %2359
      %2361 = vrot.lane.b32.xlu0 %v2115, 8
      %v2362 = vpop.permute.xlu0 %2361
      %2363 = vrot.lane.b32.xlu0 %v2116, 8
      %v2364 = vpop.permute.xlu0 %2363
      %2365 = vrot.lane.b32.xlu0 %v2117, 8
      %v2366 = vpop.permute.xlu0 %2365
      %2367 = vrot.lane.b32.xlu0 %v2118, 8
      %v2368 = vpop.permute.xlu0 %2367
      %2369 = vrot.lane.b32.xlu0 %v2119, 8
      %v2370 = vpop.permute.xlu0 %2369
      %2371 = vrot.lane.b32.xlu0 %v2120, 8
      %v2372 = vpop.permute.xlu0 %2371
      %v2409 = vsel %vm940, %v2049, %v2158
      %v2410 = vsel %vm940, %v2050, %v2160
      %v2411 = vsel %vm940, %v2051, %v2162
      %v2412 = vsel %vm940, %v2052, %v2164
      %v2413 = vsel %vm940, %v2053, %v2166
      %v2414 = vsel %vm940, %v2054, %v2168
      %v2415 = vsel %vm940, %v2055, %v2170
      %v2416 = vsel %vm940, %v2056, %v2172
      %v2417 = vsel %vm940, %v2057, %v2174
      %v2418 = vsel %vm940, %v2058, %v2176
      %v2419 = vsel %vm940, %v2059, %v2178
      %v2420 = vsel %vm940, %v2060, %v2180
      %v2421 = vsel %vm940, %v2061, %v2182
      %v2422 = vsel %vm940, %v2062, %v2184
      %v2423 = vsel %vm940, %v2063, %v2186
      %v2424 = vsel %vm940, %v2064, %v2188
      %v2425 = vsel %vm940, %v2065, %v2190
      %v2426 = vsel %vm940, %v2066, %v2192
      %v2427 = vsel %vm940, %v2067, %v2194
      %v2428 = vsel %vm940, %v2068, %v2196
      %v2429 = vsel %vm940, %v2069, %v2198
      %v2430 = vsel %vm940, %v2070, %v2200
      %v2431 = vsel %vm940, %v2071, %v2202
      %v2432 = vsel %vm940, %v2072, %v2204
      %v2433 = vsel %vm940, %v2073, %v2206
      %v2434 = vsel %vm940, %v2074, %v2208
      %v2435 = vsel %vm940, %v2075, %v2210
      %v2436 = vsel %vm940, %v2076, %v2212
      %v2437 = vsel %vm940, %v2077, %v2214
      %v2438 = vsel %vm940, %v2078, %v2216
      %v2439 = vsel %vm940, %v2079, %v2218
      %v2440 = vsel %vm940, %v2080, %v2220
      %v2441 = vsel %vm940, %v2081, %v2222
      %v2442 = vsel %vm940, %v2082, %v2224
      %v2443 = vsel %vm940, %v2083, %v2226
      %v2444 = vsel %vm940, %v2084, %v2228
      %v2445 = vsel %vm981, %v2409, %v2302
      %v2446 = vsel %vm981, %v2410, %v2304
      %v2447 = vsel %vm981, %v2411, %v2306
      %v2448 = vsel %vm981, %v2412, %v2308
      %v2449 = vsel %vm981, %v2413, %v2310
      %v2450 = vsel %vm981, %v2414, %v2312
      %v2451 = vsel %vm981, %v2415, %v2314
      %v2452 = vsel %vm981, %v2416, %v2316
      %v2453 = vsel %vm981, %v2417, %v2318
      %v2454 = vsel %vm981, %v2418, %v2320
      %v2455 = vsel %vm981, %v2419, %v2322
      %v2456 = vsel %vm981, %v2420, %v2324
      %v2457 = vsel %vm981, %v2421, %v2326
      %v2458 = vsel %vm981, %v2422, %v2328
      %v2459 = vsel %vm981, %v2423, %v2330
      %v2460 = vsel %vm981, %v2424, %v2332
      %v2461 = vsel %vm981, %v2425, %v2334
      %v2462 = vsel %vm981, %v2426, %v2336
      %v2463 = vsel %vm981, %v2427, %v2338
      %v2464 = vsel %vm981, %v2428, %v2340
      %v2465 = vsel %vm981, %v2429, %v2342
      %v2466 = vsel %vm981, %v2430, %v2344
      %v2467 = vsel %vm981, %v2431, %v2346
      %v2468 = vsel %vm981, %v2432, %v2348
      %v2469 = vsel %vm981, %v2433, %v2350
      %v2470 = vsel %vm981, %v2434, %v2352
      %v2471 = vsel %vm981, %v2435, %v2354
      %v2472 = vsel %vm981, %v2436, %v2356
      %v2473 = vsel %vm981, %v2437, %v2358
      %v2474 = vsel %vm981, %v2438, %v2360
      %v2475 = vsel %vm981, %v2439, %v2362
      %v2476 = vsel %vm981, %v2440, %v2364
      %v2477 = vsel %vm981, %v2441, %v2366
      %v2478 = vsel %vm981, %v2442, %v2368
      %v2479 = vsel %vm981, %v2443, %v2370
      %v2480 = vsel %vm981, %v2444, %v2372
      %v2481 = vpack.c.bf16 %v2446, %v2445
      %v2482 = vpack.c.bf16 %v2448, %v2447
      %v2483 = vpack.c.bf16 %v2450, %v2449
      %v2484 = vpack.c.bf16 %v2452, %v2451
      %v2485 = vpack.c.bf16 %v2454, %v2453
      %v2486 = vpack.c.bf16 %v2456, %v2455
      %v2487 = vpack.c.bf16 %v2458, %v2457
      %v2488 = vpack.c.bf16 %v2460, %v2459
      %v2489 = vpack.c.bf16 %v2462, %v2461
      %v2490 = vpack.c.bf16 %v2464, %v2463
      %v2491 = vpack.c.bf16 %v2466, %v2465
      %v2492 = vpack.c.bf16 %v2468, %v2467
      %v2493 = vpack.c.bf16 %v2470, %v2469
      %v2494 = vpack.c.bf16 %v2472, %v2471
      %v2495 = vpack.c.bf16 %v2474, %v2473
      %v2496 = vpack.c.bf16 %v2476, %v2475
      %v2497 = vpack.c.bf16 %v2478, %v2477
      %v2498 = vpack.c.bf16 %v2480, %v2479
      %v2499 = vld [vmem:[%s5] sm:$0x1]
      %v2501 = vlaneseq
      %v2502 = vshrl.u32 %v2501, 7
      %v2503 = vsub.s32 0, %v2502
      %v2504 = vrot.slane %v2499, %v2503
      %v2506 = vld [vmem:[%s4] sm:$0xf]
      %v2507 = vld [vmem:[%s4 + $0x4] sm:$0x3]
      %v2510 = vunpack.c.l.b16 %v2506
      %v2511 = vunpack.c.l.b16 %v2507
      %v2512 = vpack.c.b16 %v2511, %v2510
      %v2514 = vsel %vm1056, %v2481, 0
      %v2517 = vsel %vm1056, %v2482, 0
      %v2520 = vsel %vm1056, %v2483, 0
      %v2523 = vsel %vm1056, %v2484, 0
      %v2526 = vsel %vm1056, %v2485, 0
      %v2529 = vsel %vm1056, %v2486, 0
      %v2532 = vsel %vm1056, %v2487, 0
      %v2535 = vsel %vm1056, %v2488, 0
      %v2538 = vsel %vm1056, %v2489, 0
      %v2541 = vsel %vm1056, %v2490, 0
      %v2544 = vsel %vm1056, %v2491, 0
      %v2547 = vsel %vm1056, %v2492, 0
      %v2550 = vsel %vm1056, %v2493, 0
      %v2553 = vsel %vm1056, %v2494, 0
      %v2556 = vsel %vm1056, %v2495, 0
      %v2559 = vsel %vm1056, %v2496, 0
      %v2562 = vsel %vm1111, %v2512, 0
      %2564 = vmatprep.subr.bf16.mxu0 0
      %2565 = vmatpush1.bf16.msra.mxu0 %v2562
      %2566 = vmatprep.subr.bf16.mxu0 0
      %2567 = vmatpush1.bf16.msra.mxu0 0
      %2568 = vmatprep.subr.bf16.mxu0 0
      %2569 = vmatpush1.bf16.msra.mxu0 0
      %2570 = vmatprep.subr.bf16.mxu0 0
      %2571 = vmatpush1.bf16.msra.mxu0 0
      %2572 = vmatprep.subr.bf16.mxu0 0
      %2573 = vmatpush1.bf16.msra.mxu0 0
      %2574 = vmatprep.subr.bf16.mxu0 0
      %2575 = vmatpush1.bf16.msra.mxu0 0
      %2576 = vmatprep.subr.bf16.mxu0 0
      %2577 = vmatpush1.bf16.msra.mxu0 0
      %2578 = vmatprep.subr.bf16.mxu0 0
      %2579 = vmatpush1.bf16.msra.mxu0 0
      %2580 = vmatprep.subr.bf16.mxu0 0
      %2581 = vmatpush1.bf16.msra.mxu0 0
      %2582 = vmatprep.subr.bf16.mxu0 0
      %2583 = vmatpush1.bf16.msra.mxu0 0
      %2584 = vmatprep.subr.bf16.mxu0 0
      %2585 = vmatpush1.bf16.msra.mxu0 0
      %2586 = vmatprep.subr.bf16.mxu0 0
      %2587 = vmatpush1.bf16.msra.mxu0 0
      %2588 = vmatprep.subr.bf16.mxu0 0
      %2589 = vmatpush1.bf16.msra.mxu0 0
      %2590 = vmatprep.subr.bf16.mxu0 0
      %2591 = vmatpush1.bf16.msra.mxu0 0
      %2592 = vmatprep.subr.bf16.mxu0 0
      %2593 = vmatpush1.bf16.msra.mxu0 0
      %2594 = vmatprep.subr.bf16.mxu0 0
      %2595 = vmatpush1.bf16.msra.mxu0 0
      %2596 = vmatprep.mubr.bf16.mxu0 0
      %2597 = vmatmul.mubr.bf16.gmra.mrb[0].mxu0 %v2514
      %v2598 = vpop.f32.mrb[0].mxu0
      %v2599 = vadd.f32 0.0, %v2598
      %v2600 = vpop.f32.mrb[0].mxu0
      %v2601 = vpop.f32.mrb[0].mxu0
      %v2602 = vadd.f32 0.0, %v2601
      %v2603 = vpop.f32.mrb[0].mxu0
      %2604 = vmatprep.mubr.bf16.mxu0 0
      %2605 = vmatmul.mubr.bf16.gmra.mrb[0].mxu0 %v2517
      %v2606 = vpop.f32.mrb[0].mxu0
      %v2607 = vadd.f32 0.0, %v2606
      %v2608 = vpop.f32.mrb[0].mxu0
      %v2609 = vpop.f32.mrb[0].mxu0
      %v2610 = vadd.f32 0.0, %v2609
      %v2611 = vpop.f32.mrb[0].mxu0
      %2612 = vmatprep.mubr.bf16.mxu0 0
      %2613 = vmatmul.mubr.bf16.gmra.mrb[0].mxu0 %v2520
      %v2614 = vpop.f32.mrb[0].mxu0
      %v2615 = vadd.f32 0.0, %v2614
      %v2616 = vpop.f32.mrb[0].mxu0
      %v2617 = vpop.f32.mrb[0].mxu0
      %v2618 = vadd.f32 0.0, %v2617
      %v2619 = vpop.f32.mrb[0].mxu0
      %2620 = vmatprep.mubr.bf16.mxu0 0
      %2621 = vmatmul.mubr.bf16.gmra.mrb[0].mxu0 %v2523
      %v2622 = vpop.f32.mrb[0].mxu0
      %v2623 = vadd.f32 0.0, %v2622
      %v2624 = vpop.f32.mrb[0].mxu0
      %v2625 = vpop.f32.mrb[0].mxu0
      %v2626 = vadd.f32 0.0, %v2625
      %v2627 = vpop.f32.mrb[0].mxu0
      %2628 = vmatprep.mubr.bf16.mxu0 0
      %2629 = vmatmul.mubr.bf16.gmra.mrb[0].mxu0 %v2526
      %v2630 = vpop.f32.mrb[0].mxu0
      %v2631 = vadd.f32 0.0, %v2630
      %v2632 = vpop.f32.mrb[0].mxu0
      %v2633 = vpop.f32.mrb[0].mxu0
      %v2634 = vadd.f32 0.0, %v2633
      %v2635 = vpop.f32.mrb[0].mxu0
      %2636 = vmatprep.mubr.bf16.mxu0 0
      %2637 = vmatmul.mubr.bf16.gmra.mrb[0].mxu0 %v2529
      %v2638 = vpop.f32.mrb[0].mxu0
      %v2639 = vadd.f32 0.0, %v2638
      %v2640 = vpop.f32.mrb[0].mxu0
      %v2641 = vpop.f32.mrb[0].mxu0
      %v2642 = vadd.f32 0.0, %v2641
      %v2643 = vpop.f32.mrb[0].mxu0
      %2644 = vmatprep.mubr.bf16.mxu0 0
      %2645 = vmatmul.mubr.bf16.gmra.mrb[0].mxu0 %v2532
      %v2646 = vpop.f32.mrb[0].mxu0
      %v2647 = vadd.f32 0.0, %v2646
      %v2648 = vpop.f32.mrb[0].mxu0
      %v2649 = vpop.f32.mrb[0].mxu0
      %v2650 = vadd.f32 0.0, %v2649
      %v2651 = vpop.f32.mrb[0].mxu0
      %2652 = vmatprep.mubr.bf16.mxu0 0
      %2653 = vmatmul.mubr.bf16.gmra.mrb[0].mxu0 %v2535
      %v2654 = vpop.f32.mrb[0].mxu0
      %v2655 = vadd.f32 0.0, %v2654
      %v2656 = vpop.f32.mrb[0].mxu0
      %v2657 = vpop.f32.mrb[0].mxu0
      %v2658 = vadd.f32 0.0, %v2657
      %v2659 = vpop.f32.mrb[0].mxu0
      %2660 = vmatprep.mubr.bf16.mxu0 0
      %2661 = vmatmul.mubr.bf16.gmra.mrb[0].mxu0 %v2538
      %v2662 = vpop.f32.mrb[0].mxu0
      %v2663 = vadd.f32 0.0, %v2662
      %v2664 = vpop.f32.mrb[0].mxu0
      %v2665 = vpop.f32.mrb[0].mxu0
      %v2666 = vadd.f32 0.0, %v2665
      %v2667 = vpop.f32.mrb[0].mxu0
      %2668 = vmatprep.mubr.bf16.mxu0 0
      %2669 = vmatmul.mubr.bf16.gmra.mrb[0].mxu0 %v2541
      %v2670 = vpop.f32.mrb[0].mxu0
      %v2671 = vadd.f32 0.0, %v2670
      %v2672 = vpop.f32.mrb[0].mxu0
      %v2673 = vpop.f32.mrb[0].mxu0
      %v2674 = vadd.f32 0.0, %v2673
      %v2675 = vpop.f32.mrb[0].mxu0
      %2676 = vmatprep.mubr.bf16.mxu0 0
      %2677 = vmatmul.mubr.bf16.gmra.mrb[0].mxu0 %v2544
      %v2678 = vpop.f32.mrb[0].mxu0
      %v2679 = vadd.f32 0.0, %v2678
      %v2680 = vpop.f32.mrb[0].mxu0
      %v2681 = vpop.f32.mrb[0].mxu0
      %v2682 = vadd.f32 0.0, %v2681
      %v2683 = vpop.f32.mrb[0].mxu0
      %2684 = vmatprep.mubr.bf16.mxu0 0
      %2685 = vmatmul.mubr.bf16.gmra.mrb[0].mxu0 %v2547
      %v2686 = vpop.f32.mrb[0].mxu0
      %v2687 = vadd.f32 0.0, %v2686
      %v2688 = vpop.f32.mrb[0].mxu0
      %v2689 = vpop.f32.mrb[0].mxu0
      %v2690 = vadd.f32 0.0, %v2689
      %v2691 = vpop.f32.mrb[0].mxu0
      %2692 = vmatprep.mubr.bf16.mxu0 0
      %2693 = vmatmul.mubr.bf16.gmra.mrb[0].mxu0 %v2550
      %v2694 = vpop.f32.mrb[0].mxu0
      %v2695 = vadd.f32 0.0, %v2694
      %v2696 = vpop.f32.mrb[0].mxu0
      %v2697 = vpop.f32.mrb[0].mxu0
      %v2698 = vadd.f32 0.0, %v2697
      %v2699 = vpop.f32.mrb[0].mxu0
      %2700 = vmatprep.mubr.bf16.mxu0 0
      %2701 = vmatmul.mubr.bf16.gmra.mrb[0].mxu0 %v2553
      %v2702 = vpop.f32.mrb[0].mxu0
      %v2703 = vadd.f32 0.0, %v2702
      %v2704 = vpop.f32.mrb[0].mxu0
      %v2705 = vpop.f32.mrb[0].mxu0
      %v2706 = vadd.f32 0.0, %v2705
      %v2707 = vpop.f32.mrb[0].mxu0
      %2708 = vmatprep.mubr.bf16.mxu0 0
      %2709 = vmatmul.mubr.bf16.gmra.mrb[0].mxu0 %v2556
      %v2710 = vpop.f32.mrb[0].mxu0
      %v2711 = vadd.f32 0.0, %v2710
      %v2712 = vpop.f32.mrb[0].mxu0
      %v2713 = vpop.f32.mrb[0].mxu0
      %v2714 = vadd.f32 0.0, %v2713
      %v2715 = vpop.f32.mrb[0].mxu0
      %2716 = vmatprep.mubr.bf16.mxu0 0
      %2717 = vmatmul.mubr.bf16.gmra.mrb[0].mxu0 %v2559
      %v2718 = vpop.f32.mrb[0].mxu0
      %v2719 = vadd.f32 0.0, %v2718
      %v2720 = vpop.f32.mrb[0].mxu0
      %v2721 = vpop.f32.mrb[0].mxu0
      %v2722 = vadd.f32 0.0, %v2721
      %v2723 = vpop.f32.mrb[0].mxu0
      %2724 = vdwg.mxu0
      %v2725 = vadd.f32 %v2504, %v2599
      %v2726 = vadd.f32 %v2504, %v2602
      %v2727 = vadd.f32 %v2504, %v2607
      %v2728 = vadd.f32 %v2504, %v2610
      %v2729 = vadd.f32 %v2504, %v2615
      %v2730 = vadd.f32 %v2504, %v2618
      %v2731 = vadd.f32 %v2504, %v2623
      %v2732 = vadd.f32 %v2504, %v2626
      %v2733 = vadd.f32 %v2504, %v2631
      %v2734 = vadd.f32 %v2504, %v2634
      %v2735 = vadd.f32 %v2504, %v2639
      %v2736 = vadd.f32 %v2504, %v2642
      %v2737 = vadd.f32 %v2504, %v2647
      %v2738 = vadd.f32 %v2504, %v2650
      %v2739 = vadd.f32 %v2504, %v2655
      %v2740 = vadd.f32 %v2504, %v2658
      %v2741 = vadd.f32 %v2504, %v2663
      %v2742 = vadd.f32 %v2504, %v2666
      %v2743 = vadd.f32 %v2504, %v2671
      %v2744 = vadd.f32 %v2504, %v2674
      %v2745 = vadd.f32 %v2504, %v2679
      %v2746 = vadd.f32 %v2504, %v2682
      %v2747 = vadd.f32 %v2504, %v2687
      %v2748 = vadd.f32 %v2504, %v2690
      %v2749 = vadd.f32 %v2504, %v2695
      %v2750 = vadd.f32 %v2504, %v2698
      %v2751 = vadd.f32 %v2504, %v2703
      %v2752 = vadd.f32 %v2504, %v2706
      %v2753 = vadd.f32 %v2504, %v2711
      %v2754 = vadd.f32 %v2504, %v2714
      %v2755 = vadd.f32 %v2504, %v2719
      %v2756 = vadd.f32 %v2504, %v2722
      %s2757 = scalar_lea.vmem %s4, 8
      %v2758 = vld [vmem:[%s2757] sm:$0xf]
      %v2759 = vld [vmem:[%s2757 + $0x4] sm:$0x3]
      %v2762 = vunpack.c.l.b16 %v2758
      %v2763 = vunpack.c.l.b16 %v2759
      %v2764 = vpack.c.b16 %v2763, %v2762
      %v2766 = vsel %vm1056, %v2497, 0
      %v2769 = vsel %vm1111, %v2764, 0
      %2771 = vmatprep.subr.bf16.mxu0 0
      %2772 = vmatpush1.bf16.msra.mxu0 %v2769
      %2773 = vmatprep.subr.bf16.mxu0 0
      %2774 = vmatpush1.bf16.msra.mxu0 0
      %2775 = vmatprep.subr.bf16.mxu0 0
      %2776 = vmatpush1.bf16.msra.mxu0 0
      %2777 = vmatprep.subr.bf16.mxu0 0
      %2778 = vmatpush1.bf16.msra.mxu0 0
      %2779 = vmatprep.subr.bf16.mxu0 0
      %2780 = vmatpush1.bf16.msra.mxu0 0
      %2781 = vmatprep.subr.bf16.mxu0 0
      %2782 = vmatpush1.bf16.msra.mxu0 0
      %2783 = vmatprep.subr.bf16.mxu0 0
      %2784 = vmatpush1.bf16.msra.mxu0 0
      %2785 = vmatprep.subr.bf16.mxu0 0
      %2786 = vmatpush1.bf16.msra.mxu0 0
      %2787 = vmatprep.subr.bf16.mxu0 0
      %2788 = vmatpush1.bf16.msra.mxu0 0
      %2789 = vmatprep.subr.bf16.mxu0 0
      %2790 = vmatpush1.bf16.msra.mxu0 0
      %2791 = vmatprep.subr.bf16.mxu0 0
      %2792 = vmatpush1.bf16.msra.mxu0 0
      %2793 = vmatprep.subr.bf16.mxu0 0
      %2794 = vmatpush1.bf16.msra.mxu0 0
      %2795 = vmatprep.subr.bf16.mxu0 0
      %2796 = vmatpush1.bf16.msra.mxu0 0
      %2797 = vmatprep.subr.bf16.mxu0 0
      %2798 = vmatpush1.bf16.msra.mxu0 0
      %2799 = vmatprep.subr.bf16.mxu0 0
      %2800 = vmatpush1.bf16.msra.mxu0 0
      %2801 = vmatprep.subr.bf16.mxu0 0
      %2802 = vmatpush1.bf16.msra.mxu0 0
      %2803 = vmatprep.mubr.bf16.mxu0 0
      %2804 = vmatmul.mubr.bf16.gmra.mrb[0].mxu0 %v2517
      %v2805 = vpop.f32.mrb[0].mxu0
      %v2806 = vadd.f32 0.0, %v2805
      %v2807 = vpop.f32.mrb[0].mxu0
      %v2808 = vpop.f32.mrb[0].mxu0
      %v2809 = vadd.f32 0.0, %v2808
      %v2810 = vpop.f32.mrb[0].mxu0
      %2811 = vmatprep.mubr.bf16.mxu0 0
      %2812 = vmatmul.mubr.bf16.gmra.mrb[0].mxu0 %v2520
      %v2813 = vpop.f32.mrb[0].mxu0
      %v2814 = vadd.f32 0.0, %v2813
      %v2815 = vpop.f32.mrb[0].mxu0
      %v2816 = vpop.f32.mrb[0].mxu0
      %v2817 = vadd.f32 0.0, %v2816
      %v2818 = vpop.f32.mrb[0].mxu0
      %2819 = vmatprep.mubr.bf16.mxu0 0
      %2820 = vmatmul.mubr.bf16.gmra.mrb[0].mxu0 %v2523
      %v2821 = vpop.f32.mrb[0].mxu0
      %v2822 = vadd.f32 0.0, %v2821
      %v2823 = vpop.f32.mrb[0].mxu0
      %v2824 = vpop.f32.mrb[0].mxu0
      %v2825 = vadd.f32 0.0, %v2824
      %v2826 = vpop.f32.mrb[0].mxu0
      %2827 = vmatprep.mubr.bf16.mxu0 0
      %2828 = vmatmul.mubr.bf16.gmra.mrb[0].mxu0 %v2526
      %v2829 = vpop.f32.mrb[0].mxu0
      %v2830 = vadd.f32 0.0, %v2829
      %v2831 = vpop.f32.mrb[0].mxu0
      %v2832 = vpop.f32.mrb[0].mxu0
      %v2833 = vadd.f32 0.0, %v2832
      %v2834 = vpop.f32.mrb[0].mxu0
      %2835 = vmatprep.mubr.bf16.mxu0 0
      %2836 = vmatmul.mubr.bf16.gmra.mrb[0].mxu0 %v2529
      %v2837 = vpop.f32.mrb[0].mxu0
      %v2838 = vadd.f32 0.0, %v2837
      %v2839 = vpop.f32.mrb[0].mxu0
      %v2840 = vpop.f32.mrb[0].mxu0
      %v2841 = vadd.f32 0.0, %v2840
      %v2842 = vpop.f32.mrb[0].mxu0
      %2843 = vmatprep.mubr.bf16.mxu0 0
      %2844 = vmatmul.mubr.bf16.gmra.mrb[0].mxu0 %v2532
      %v2845 = vpop.f32.mrb[0].mxu0
      %v2846 = vadd.f32 0.0, %v2845
      %v2847 = vpop.f32.mrb[0].mxu0
      %v2848 = vpop.f32.mrb[0].mxu0
      %v2849 = vadd.f32 0.0, %v2848
      %v2850 = vpop.f32.mrb[0].mxu0
      %2851 = vmatprep.mubr.bf16.mxu0 0
      %2852 = vmatmul.mubr.bf16.gmra.mrb[0].mxu0 %v2535
      %v2853 = vpop.f32.mrb[0].mxu0
      %v2854 = vadd.f32 0.0, %v2853
      %v2855 = vpop.f32.mrb[0].mxu0
      %v2856 = vpop.f32.mrb[0].mxu0
      %v2857 = vadd.f32 0.0, %v2856
      %v2858 = vpop.f32.mrb[0].mxu0
      %2859 = vmatprep.mubr.bf16.mxu0 0
      %2860 = vmatmul.mubr.bf16.gmra.mrb[0].mxu0 %v2538
      %v2861 = vpop.f32.mrb[0].mxu0
      %v2862 = vadd.f32 0.0, %v2861
      %v2863 = vpop.f32.mrb[0].mxu0
      %v2864 = vpop.f32.mrb[0].mxu0
      %v2865 = vadd.f32 0.0, %v2864
      %v2866 = vpop.f32.mrb[0].mxu0
      %2867 = vmatprep.mubr.bf16.mxu0 0
      %2868 = vmatmul.mubr.bf16.gmra.mrb[0].mxu0 %v2541
      %v2869 = vpop.f32.mrb[0].mxu0
      %v2870 = vadd.f32 0.0, %v2869
      %v2871 = vpop.f32.mrb[0].mxu0
      %v2872 = vpop.f32.mrb[0].mxu0
      %v2873 = vadd.f32 0.0, %v2872
      %v2874 = vpop.f32.mrb[0].mxu0
      %2875 = vmatprep.mubr.bf16.mxu0 0
      %2876 = vmatmul.mubr.bf16.gmra.mrb[0].mxu0 %v2544
      %v2877 = vpop.f32.mrb[0].mxu0
      %v2878 = vadd.f32 0.0, %v2877
      %v2879 = vpop.f32.mrb[0].mxu0
      %v2880 = vpop.f32.mrb[0].mxu0
      %v2881 = vadd.f32 0.0, %v2880
      %v2882 = vpop.f32.mrb[0].mxu0
      %2883 = vmatprep.mubr.bf16.mxu0 0
      %2884 = vmatmul.mubr.bf16.gmra.mrb[0].mxu0 %v2547
      %v2885 = vpop.f32.mrb[0].mxu0
      %v2886 = vadd.f32 0.0, %v2885
      %v2887 = vpop.f32.mrb[0].mxu0
      %v2888 = vpop.f32.mrb[0].mxu0
      %v2889 = vadd.f32 0.0, %v2888
      %v2890 = vpop.f32.mrb[0].mxu0
      %2891 = vmatprep.mubr.bf16.mxu0 0
      %2892 = vmatmul.mubr.bf16.gmra.mrb[0].mxu0 %v2550
      %v2893 = vpop.f32.mrb[0].mxu0
      %v2894 = vadd.f32 0.0, %v2893
      %v2895 = vpop.f32.mrb[0].mxu0
      %v2896 = vpop.f32.mrb[0].mxu0
      %v2897 = vadd.f32 0.0, %v2896
      %v2898 = vpop.f32.mrb[0].mxu0
      %2899 = vmatprep.mubr.bf16.mxu0 0
      %2900 = vmatmul.mubr.bf16.gmra.mrb[0].mxu0 %v2553
      %v2901 = vpop.f32.mrb[0].mxu0
      %v2902 = vadd.f32 0.0, %v2901
      %v2903 = vpop.f32.mrb[0].mxu0
      %v2904 = vpop.f32.mrb[0].mxu0
      %v2905 = vadd.f32 0.0, %v2904
      %v2906 = vpop.f32.mrb[0].mxu0
      %2907 = vmatprep.mubr.bf16.mxu0 0
      %2908 = vmatmul.mubr.bf16.gmra.mrb[0].mxu0 %v2556
      %v2909 = vpop.f32.mrb[0].mxu0
      %v2910 = vadd.f32 0.0, %v2909
      %v2911 = vpop.f32.mrb[0].mxu0
      %v2912 = vpop.f32.mrb[0].mxu0
      %v2913 = vadd.f32 0.0, %v2912
      %v2914 = vpop.f32.mrb[0].mxu0
      %2915 = vmatprep.mubr.bf16.mxu0 0
      %2916 = vmatmul.mubr.bf16.gmra.mrb[0].mxu0 %v2559
      %v2917 = vpop.f32.mrb[0].mxu0
      %v2918 = vadd.f32 0.0, %v2917
      %v2919 = vpop.f32.mrb[0].mxu0
      %v2920 = vpop.f32.mrb[0].mxu0
      %v2921 = vadd.f32 0.0, %v2920
      %v2922 = vpop.f32.mrb[0].mxu0
      %2923 = vmatprep.mubr.bf16.mxu0 0
      %2924 = vmatmul.mubr.bf16.gmra.mrb[0].mxu0 %v2766
      %v2925 = vpop.f32.mrb[0].mxu0
      %v2926 = vadd.f32 0.0, %v2925
      %v2927 = vpop.f32.mrb[0].mxu0
      %v2928 = vpop.f32.mrb[0].mxu0
      %v2929 = vadd.f32 0.0, %v2928
      %v2930 = vpop.f32.mrb[0].mxu0
      %2931 = vdwg.mxu0
      %v2932 = vadd.f32 %v2725, %v2806
      %v2933 = vadd.f32 %v2726, %v2809
      %v2934 = vadd.f32 %v2727, %v2814
      %v2935 = vadd.f32 %v2728, %v2817
      %v2936 = vadd.f32 %v2729, %v2822
      %v2937 = vadd.f32 %v2730, %v2825
      %v2938 = vadd.f32 %v2731, %v2830
      %v2939 = vadd.f32 %v2732, %v2833
      %v2940 = vadd.f32 %v2733, %v2838
      %v2941 = vadd.f32 %v2734, %v2841
      %v2942 = vadd.f32 %v2735, %v2846
      %v2943 = vadd.f32 %v2736, %v2849
      %v2944 = vadd.f32 %v2737, %v2854
      %v2945 = vadd.f32 %v2738, %v2857
      %v2946 = vadd.f32 %v2739, %v2862
      %v2947 = vadd.f32 %v2740, %v2865
      %v2948 = vadd.f32 %v2741, %v2870
      %v2949 = vadd.f32 %v2742, %v2873
      %v2950 = vadd.f32 %v2743, %v2878
      %v2951 = vadd.f32 %v2744, %v2881
      %v2952 = vadd.f32 %v2745, %v2886
      %v2953 = vadd.f32 %v2746, %v2889
      %v2954 = vadd.f32 %v2747, %v2894
      %v2955 = vadd.f32 %v2748, %v2897
      %v2956 = vadd.f32 %v2749, %v2902
      %v2957 = vadd.f32 %v2750, %v2905
      %v2958 = vadd.f32 %v2751, %v2910
      %v2959 = vadd.f32 %v2752, %v2913
      %v2960 = vadd.f32 %v2753, %v2918
      %v2961 = vadd.f32 %v2754, %v2921
      %v2962 = vadd.f32 %v2755, %v2926
      %v2963 = vadd.f32 %v2756, %v2929
      %s2964 = scalar_lea.vmem %s4, 16
      %v2965 = vld [vmem:[%s2964] sm:$0xf]
      %v2966 = vld [vmem:[%s2964 + $0x4] sm:$0x3]
      %v2969 = vunpack.c.l.b16 %v2965
      %v2970 = vunpack.c.l.b16 %v2966
      %v2971 = vpack.c.b16 %v2970, %v2969
      %v2973 = vsel %vm1056, %v2498, 0
      %v2976 = vsel %vm1111, %v2971, 0
      %2978 = vmatprep.subr.bf16.mxu0 0
      %2979 = vmatpush1.bf16.msra.mxu0 %v2976
      %2980 = vmatprep.subr.bf16.mxu0 0
      %2981 = vmatpush1.bf16.msra.mxu0 0
      %2982 = vmatprep.subr.bf16.mxu0 0
      %2983 = vmatpush1.bf16.msra.mxu0 0
      %2984 = vmatprep.subr.bf16.mxu0 0
      %2985 = vmatpush1.bf16.msra.mxu0 0
      %2986 = vmatprep.subr.bf16.mxu0 0
      %2987 = vmatpush1.bf16.msra.mxu0 0
      %2988 = vmatprep.subr.bf16.mxu0 0
      %2989 = vmatpush1.bf16.msra.mxu0 0
      %2990 = vmatprep.subr.bf16.mxu0 0
      %2991 = vmatpush1.bf16.msra.mxu0 0
      %2992 = vmatprep.subr.bf16.mxu0 0
      %2993 = vmatpush1.bf16.msra.mxu0 0
      %2994 = vmatprep.subr.bf16.mxu0 0
      %2995 = vmatpush1.bf16.msra.mxu0 0
      %2996 = vmatprep.subr.bf16.mxu0 0
      %2997 = vmatpush1.bf16.msra.mxu0 0
      %2998 = vmatprep.subr.bf16.mxu0 0
      %2999 = vmatpush1.bf16.msra.mxu0 0
      %3000 = vmatprep.subr.bf16.mxu0 0
      %3001 = vmatpush1.bf16.msra.mxu0 0
      %3002 = vmatprep.subr.bf16.mxu0 0
      %3003 = vmatpush1.bf16.msra.mxu0 0
      %3004 = vmatprep.subr.bf16.mxu0 0
      %3005 = vmatpush1.bf16.msra.mxu0 0
      %3006 = vmatprep.subr.bf16.mxu0 0
      %3007 = vmatpush1.bf16.msra.mxu0 0
      %3008 = vmatprep.subr.bf16.mxu0 0
      %3009 = vmatpush1.bf16.msra.mxu0 0
      %3010 = vmatprep.mubr.bf16.mxu0 0
      %3011 = vmatmul.mubr.bf16.gmra.mrb[0].mxu0 %v2520
      %v3012 = vpop.f32.mrb[0].mxu0
      %v3013 = vadd.f32 0.0, %v3012
      %v3014 = vpop.f32.mrb[0].mxu0
      %v3015 = vpop.f32.mrb[0].mxu0
      %v3016 = vadd.f32 0.0, %v3015
      %v3017 = vpop.f32.mrb[0].mxu0
      %3018 = vmatprep.mubr.bf16.mxu0 0
      %3019 = vmatmul.mubr.bf16.gmra.mrb[0].mxu0 %v2523
      %v3020 = vpop.f32.mrb[0].mxu0
      %v3021 = vadd.f32 0.0, %v3020
      %v3022 = vpop.f32.mrb[0].mxu0
      %v3023 = vpop.f32.mrb[0].mxu0
      %v3024 = vadd.f32 0.0, %v3023
      %v3025 = vpop.f32.mrb[0].mxu0
      %3026 = vmatprep.mubr.bf16.mxu0 0
      %3027 = vmatmul.mubr.bf16.gmra.mrb[0].mxu0 %v2526
      %v3028 = vpop.f32.mrb[0].mxu0
      %v3029 = vadd.f32 0.0, %v3028
      %v3030 = vpop.f32.mrb[0].mxu0
      %v3031 = vpop.f32.mrb[0].mxu0
      %v3032 = vadd.f32 0.0, %v3031
      %v3033 = vpop.f32.mrb[0].mxu0
      %3034 = vmatprep.mubr.bf16.mxu0 0
      %3035 = vmatmul.mubr.bf16.gmra.mrb[0].mxu0 %v2529
      %v3036 = vpop.f32.mrb[0].mxu0
      %v3037 = vadd.f32 0.0, %v3036
      %v3038 = vpop.f32.mrb[0].mxu0
      %v3039 = vpop.f32.mrb[0].mxu0
      %v3040 = vadd.f32 0.0, %v3039
      %v3041 = vpop.f32.mrb[0].mxu0
      %3042 = vmatprep.mubr.bf16.mxu0 0
      %3043 = vmatmul.mubr.bf16.gmra.mrb[0].mxu0 %v2532
      %v3044 = vpop.f32.mrb[0].mxu0
      %v3045 = vadd.f32 0.0, %v3044
      %v3046 = vpop.f32.mrb[0].mxu0
      %v3047 = vpop.f32.mrb[0].mxu0
      %v3048 = vadd.f32 0.0, %v3047
      %v3049 = vpop.f32.mrb[0].mxu0
      %3050 = vmatprep.mubr.bf16.mxu0 0
      %3051 = vmatmul.mubr.bf16.gmra.mrb[0].mxu0 %v2535
      %v3052 = vpop.f32.mrb[0].mxu0
      %v3053 = vadd.f32 0.0, %v3052
      %v3054 = vpop.f32.mrb[0].mxu0
      %v3055 = vpop.f32.mrb[0].mxu0
      %v3056 = vadd.f32 0.0, %v3055
      %v3057 = vpop.f32.mrb[0].mxu0
      %3058 = vmatprep.mubr.bf16.mxu0 0
      %3059 = vmatmul.mubr.bf16.gmra.mrb[0].mxu0 %v2538
      %v3060 = vpop.f32.mrb[0].mxu0
      %v3061 = vadd.f32 0.0, %v3060
      %v3062 = vpop.f32.mrb[0].mxu0
      %v3063 = vpop.f32.mrb[0].mxu0
      %v3064 = vadd.f32 0.0, %v3063
      %v3065 = vpop.f32.mrb[0].mxu0
      %3066 = vmatprep.mubr.bf16.mxu0 0
      %3067 = vmatmul.mubr.bf16.gmra.mrb[0].mxu0 %v2541
      %v3068 = vpop.f32.mrb[0].mxu0
      %v3069 = vadd.f32 0.0, %v3068
      %v3070 = vpop.f32.mrb[0].mxu0
      %v3071 = vpop.f32.mrb[0].mxu0
      %v3072 = vadd.f32 0.0, %v3071
      %v3073 = vpop.f32.mrb[0].mxu0
      %3074 = vmatprep.mubr.bf16.mxu0 0
      %3075 = vmatmul.mubr.bf16.gmra.mrb[0].mxu0 %v2544
      %v3076 = vpop.f32.mrb[0].mxu0
      %v3077 = vadd.f32 0.0, %v3076
      %v3078 = vpop.f32.mrb[0].mxu0
      %v3079 = vpop.f32.mrb[0].mxu0
      %v3080 = vadd.f32 0.0, %v3079
      %v3081 = vpop.f32.mrb[0].mxu0
      %3082 = vmatprep.mubr.bf16.mxu0 0
      %3083 = vmatmul.mubr.bf16.gmra.mrb[0].mxu0 %v2547
      %v3084 = vpop.f32.mrb[0].mxu0
      %v3085 = vadd.f32 0.0, %v3084
      %v3086 = vpop.f32.mrb[0].mxu0
      %v3087 = vpop.f32.mrb[0].mxu0
      %v3088 = vadd.f32 0.0, %v3087
      %v3089 = vpop.f32.mrb[0].mxu0
      %3090 = vmatprep.mubr.bf16.mxu0 0
      %3091 = vmatmul.mubr.bf16.gmra.mrb[0].mxu0 %v2550
      %v3092 = vpop.f32.mrb[0].mxu0
      %v3093 = vadd.f32 0.0, %v3092
      %v3094 = vpop.f32.mrb[0].mxu0
      %v3095 = vpop.f32.mrb[0].mxu0
      %v3096 = vadd.f32 0.0, %v3095
      %v3097 = vpop.f32.mrb[0].mxu0
      %3098 = vmatprep.mubr.bf16.mxu0 0
      %3099 = vmatmul.mubr.bf16.gmra.mrb[0].mxu0 %v2553
      %v3100 = vpop.f32.mrb[0].mxu0
      %v3101 = vadd.f32 0.0, %v3100
      %v3102 = vpop.f32.mrb[0].mxu0
      %v3103 = vpop.f32.mrb[0].mxu0
      %v3104 = vadd.f32 0.0, %v3103
      %v3105 = vpop.f32.mrb[0].mxu0
      %3106 = vmatprep.mubr.bf16.mxu0 0
      %3107 = vmatmul.mubr.bf16.gmra.mrb[0].mxu0 %v2556
      %v3108 = vpop.f32.mrb[0].mxu0
      %v3109 = vadd.f32 0.0, %v3108
      %v3110 = vpop.f32.mrb[0].mxu0
      %v3111 = vpop.f32.mrb[0].mxu0
      %v3112 = vadd.f32 0.0, %v3111
      %v3113 = vpop.f32.mrb[0].mxu0
      %3114 = vmatprep.mubr.bf16.mxu0 0
      %3115 = vmatmul.mubr.bf16.gmra.mrb[0].mxu0 %v2559
      %v3116 = vpop.f32.mrb[0].mxu0
      %v3117 = vadd.f32 0.0, %v3116
      %v3118 = vpop.f32.mrb[0].mxu0
      %v3119 = vpop.f32.mrb[0].mxu0
      %v3120 = vadd.f32 0.0, %v3119
      %v3121 = vpop.f32.mrb[0].mxu0
      %3122 = vmatprep.mubr.bf16.mxu0 0
      %3123 = vmatmul.mubr.bf16.gmra.mrb[0].mxu0 %v2766
      %v3124 = vpop.f32.mrb[0].mxu0
      %v3125 = vadd.f32 0.0, %v3124
      %v3126 = vpop.f32.mrb[0].mxu0
      %v3127 = vpop.f32.mrb[0].mxu0
      %v3128 = vadd.f32 0.0, %v3127
      %v3129 = vpop.f32.mrb[0].mxu0
      %3130 = vmatprep.mubr.bf16.mxu0 0
      %3131 = vmatmul.mubr.bf16.gmra.mrb[0].mxu0 %v2973
      %v3132 = vpop.f32.mrb[0].mxu0
      %v3133 = vadd.f32 0.0, %v3132
      %v3134 = vpop.f32.mrb[0].mxu0
      %v3135 = vpop.f32.mrb[0].mxu0
      %v3136 = vadd.f32 0.0, %v3135
      %v3137 = vpop.f32.mrb[0].mxu0
      %3138 = vdwg.mxu0
      %v3139 = vadd.f32 %v2932, %v3013
      %v3140 = vadd.f32 %v2933, %v3016
      %v3141 = vadd.f32 %v2934, %v3021
      %v3142 = vadd.f32 %v2935, %v3024
      %v3143 = vadd.f32 %v2936, %v3029
      %v3144 = vadd.f32 %v2937, %v3032
      %v3145 = vadd.f32 %v2938, %v3037
      %v3146 = vadd.f32 %v2939, %v3040
      %v3147 = vadd.f32 %v2940, %v3045
      %v3148 = vadd.f32 %v2941, %v3048
      %v3149 = vadd.f32 %v2942, %v3053
      %v3150 = vadd.f32 %v2943, %v3056
      %v3151 = vadd.f32 %v2944, %v3061
      %v3152 = vadd.f32 %v2945, %v3064
      %v3153 = vadd.f32 %v2946, %v3069
      %v3154 = vadd.f32 %v2947, %v3072
      %v3155 = vadd.f32 %v2948, %v3077
      %v3156 = vadd.f32 %v2949, %v3080
      %v3157 = vadd.f32 %v2950, %v3085
      %v3158 = vadd.f32 %v2951, %v3088
      %v3159 = vadd.f32 %v2952, %v3093
      %v3160 = vadd.f32 %v2953, %v3096
      %v3161 = vadd.f32 %v2954, %v3101
      %v3162 = vadd.f32 %v2955, %v3104
      %v3163 = vadd.f32 %v2956, %v3109
      %v3164 = vadd.f32 %v2957, %v3112
      %v3165 = vadd.f32 %v2958, %v3117
      %v3166 = vadd.f32 %v2959, %v3120
      %v3167 = vadd.f32 %v2960, %v3125
      %v3168 = vadd.f32 %v2961, %v3128
      %v3169 = vadd.f32 %v2962, %v3133
      %v3170 = vadd.f32 %v2963, %v3136
      %v3171 = vadd.f32 %v331, %v3139
      %v3172 = vadd.f32 %v332, %v3140
      %v3173 = vadd.f32 %v333, %v3141
      %v3174 = vadd.f32 %v334, %v3142
      %v3175 = vadd.f32 %v335, %v3143
      %v3176 = vadd.f32 %v336, %v3144
      %v3177 = vadd.f32 %v337, %v3145
      %v3178 = vadd.f32 %v338, %v3146
      %v3179 = vadd.f32 %v339, %v3147
      %v3180 = vadd.f32 %v340, %v3148
      %v3181 = vadd.f32 %v341, %v3149
      %v3182 = vadd.f32 %v342, %v3150
      %v3183 = vadd.f32 %v343, %v3151
      %v3184 = vadd.f32 %v344, %v3152
      %v3185 = vadd.f32 %v345, %v3153
      %v3186 = vadd.f32 %v346, %v3154
      %v3187 = vadd.f32 %v347, %v3155
      %v3188 = vadd.f32 %v348, %v3156
      %v3189 = vadd.f32 %v349, %v3157
      %v3190 = vadd.f32 %v350, %v3158
      %v3191 = vadd.f32 %v351, %v3159
      %v3192 = vadd.f32 %v352, %v3160
      %v3193 = vadd.f32 %v353, %v3161
      %v3194 = vadd.f32 %v354, %v3162
      %v3195 = vadd.f32 %v355, %v3163
      %v3196 = vadd.f32 %v356, %v3164
      %v3197 = vadd.f32 %v357, %v3165
      %v3198 = vadd.f32 %v358, %v3166
      %v3199 = vadd.f32 %v359, %v3167
      %v3200 = vadd.f32 %v360, %v3168
      %v3201 = vadd.f32 %v361, %v3169
      %v3202 = vadd.f32 %v362, %v3170
      %3203 = vst.msk [vmem:[%s328] sm:$0xff] %vm940, %v3171
      %3204 = vst.msk [vmem:[%s328 + $0x8] sm:$0xff] %vm940, %v3172
      %3205 = vst.msk [vmem:[%s328 + $0x10] sm:$0xff] %vm940, %v3173
      %3206 = vst.msk [vmem:[%s328 + $0x18] sm:$0xff] %vm940, %v3174
      %3207 = vst.msk [vmem:[%s328 + $0x20] sm:$0xff] %vm940, %v3175
      %3208 = vst.msk [vmem:[%s328 + $0x28] sm:$0xff] %vm940, %v3176
      %3209 = vst.msk [vmem:[%s328 + $0x30] sm:$0xff] %vm940, %v3177
      %3210 = vst.msk [vmem:[%s328 + $0x38] sm:$0xff] %vm940, %v3178
      %3211 = vst.msk [vmem:[%s328 + $0x40] sm:$0xff] %vm940, %v3179
      %3212 = vst.msk [vmem:[%s328 + $0x48] sm:$0xff] %vm940, %v3180
      %3213 = vst.msk [vmem:[%s328 + $0x50] sm:$0xff] %vm940, %v3181
      %3214 = vst.msk [vmem:[%s328 + $0x58] sm:$0xff] %vm940, %v3182
      %3215 = vst.msk [vmem:[%s328 + $0x60] sm:$0xff] %vm940, %v3183
      %3216 = vst.msk [vmem:[%s328 + $0x68] sm:$0xff] %vm940, %v3184
      %3217 = vst.msk [vmem:[%s328 + $0x70] sm:$0xff] %vm940, %v3185
      %3218 = vst.msk [vmem:[%s328 + $0x78] sm:$0xff] %vm940, %v3186
      %3219 = vst.msk [vmem:[%s328 + $0x80] sm:$0xff] %vm940, %v3187
      %3220 = vst.msk [vmem:[%s328 + $0x88] sm:$0xff] %vm940, %v3188
      %3221 = vst.msk [vmem:[%s328 + $0x90] sm:$0xff] %vm940, %v3189
      %3222 = vst.msk [vmem:[%s328 + $0x98] sm:$0xff] %vm940, %v3190
      %3223 = vst.msk [vmem:[%s328 + $0xa0] sm:$0xff] %vm940, %v3191
      %3224 = vst.msk [vmem:[%s328 + $0xa8] sm:$0xff] %vm940, %v3192
      %3225 = vst.msk [vmem:[%s328 + $0xb0] sm:$0xff] %vm940, %v3193
      %3226 = vst.msk [vmem:[%s328 + $0xb8] sm:$0xff] %vm940, %v3194
      %3227 = vst.msk [vmem:[%s328 + $0xc0] sm:$0xff] %vm940, %v3195
      %3228 = vst.msk [vmem:[%s328 + $0xc8] sm:$0xff] %vm940, %v3196
      %3229 = vst.msk [vmem:[%s328 + $0xd0] sm:$0xff] %vm940, %v3197
      %3230 = vst.msk [vmem:[%s328 + $0xd8] sm:$0xff] %vm940, %v3198
      %3231 = vst.msk [vmem:[%s328 + $0xe0] sm:$0xff] %vm940, %v3199
      %3232 = vst.msk [vmem:[%s328 + $0xe8] sm:$0xff] %vm940, %v3200
      %3233 = vst.msk [vmem:[%s328 + $0xf0] sm:$0xff] %vm940, %v3201
      %3234 = vst.msk [vmem:[%s328 + $0xf8] sm:$0xff] %vm940, %v3202
      %s3235 = smul.u32 16, %s22
      %p3236 = scmp.lt.s32.totalorder %s21, 1
      %s3237 = scalar_select %p3236, %s21, 1
      %p3238 = scmp.lt.s32.totalorder %s3235, 15
      %s3239 = scalar_select %p3238, %s3235, 15
      %s3240 = smul.addr %s3239, 2
      %s3241 = smul.addr %s3237, 32
      %s3242 = sadd.s32 %s3240, %s3241
      %s3243 = smul.addr %s3242, 8
      %s3244 = scalar_lea.vmem %s6, %s3243
      // Predicated region
      $region49: #{tpu_custom_call.1} parent=43 // pred_check
        %p3245 = pneg %p189
      $region50: #{tpu_custom_call.1} parent=43 // pred_check_branch
        %3247 = sbr.rel (%p3245) target = $region52
      $region51: #{tpu_custom_call.1} parent=43 // pred_region
        %s3248 = smul.u32 16, %s22
      $region52: #{tpu_custom_call.1} parent=43 // pred_fallthru
        _
    $region44: #{tpu_custom_call.1} parent=5 // pred_fallthru
      _
    %p3249 = scmp.le.s32.totalorder 2, %s12
    // Predicated region
    $region53: #{tpu_custom_call.1} parent=5 // pred_check
      %p3250 = pneg %p3249
    $region54: #{tpu_custom_call.1} parent=5 // pred_check_branch
      %3252 = sbr.rel (%p3250) target = $region56
    $region55: #{tpu_custom_call.1} parent=5 // pred_region
      %s3253 = ssub.s32 %s12, 2
      // Predicated region
      $region57: #{tpu_custom_call.1} parent=55 // pred_check
        %p3254 = pneg %p195
      $region58: #{tpu_custom_call.1} parent=55 // pred_check_branch
        %3256 = sbr.rel (%p3254) target = $region60
      $region59: #{tpu_custom_call.1} parent=55 // pred_region
        %s3257 = smul.u32 16, %s24
        %p3258 = scmp.lt.s32.totalorder %s23, 1
        %s3259 = scalar_select %p3258, %s23, 1
        %p3260 = scmp.lt.s32.totalorder %s3257, 15
        %s3261 = scalar_select %p3260, %s3257, 15
        %s3262 = smul.addr %s3261, 2
        %s3263 = smul.addr %s3259, 32
        %s3264 = sadd.s32 %s3262, %s3263
        %s3265 = smul.addr %s3264, 8
        %s3266 = scalar_lea.vmem %s6, %s3265
      $region60: #{tpu_custom_call.1} parent=55 // pred_fallthru
        _
    $region56: #{tpu_custom_call.1} parent=5 // pred_fallthru
      _
  $region6: #{tpu_custom_call.1} parent=0 // loop_footer
    %s16 = sadd.s32 1, %s12
  $region7: #{tpu_custom_call.1} parent=0 // loop_footer_branch
    %11 = sbr.rel target = $region3
  $region8: #{tpu_custom_call.1} parent=0 // loop_exit
    _

</llo_original>
